<compile_context>
chip_gen: v6e
topology: v6e:2x2x1
jax: 0.10.0
libtpu: 0.0.40
codegen_flags: <defaults>
</compile_context>

<pallas_src>
import math
from functools import partial

import jax
import jax.numpy as jnp
from jax import lax
from jax.experimental import pallas as pl
from jax.experimental.pallas import tpu as pltpu


# f32 matmuls that numerically match the f32 reference (no silent bf16 pass).
_DOT_KW = dict(precision=lax.Precision.HIGHEST,
               preferred_element_type=jnp.float32)


# ----------------------------------------------------------------------------
# In-kernel helpers
# ----------------------------------------------------------------------------
def _gelu_exact(x):
    """Exact (erf) GELU.  erf via the Abramowitz & Stegun 7.1.26 rational
    approximation (|err| <= 1.5e-7): far inside the 1e-3 tolerance and uses
    only exp / divide, both natively supported in Mosaic."""
    z = x * 0.7071067811865476                      # x / sqrt(2)
    a = jnp.abs(z)
    t = 1.0 / (1.0 + 0.3275911 * a)
    poly = t * (0.254829592
                + t * (-0.284496736
                       + t * (1.421413741
                              + t * (-1.453152027
                                     + t * 1.061405429))))
    erf_abs = 1.0 - poly * jnp.exp(-a * a)
    erf = jnp.where(z >= 0.0, erf_abs, -erf_abs)
    return 0.5 * x * (1.0 + erf)


# ----------------------------------------------------------------------------
# Pallas kernel: one batch-tile per grid step, channels-on-sublanes /
# (batch*pixels)-on-lanes layout.  Each KxK "same" conv is ONE matmul over an
# im2col buffer built from a zero-padded activation slab with static lane
# slices; a single precomputed mask zeroes every out-of-image tap.
# ----------------------------------------------------------------------------
def _preblock_kernel(x_ref, m_ref, w0_ref, b0_ref, w1_ref, b1_ref, w2_ref,
                     b2_ref, o_ref, *, W, K, lpad):
    pad = (K - 1) // 2            # "SAME": stride 1, odd K -> symmetric pad
    n = x_ref.shape[-1]           # Bt * H * W lanes

    # ---- conv0: 1x1 conv == (Cout, Cin) @ (Cin, N) matmul --------------------
    h = jnp.dot(w0_ref[...], x_ref[...], **_DOT_KW) + b0_ref[...]
    h = _gelu_exact(h)                                         # (Cout, N)

    # ---- KxK "same" conv: im2col (K*K*Cout, N), then a single matmul ---------
    def conv_same(h_in, w_ref, b_ref):
        c = h_in.shape[0]
        z = jnp.zeros((c, lpad), h_in.dtype)
        # lane-aligned zero pad on both ends (lpad is a multiple of 128)
        hp = jnp.concatenate([z, h_in, z], axis=1)             # (c, n + 2*lpad)
        taps = []
        for dh in range(K):
            for dw in range(K):
                s = (dh - pad) * W + (dw - pad)                # flat spatial offset
                taps.append(hp[:, lpad + s: lpad + s + n])     # t[:, p] = h[:, p+s]
        cols = jnp.concatenate(taps, axis=0)                   # (K*K*c, n)
        cols = cols * m_ref[...]          # one multiply zeroes all invalid taps
        return jnp.dot(w_ref[...], cols, **_DOT_KW) + b_ref[...]

    h = _gelu_exact(conv_same(h, w1_ref, b1_ref))      # conv1 + act1
    out = conv_same(h, w2_ref, b2_ref)                 # conv2 (no activation)

    o_ref[...] = out.astype(o_ref.dtype)               # lane-dense (Cout, N) store


# ----------------------------------------------------------------------------
# Static tap-validity mask, pre-expanded to (K*K*Cout, Bt*H*W):
# row (dh*K+dw)*Cout + i, lane b*HW + r*W + c is 1 iff the source pixel
# (r+dh-pad, c+dw-pad) lies inside the image (handles SAME zero padding AND
# cross-image bleed from folding batch into the lane axis).
# ----------------------------------------------------------------------------
def _col_masks(H, W, K, cout, bt):
    pad = (K - 1) // 2
    r = jnp.arange(H, dtype=jnp.int32)[:, None]        # (H, 1)
    c = jnp.arange(W, dtype=jnp.int32)[None, :]        # (1, W)
    rows = []
    for dh in range(K):
        dr = dh - pad
        for dw in range(K):
            dc = dw - pad
            ok = ((r + dr >= 0) & (r + dr < H) & (c + dc >= 0) & (c + dc < W))
            rows.append(jnp.broadcast_to(ok.reshape(1, H * W), (cout, H * W)))
    m = jnp.concatenate(rows, axis=0).astype(jnp.float32)      # (K*K*cout, HW)
    return jnp.tile(m, (1, bt))                                # (K*K*cout, bt*HW)


# ----------------------------------------------------------------------------
# Wrapper: NCHW in / NCHW out.  Batch is folded into the lane axis; the grid
# iterates over batch tiles of `images_per_step` images.
# ----------------------------------------------------------------------------
def preblock_forward(x_nchw, params, *, images_per_step=None):
    w0, b0, w1, b1, w2, b2 = params
    B, Cin, H, W = x_nchw.shape
    K = w1.shape[0]
    Cout = w0.shape[1]
    HW = H * W
    assert K % 2 == 1, "odd kernel -> symmetric SAME padding"

    # Pick images per grid step: target >= 512 lanes per matmul to amortize
    # MXU weight pushes and per-step overhead.  (On v7x keep B//bt >= 2.)
    if images_per_step is None:
        bt = max(1, min(B, pl.cdiv(512, HW)))
        while B % bt:
            bt -= 1
    else:
        bt = images_per_step
    assert B % bt == 0
    n_lane = bt * HW
    grid = (B // bt,)

    # Lane-aligned zero-pad width for the in-kernel shifted slices.
    lmax = ((K - 1) // 2) * (W + 1)
    lpad = max(128, pl.cdiv(lmax, 128) * 128)

    # Host-side layout work (tiny, one-time): channels-major activations,
    # pre-transposed weights, pre-expanded masks.
    x_cm = jnp.transpose(x_nchw, (1, 0, 2, 3)).reshape(Cin, B * HW)
    x_cm = x_cm.astype(jnp.float32)
    masks = _col_masks(H, W, K, Cout, bt)                                # (K*K*Cout, bt*HW)
    w0t = jnp.transpose(w0).astype(jnp.float32)                          # (Cout, Cin)
    w1t = jnp.transpose(w1.reshape(K * K * Cout, Cout)).astype(jnp.float32)  # (Cout, K*K*Cout)
    w2t = jnp.transpose(w2.reshape(K * K * Cout, Cout)).astype(jnp.float32)
    b0c = b0.reshape(Cout, 1).astype(jnp.float32)
    b1c = b1.reshape(Cout, 1).astype(jnp.float32)
    b2c = b2.reshape(Cout, 1).astype(jnp.float32)

    out_cm = pl.pallas_call(
        partial(_preblock_kernel, W=W, K=K, lpad=lpad),
        out_shape=jax.ShapeDtypeStruct((Cout, B * HW), jnp.float32),
        grid_spec=pltpu.PrefetchScalarGridSpec(
            num_scalar_prefetch=0,
            grid=grid,
            in_specs=[
                pl.BlockSpec((Cin, n_lane), lambda i: (0, i)),
                # grid-invariant operands: constant index maps (no re-fetch)
                pl.BlockSpec((K * K * Cout, n_lane), lambda i: (0, 0)),
                pl.BlockSpec((Cout, Cin), lambda i: (0, 0)),
                pl.BlockSpec((Cout, 1), lambda i: (0, 0)),
                pl.BlockSpec((Cout, K * K * Cout), lambda i: (0, 0)),
                pl.BlockSpec((Cout, 1), lambda i: (0, 0)),
                pl.BlockSpec((Cout, K * K * Cout), lambda i: (0, 0)),
                pl.BlockSpec((Cout, 1), lambda i: (0, 0)),
            ],
            out_specs=pl.BlockSpec((Cout, n_lane), lambda i: (0, i)),
        ),
        compiler_params=pltpu.CompilerParams(
            dimension_semantics=("parallel",)),   # independent per-batch-tile work
        # NOTE: at production resolutions add vmem_limit_bytes here and switch
        # the lane axis to H-row tiles with a (K-1)-row halo (v7x: 64 MiB VMEM).
    )(x_cm, masks, w0t, b0c, w1t, b1c, w2t, b2c)

    # (Cout, B*H*W) -> NCHW
    return jnp.transpose(out_cm.reshape(Cout, B, H, W), (1, 0, 2, 3))


# ----------------------------------------------------------------------------
# Pure-JAX reference (for a correctness check of the kernel)
# ----------------------------------------------------------------------------
def preblock_reference(x_nchw, params):
    w0, b0, w1, b1, w2, b2 = params
    x = jnp.transpose(x_nchw, (0, 2, 3, 1)).astype(jnp.float32)
    y = jnp.einsum("bhwc,cd->bhwd", x, w0,
                   precision=lax.Precision.HIGHEST) + b0
    y = jax.nn.gelu(y, approximate=False)

    def conv(z, w, b):
        o = lax.conv_general_dilated(
            z, w, window_strides=(1, 1), padding="SAME",
            dimension_numbers=("NHWC", "HWIO", "NHWC"),
            precision=lax.Precision.HIGHEST)
        return o + b

    y = jax.nn.gelu(conv(y, w1, b1), approximate=False)
    y = conv(y, w2, b2)
    return jnp.transpose(y, (0, 3, 1, 2))


# ----------------------------------------------------------------------------
# Deterministic parameter init (PyTorch Conv2d-style uniform fan-in bounds)
# ----------------------------------------------------------------------------
def init_params(key, cin, cout, k):
    ks = jax.random.split(key, 6)
    bound0 = 1.0 / math.sqrt(cin * 1 * 1)
    bound = 1.0 / math.sqrt(cout * k * k)
    w0 = jax.random.uniform(ks[0], (cin, cout), jnp.float32, -bound0, bound0)
    b0 = jax.random.uniform(ks[1], (cout,), jnp.float32, -bound0, bound0)
    w1 = jax.random.uniform(ks[2], (k, k, cout, cout), jnp.float32, -bound, bound)
    b1 = jax.random.uniform(ks[3], (cout,), jnp.float32, -bound, bound)
    w2 = jax.random.uniform(ks[4], (k, k, cout, cout), jnp.float32, -bound, bound)
    b2 = jax.random.uniform(ks[5], (cout,), jnp.float32, -bound, bound)
    return (w0, b0, w1, b1, w2, b2)


if __name__ == "__main__":
    B, Cin, H, W = 2, 4, 16, 16      # FusedMBConvConfig(input_channels=4, out_channels=8, kernel=3)
    Cout, K = 8, 3

    key = jax.random.PRNGKey(0)
    k_params, k_x = jax.random.split(key)
    params = init_params(k_params, Cin, Cout, K)
    x = jax.random.normal(k_x, (B, Cin, H, W), jnp.float32)

    y = preblock_forward(x, params)
    y = jax.block_until_ready(y)

    y_ref = preblock_reference(x, params)
    assert y.shape == (B, Cout, H, W)
    assert jnp.allclose(y, y_ref, rtol=1e-3, atol=1e-3), "kernel mismatch vs reference"

    print("KERNEL_OK")
</pallas_src>

<mosaic_0001>
module attributes {stable_mosaic.version = 11 : i64} {
  func.func @_preblock_kernel(%arg0: i32, %arg1: memref<4x512xf32, #tpu.memory_space<vmem>>, %arg2: memref<72x512xf32, #tpu.memory_space<vmem>>, %arg3: memref<8x4xf32, #tpu.memory_space<vmem>>, %arg4: memref<8x1xf32, #tpu.memory_space<vmem>>, %arg5: memref<8x72xf32, #tpu.memory_space<vmem>>, %arg6: memref<8x1xf32, #tpu.memory_space<vmem>>, %arg7: memref<8x72xf32, #tpu.memory_space<vmem>>, %arg8: memref<8x1xf32, #tpu.memory_space<vmem>>, %arg9: memref<8x512xf32, #tpu.memory_space<vmem>>) attributes {dimension_semantics = [#tpu.dimension_semantics<parallel>], iteration_bounds = array<i64: 1>, scalar_prefetch = 0 : i64, scratch_operands = 0 : i64, tpu.core_type = #tpu.core_type<tc>, window_params = [{transform_indices = @transform_0, window_bounds = array<i64: 4, 512>}, {pipeline_mode = #tpu.pipeline_mode<synchronous>, transform_indices = @transform_1, window_bounds = array<i64: 72, 512>}, {pipeline_mode = #tpu.pipeline_mode<synchronous>, transform_indices = @transform_2, window_bounds = array<i64: 8, 4>}, {pipeline_mode = #tpu.pipeline_mode<synchronous>, transform_indices = @transform_3, window_bounds = array<i64: 8, 1>}, {pipeline_mode = #tpu.pipeline_mode<synchronous>, transform_indices = @transform_4, window_bounds = array<i64: 8, 72>}, {pipeline_mode = #tpu.pipeline_mode<synchronous>, transform_indices = @transform_5, window_bounds = array<i64: 8, 1>}, {pipeline_mode = #tpu.pipeline_mode<synchronous>, transform_indices = @transform_6, window_bounds = array<i64: 8, 72>}, {pipeline_mode = #tpu.pipeline_mode<synchronous>, transform_indices = @transform_7, window_bounds = array<i64: 8, 1>}, {transform_indices = @transform_8, window_bounds = array<i64: 8, 512>}]} {
    %c0 = arith.constant 0 : index
    %c0_0 = arith.constant 0 : index
    %0 = vector.load %arg3[%c0, %c0_0] : memref<8x4xf32, #tpu.memory_space<vmem>>, vector<8x4xf32>
    %c0_1 = arith.constant 0 : index
    %c0_2 = arith.constant 0 : index
    %1 = vector.load %arg1[%c0_1, %c0_2] : memref<4x512xf32, #tpu.memory_space<vmem>>, vector<4x512xf32>
    %cst = arith.constant dense<0.000000e+00> : vector<8x512xf32>
    %2 = tpu.matmul %0, %1, %cst {dimension_numbers = #tpu.dot_dimension_numbers<[1], [0], [0], [1], [0, 0, 1, 1], [], []>, precision = #tpu.contract_precision<fp32>} : vector<8x4xf32>, vector<4x512xf32>, vector<8x512xf32> -> vector<8x512xf32>
    %c0_3 = arith.constant 0 : index
    %c0_4 = arith.constant 0 : index
    %3 = vector.load %arg4[%c0_3, %c0_4] : memref<8x1xf32, #tpu.memory_space<vmem>>, vector<8x1xf32>
    %4 = vector.broadcast %3 : vector<8x1xf32> to vector<8x512xf32>
    %5 = arith.addf %2, %4 : vector<8x512xf32>
    %cst_5 = arith.constant 0.707106769 : f32
    %6 = vector.broadcast %cst_5 : f32 to vector<8x512xf32>
    %7 = arith.mulf %5, %6 : vector<8x512xf32>
    %8 = math.absf %7 : vector<8x512xf32>
    %cst_6 = arith.constant 0.327591091 : f32
    %9 = vector.broadcast %cst_6 : f32 to vector<8x512xf32>
    %10 = arith.mulf %9, %8 : vector<8x512xf32>
    %cst_7 = arith.constant 1.000000e+00 : f32
    %11 = vector.broadcast %cst_7 : f32 to vector<8x512xf32>
    %12 = arith.addf %11, %10 : vector<8x512xf32>
    %cst_8 = arith.constant 1.000000e+00 : f32
    %13 = vector.broadcast %cst_8 : f32 to vector<8x512xf32>
    %14 = arith.divf %13, %12 : vector<8x512xf32>
    %cst_9 = arith.constant 1.06140542 : f32
    %15 = vector.broadcast %cst_9 : f32 to vector<8x512xf32>
    %16 = arith.mulf %14, %15 : vector<8x512xf32>
    %cst_10 = arith.constant -1.45315206 : f32
    %17 = vector.broadcast %cst_10 : f32 to vector<8x512xf32>
    %18 = arith.addf %17, %16 : vector<8x512xf32>
    %19 = arith.mulf %14, %18 : vector<8x512xf32>
    %cst_11 = arith.constant 1.42141378 : f32
    %20 = vector.broadcast %cst_11 : f32 to vector<8x512xf32>
    %21 = arith.addf %20, %19 : vector<8x512xf32>
    %22 = arith.mulf %14, %21 : vector<8x512xf32>
    %cst_12 = arith.constant -0.284496725 : f32
    %23 = vector.broadcast %cst_12 : f32 to vector<8x512xf32>
    %24 = arith.addf %23, %22 : vector<8x512xf32>
    %25 = arith.mulf %14, %24 : vector<8x512xf32>
    %cst_13 = arith.constant 0.254829586 : f32
    %26 = vector.broadcast %cst_13 : f32 to vector<8x512xf32>
    %27 = arith.addf %26, %25 : vector<8x512xf32>
    %28 = arith.mulf %14, %27 : vector<8x512xf32>
    %cst_14 = arith.constant 0.000000e+00 : f32
    %29 = vector.broadcast %cst_14 : f32 to vector<8x512xf32>
    %30 = arith.subf %29, %8 : vector<8x512xf32>
    %31 = arith.mulf %30, %8 : vector<8x512xf32>
    %32 = math.exp %31 : vector<8x512xf32>
    %33 = arith.mulf %28, %32 : vector<8x512xf32>
    %cst_15 = arith.constant 1.000000e+00 : f32
    %34 = vector.broadcast %cst_15 : f32 to vector<8x512xf32>
    %35 = arith.subf %34, %33 : vector<8x512xf32>
    %cst_16 = arith.constant 0.000000e+00 : f32
    %36 = vector.broadcast %cst_16 : f32 to vector<8x512xf32>
    %37 = arith.cmpf oge, %7, %36 : vector<8x512xf32>
    %cst_17 = arith.constant 0.000000e+00 : f32
    %38 = vector.broadcast %cst_17 : f32 to vector<8x512xf32>
    %39 = arith.subf %38, %35 : vector<8x512xf32>
    %40 = arith.select %37, %35, %39 : vector<8x512xi1>, vector<8x512xf32>
    %cst_18 = arith.constant 5.000000e-01 : f32
    %41 = vector.broadcast %cst_18 : f32 to vector<8x512xf32>
    %42 = arith.mulf %41, %5 : vector<8x512xf32>
    %cst_19 = arith.constant 1.000000e+00 : f32
    %43 = vector.broadcast %cst_19 : f32 to vector<8x512xf32>
    %44 = arith.addf %43, %40 : vector<8x512xf32>
    %45 = arith.mulf %42, %44 : vector<8x512xf32>
    %cst_20 = arith.constant 0.000000e+00 : f32
    %46 = vector.broadcast %cst_20 : f32 to vector<8x128xf32>
    %47 = tpu.concatenate %46, %45, %46 in 1 : vector<8x128xf32>, vector<8x512xf32>, vector<8x128xf32> -> vector<8x768xf32>
    %48 = vector.extract_strided_slice %47 {offsets = [0, 111], sizes = [8, 512], strides = [1, 1]} : vector<8x768xf32> to vector<8x512xf32>
    %49 = vector.extract_strided_slice %47 {offsets = [0, 112], sizes = [8, 512], strides = [1, 1]} : vector<8x768xf32> to vector<8x512xf32>
    %50 = vector.extract_strided_slice %47 {offsets = [0, 113], sizes = [8, 512], strides = [1, 1]} : vector<8x768xf32> to vector<8x512xf32>
    %51 = vector.extract_strided_slice %47 {offsets = [0, 127], sizes = [8, 512], strides = [1, 1]} : vector<8x768xf32> to vector<8x512xf32>
    %52 = vector.extract_strided_slice %47 {offsets = [0, 128], sizes = [8, 512], strides = [1, 1]} : vector<8x768xf32> to vector<8x512xf32>
    %53 = vector.extract_strided_slice %47 {offsets = [0, 129], sizes = [8, 512], strides = [1, 1]} : vector<8x768xf32> to vector<8x512xf32>
    %54 = vector.extract_strided_slice %47 {offsets = [0, 143], sizes = [8, 512], strides = [1, 1]} : vector<8x768xf32> to vector<8x512xf32>
    %55 = vector.extract_strided_slice %47 {offsets = [0, 144], sizes = [8, 512], strides = [1, 1]} : vector<8x768xf32> to vector<8x512xf32>
    %56 = vector.extract_strided_slice %47 {offsets = [0, 145], sizes = [8, 512], strides = [1, 1]} : vector<8x768xf32> to vector<8x512xf32>
    %57 = tpu.concatenate %48, %49, %50, %51, %52, %53, %54, %55, %56 in 0 : vector<8x512xf32>, vector<8x512xf32>, vector<8x512xf32>, vector<8x512xf32>, vector<8x512xf32>, vector<8x512xf32>, vector<8x512xf32>, vector<8x512xf32>, vector<8x512xf32> -> vector<72x512xf32>
    %c0_21 = arith.constant 0 : index
    %c0_22 = arith.constant 0 : index
    %58 = vector.load %arg2[%c0_21, %c0_22] : memref<72x512xf32, #tpu.memory_space<vmem>>, vector<72x512xf32>
    %59 = arith.mulf %57, %58 : vector<72x512xf32>
    %c0_23 = arith.constant 0 : index
    %c0_24 = arith.constant 0 : index
    %60 = vector.load %arg5[%c0_23, %c0_24] : memref<8x72xf32, #tpu.memory_space<vmem>>, vector<8x72xf32>
    %cst_25 = arith.constant dense<0.000000e+00> : vector<8x512xf32>
    %61 = tpu.matmul %60, %59, %cst_25 {dimension_numbers = #tpu.dot_dimension_numbers<[1], [0], [0], [1], [0, 0, 1, 1], [], []>, precision = #tpu.contract_precision<fp32>} : vector<8x72xf32>, vector<72x512xf32>, vector<8x512xf32> -> vector<8x512xf32>
    %c0_26 = arith.constant 0 : index
    %c0_27 = arith.constant 0 : index
    %62 = vector.load %arg6[%c0_26, %c0_27] : memref<8x1xf32, #tpu.memory_space<vmem>>, vector<8x1xf32>
    %63 = vector.broadcast %62 : vector<8x1xf32> to vector<8x512xf32>
    %64 = arith.addf %61, %63 : vector<8x512xf32>
    %cst_28 = arith.constant 0.707106769 : f32
    %65 = vector.broadcast %cst_28 : f32 to vector<8x512xf32>
    %66 = arith.mulf %64, %65 : vector<8x512xf32>
    %67 = math.absf %66 : vector<8x512xf32>
    %cst_29 = arith.constant 0.327591091 : f32
    %68 = vector.broadcast %cst_29 : f32 to vector<8x512xf32>
    %69 = arith.mulf %68, %67 : vector<8x512xf32>
    %cst_30 = arith.constant 1.000000e+00 : f32
    %70 = vector.broadcast %cst_30 : f32 to vector<8x512xf32>
    %71 = arith.addf %70, %69 : vector<8x512xf32>
    %cst_31 = arith.constant 1.000000e+00 : f32
    %72 = vector.broadcast %cst_31 : f32 to vector<8x512xf32>
    %73 = arith.divf %72, %71 : vector<8x512xf32>
    %cst_32 = arith.constant 1.06140542 : f32
    %74 = vector.broadcast %cst_32 : f32 to vector<8x512xf32>
    %75 = arith.mulf %73, %74 : vector<8x512xf32>
    %cst_33 = arith.constant -1.45315206 : f32
    %76 = vector.broadcast %cst_33 : f32 to vector<8x512xf32>
    %77 = arith.addf %76, %75 : vector<8x512xf32>
    %78 = arith.mulf %73, %77 : vector<8x512xf32>
    %cst_34 = arith.constant 1.42141378 : f32
    %79 = vector.broadcast %cst_34 : f32 to vector<8x512xf32>
    %80 = arith.addf %79, %78 : vector<8x512xf32>
    %81 = arith.mulf %73, %80 : vector<8x512xf32>
    %cst_35 = arith.constant -0.284496725 : f32
    %82 = vector.broadcast %cst_35 : f32 to vector<8x512xf32>
    %83 = arith.addf %82, %81 : vector<8x512xf32>
    %84 = arith.mulf %73, %83 : vector<8x512xf32>
    %cst_36 = arith.constant 0.254829586 : f32
    %85 = vector.broadcast %cst_36 : f32 to vector<8x512xf32>
    %86 = arith.addf %85, %84 : vector<8x512xf32>
    %87 = arith.mulf %73, %86 : vector<8x512xf32>
    %cst_37 = arith.constant 0.000000e+00 : f32
    %88 = vector.broadcast %cst_37 : f32 to vector<8x512xf32>
    %89 = arith.subf %88, %67 : vector<8x512xf32>
    %90 = arith.mulf %89, %67 : vector<8x512xf32>
    %91 = math.exp %90 : vector<8x512xf32>
    %92 = arith.mulf %87, %91 : vector<8x512xf32>
    %cst_38 = arith.constant 1.000000e+00 : f32
    %93 = vector.broadcast %cst_38 : f32 to vector<8x512xf32>
    %94 = arith.subf %93, %92 : vector<8x512xf32>
    %cst_39 = arith.constant 0.000000e+00 : f32
    %95 = vector.broadcast %cst_39 : f32 to vector<8x512xf32>
    %96 = arith.cmpf oge, %66, %95 : vector<8x512xf32>
    %cst_40 = arith.constant 0.000000e+00 : f32
    %97 = vector.broadcast %cst_40 : f32 to vector<8x512xf32>
    %98 = arith.subf %97, %94 : vector<8x512xf32>
    %99 = arith.select %96, %94, %98 : vector<8x512xi1>, vector<8x512xf32>
    %cst_41 = arith.constant 5.000000e-01 : f32
    %100 = vector.broadcast %cst_41 : f32 to vector<8x512xf32>
    %101 = arith.mulf %100, %64 : vector<8x512xf32>
    %cst_42 = arith.constant 1.000000e+00 : f32
    %102 = vector.broadcast %cst_42 : f32 to vector<8x512xf32>
    %103 = arith.addf %102, %99 : vector<8x512xf32>
    %104 = arith.mulf %101, %103 : vector<8x512xf32>
    %cst_43 = arith.constant 0.000000e+00 : f32
    %105 = vector.broadcast %cst_43 : f32 to vector<8x128xf32>
    %106 = tpu.concatenate %105, %104, %105 in 1 : vector<8x128xf32>, vector<8x512xf32>, vector<8x128xf32> -> vector<8x768xf32>
    %107 = vector.extract_strided_slice %106 {offsets = [0, 111], sizes = [8, 512], strides = [1, 1]} : vector<8x768xf32> to vector<8x512xf32>
    %108 = vector.extract_strided_slice %106 {offsets = [0, 112], sizes = [8, 512], strides = [1, 1]} : vector<8x768xf32> to vector<8x512xf32>
    %109 = vector.extract_strided_slice %106 {offsets = [0, 113], sizes = [8, 512], strides = [1, 1]} : vector<8x768xf32> to vector<8x512xf32>
    %110 = vector.extract_strided_slice %106 {offsets = [0, 127], sizes = [8, 512], strides = [1, 1]} : vector<8x768xf32> to vector<8x512xf32>
    %111 = vector.extract_strided_slice %106 {offsets = [0, 128], sizes = [8, 512], strides = [1, 1]} : vector<8x768xf32> to vector<8x512xf32>
    %112 = vector.extract_strided_slice %106 {offsets = [0, 129], sizes = [8, 512], strides = [1, 1]} : vector<8x768xf32> to vector<8x512xf32>
    %113 = vector.extract_strided_slice %106 {offsets = [0, 143], sizes = [8, 512], strides = [1, 1]} : vector<8x768xf32> to vector<8x512xf32>
    %114 = vector.extract_strided_slice %106 {offsets = [0, 144], sizes = [8, 512], strides = [1, 1]} : vector<8x768xf32> to vector<8x512xf32>
    %115 = vector.extract_strided_slice %106 {offsets = [0, 145], sizes = [8, 512], strides = [1, 1]} : vector<8x768xf32> to vector<8x512xf32>
    %116 = tpu.concatenate %107, %108, %109, %110, %111, %112, %113, %114, %115 in 0 : vector<8x512xf32>, vector<8x512xf32>, vector<8x512xf32>, vector<8x512xf32>, vector<8x512xf32>, vector<8x512xf32>, vector<8x512xf32>, vector<8x512xf32>, vector<8x512xf32> -> vector<72x512xf32>
    %c0_44 = arith.constant 0 : index
    %c0_45 = arith.constant 0 : index
    %117 = vector.load %arg2[%c0_44, %c0_45] : memref<72x512xf32, #tpu.memory_space<vmem>>, vector<72x512xf32>
    %118 = arith.mulf %116, %117 : vector<72x512xf32>
    %c0_46 = arith.constant 0 : index
    %c0_47 = arith.constant 0 : index
    %119 = vector.load %arg7[%c0_46, %c0_47] : memref<8x72xf32, #tpu.memory_space<vmem>>, vector<8x72xf32>
    %cst_48 = arith.constant dense<0.000000e+00> : vector<8x512xf32>
    %120 = tpu.matmul %119, %118, %cst_48 {dimension_numbers = #tpu.dot_dimension_numbers<[1], [0], [0], [1], [0, 0, 1, 1], [], []>, precision = #tpu.contract_precision<fp32>} : vector<8x72xf32>, vector<72x512xf32>, vector<8x512xf32> -> vector<8x512xf32>
    %c0_49 = arith.constant 0 : index
    %c0_50 = arith.constant 0 : index
    %121 = vector.load %arg8[%c0_49, %c0_50] : memref<8x1xf32, #tpu.memory_space<vmem>>, vector<8x1xf32>
    %122 = vector.broadcast %121 : vector<8x1xf32> to vector<8x512xf32>
    %123 = arith.addf %120, %122 : vector<8x512xf32>
    %c0_51 = arith.constant 0 : index
    %c0_52 = arith.constant 0 : index
    %124 = vector.load %arg9[%c0_51, %c0_52] : memref<8x512xf32, #tpu.memory_space<vmem>>, vector<8x512xf32>
    tpu.vector_store %arg9[%c0_51, %c0_52], %123 {strides = array<i32>} : memref<8x512xf32, #tpu.memory_space<vmem>>, vector<8x512xf32>,
    return
  }
  func.func @transform_0(%arg0: i32) -> (i32, i32) {
    %c0_i32 = arith.constant 0 : i32
    %c0_i32_0 = arith.constant 0 : i32
    return %c0_i32, %arg0 : i32, i32
  }
  func.func @transform_1(%arg0: i32) -> (i32, i32) {
    %c0_i32 = arith.constant 0 : i32
    %c0_i32_0 = arith.constant 0 : i32
    %c0_i32_1 = arith.constant 0 : i32
    return %c0_i32, %c0_i32_0 : i32, i32
  }
  func.func @transform_2(%arg0: i32) -> (i32, i32) {
    %c0_i32 = arith.constant 0 : i32
    %c0_i32_0 = arith.constant 0 : i32
    %c0_i32_1 = arith.constant 0 : i32
    return %c0_i32, %c0_i32_0 : i32, i32
  }
  func.func @transform_3(%arg0: i32) -> (i32, i32) {
    %c0_i32 = arith.constant 0 : i32
    %c0_i32_0 = arith.constant 0 : i32
    %c0_i32_1 = arith.constant 0 : i32
    return %c0_i32, %c0_i32_0 : i32, i32
  }
  func.func @transform_4(%arg0: i32) -> (i32, i32) {
    %c0_i32 = arith.constant 0 : i32
    %c0_i32_0 = arith.constant 0 : i32
    %c0_i32_1 = arith.constant 0 : i32
    return %c0_i32, %c0_i32_0 : i32, i32
  }
  func.func @transform_5(%arg0: i32) -> (i32, i32) {
    %c0_i32 = arith.constant 0 : i32
    %c0_i32_0 = arith.constant 0 : i32
    %c0_i32_1 = arith.constant 0 : i32
    return %c0_i32, %c0_i32_0 : i32, i32
  }
  func.func @transform_6(%arg0: i32) -> (i32, i32) {
    %c0_i32 = arith.constant 0 : i32
    %c0_i32_0 = arith.constant 0 : i32
    %c0_i32_1 = arith.constant 0 : i32
    return %c0_i32, %c0_i32_0 : i32, i32
  }
  func.func @transform_7(%arg0: i32) -> (i32, i32) {
    %c0_i32 = arith.constant 0 : i32
    %c0_i32_0 = arith.constant 0 : i32
    %c0_i32_1 = arith.constant 0 : i32
    return %c0_i32, %c0_i32_0 : i32, i32
  }
  func.func @transform_8(%arg0: i32) -> (i32, i32) {
    %c0_i32 = arith.constant 0 : i32
    %c0_i32_0 = arith.constant 0 : i32
    return %c0_i32, %arg0 : i32, i32
  }
}

</mosaic_0001>

<llo_original>
// kernel: tpu_custom_call.1
$region0: #{tpu_custom_call.1}
  #allocation0 [shape = 'u32[]', space=smem, size = 0x4, offset = 0x4, fixed_abs, tag = 'smem constant byte address 0x4 - core index']
  #allocation1 [shape = 'u32[144,128]{1,0:T(1,128)}', space=vmem, size = 0x12000, scoped, tag = 'internal scratch']
  %s0 = inlined_call_operand.vmem [shape: f32[4,512], index: 0, kind: input, shape index: {}]
  %s1 = inlined_call_operand.hbm [shape: f32[72,512], index: 1, kind: input, shape index: {}]
  %s2 = inlined_call_operand.vmem [shape: f32[8,4], index: 2, kind: input, shape index: {}]
  %s3 = inlined_call_operand.vmem [shape: f32[8,1], index: 3, kind: input, shape index: {}]
  %s4 = inlined_call_operand.vmem [shape: f32[8,72], index: 4, kind: input, shape index: {}]
  %s5 = inlined_call_operand.vmem [shape: f32[8,1], index: 5, kind: input, shape index: {}]
  %s6 = inlined_call_operand.vmem [shape: f32[8,72], index: 6, kind: input, shape index: {}]
  %s7 = inlined_call_operand.vmem [shape: f32[8,1], index: 7, kind: input, shape index: {}]
  %s8 = inlined_call_operand.hbm [shape: f32[8,512], index: 8, kind: output, shape index: {}]
  %s9 = sld [smem:[#allocation0]]
  $region46: #{tpu_custom_call.1} parent=0
    _
  %s11 = ssub.s32 1, %s9
  %s12 = scalar_select 0, %s11, %s9
  $region1: #{tpu_custom_call.1} parent=0
    #allocation2 [shape = 'u8[147456]{0}', space=vmem, size = 0x24000, scoped, tag = 'input window, operand 1, single buffered']
    #allocation3 [shape = 's32[1]{0}', space=sflag, size = 0x4, scoped, tag = 'scoped memory for tpu_custom_call.1']
    #allocation4 [shape = 's32[1]{0}', space=sflag, size = 0x4, scoped, tag = 'scoped memory for tpu_custom_call.1']
    #allocation5 [shape = 'u8[16384]{0}', space=vmem, size = 0x4000, scoped, tag = 'output window, operand 0, single buffered']
    %13 = vsyncpa [#allocation3], 0
    %14 = vsyncpa [#allocation4], 0
    // Predicated region
    $region2: #{tpu_custom_call.1} parent=1 // pred_check
      _
    $region3: #{tpu_custom_call.1} parent=1 // pred_check_branch
      %16 = sbr.rel (0) target = $region5
    $region4: #{tpu_custom_call.1} parent=1 // pred_region
      _
    $region5: #{tpu_custom_call.1} parent=1 // pred_fallthru
      _
    // Predicated region
    $region6: #{tpu_custom_call.1} parent=1 // pred_check
      _
    $region7: #{tpu_custom_call.1} parent=1 // pred_check_branch
      %18 = sbr.rel (0) target = $region9
    $region8: #{tpu_custom_call.1} parent=1 // pred_region
      %s20 = ssub.s32 4608, 4608
      %21 = vsyncadd [#allocation3], %s20
      %s22 = sshll.u32 [#allocation2], 4
      %s23 = int_to_ptr.vmem [resolvable:$true] %s22
      %28 = dma.hbm_to_vmem [thread:$0]  %s1, 4608, %s23, [#allocation3], 512, 512, 32
    $region9: #{tpu_custom_call.1} parent=1 // pred_fallthru
      _
    // Predicated region
    $region10: #{tpu_custom_call.1} parent=1 // pred_check
      _
    $region11: #{tpu_custom_call.1} parent=1 // pred_check_branch
      %30 = sbr.rel (0) target = $region13
    $region12: #{tpu_custom_call.1} parent=1 // pred_region
      _
    $region13: #{tpu_custom_call.1} parent=1 // pred_fallthru
      _
    // Predicated region
    $region14: #{tpu_custom_call.1} parent=1 // pred_check
      _
    $region15: #{tpu_custom_call.1} parent=1 // pred_check_branch
      %32 = sbr.rel (0) target = $region17
    $region16: #{tpu_custom_call.1} parent=1 // pred_region
      _
    $region17: #{tpu_custom_call.1} parent=1 // pred_fallthru
      _
    // Predicated region
    $region18: #{tpu_custom_call.1} parent=1 // pred_check
      _
    $region19: #{tpu_custom_call.1} parent=1 // pred_check_branch
      %34 = sbr.rel (0) target = $region21
    $region20: #{tpu_custom_call.1} parent=1 // pred_region
      _
    $region21: #{tpu_custom_call.1} parent=1 // pred_fallthru
      _
    // Predicated region
    $region22: #{tpu_custom_call.1} parent=1 // pred_check
      _
    $region23: #{tpu_custom_call.1} parent=1 // pred_check_branch
      %36 = sbr.rel (0) target = $region25
    $region24: #{tpu_custom_call.1} parent=1 // pred_region
      _
    $region25: #{tpu_custom_call.1} parent=1 // pred_fallthru
      _
    // Predicated region
    $region26: #{tpu_custom_call.1} parent=1 // pred_check
      _
    $region27: #{tpu_custom_call.1} parent=1 // pred_check_branch
      %38 = sbr.rel (0) target = $region29
    $region28: #{tpu_custom_call.1} parent=1 // pred_region
      _
    $region29: #{tpu_custom_call.1} parent=1 // pred_fallthru
      _
    // Predicated region
    $region30: #{tpu_custom_call.1} parent=1 // pred_check
      _
    $region31: #{tpu_custom_call.1} parent=1 // pred_check_branch
      %40 = sbr.rel (0) target = $region33
    $region32: #{tpu_custom_call.1} parent=1 // pred_region
      _
    $region33: #{tpu_custom_call.1} parent=1 // pred_fallthru
      _
    // Predicated region
    $region34: #{tpu_custom_call.1} parent=1 // pred_check
      _
    $region35: #{tpu_custom_call.1} parent=1 // pred_check_branch
      %42 = sbr.rel (0) target = $region37
    $region36: #{tpu_custom_call.1} parent=1 // pred_region
      %43 = dma.done [#allocation3], 4608
    $region37: #{tpu_custom_call.1} parent=1 // pred_fallthru
      _
    %v44 = vld [vmem:[%s2] sm:$0xff]
    %v45 = vld [vmem:[%s0] sm:$0xff]
    %v46 = vld [vmem:[%s0 + $0x8] sm:$0xff]
    %v47 = vld [vmem:[%s3] sm:$0xff]
    %49 = vset.pattern.permute.xlu0 0
    %50 = vperm.xlu0 %49, %v47
    %v51 = vpop.permute.xlu0 %50
    %v55 = vcombine.high %v45, %v45
    %v56 = vcombine.high %v46, %v46
    %vm57 = vcmask 31744
    %v59 = vsel %vm57, %v44, 0
    %vm61 = vcmask 1043456
    %v62 = vsel %vm61, %v45, 0
    %v64 = vsel %vm61, %v55, 0
    %v66 = vsel %vm61, %v46, 0
    %v68 = vsel %vm61, %v56, 0
    %70 = vmatprep.subr.mxu0 0.0
    %71 = vmatpush1.msra.mxu0 0.0
    %72 = vmatprep.subr.mxu0 0.0
    %73 = vmatpush1.msra.mxu0 0.0
    %74 = vmatprep.subr.mxu0 0.0
    %75 = vmatpush1.msra.mxu0 0.0
    %76 = vmatprep.subr.mxu0 0.0
    %77 = vmatpush1.msra.mxu0 0.0
    %78 = vmatprep.subr.mxu0 0.0
    %79 = vmatpush1.msra.mxu0 0.0
    %80 = vmatprep.subr.mxu0 0.0
    %81 = vmatpush1.msra.mxu0 0.0
    %82 = vmatprep.subr.mxu0 0.0
    %83 = vmatpush1.msra.mxu0 0.0
    %84 = vmatprep.subr.mxu0 0.0
    %85 = vmatpush1.msra.mxu0 0.0
    %86 = vmatprep.subr.mxu0 0.0
    %87 = vmatpush1.msra.mxu0 0.0
    %88 = vmatprep.subr.mxu0 0.0
    %89 = vmatpush1.msra.mxu0 0.0
    %90 = vmatprep.subr.mxu0 0.0
    %91 = vmatpush1.msra.mxu0 0.0
    %92 = vmatprep.subr.mxu0 0.0
    %93 = vmatpush1.msra.mxu0 0.0
    %94 = vmatprep.subr.mxu0 0.0
    %95 = vmatpush1.msra.mxu0 0.0
    %96 = vmatprep.subr.mxu0 0.0
    %97 = vmatpush1.msra.mxu0 0.0
    %98 = vmatprep.subr.mxu0 0.0
    %99 = vmatpush1.msra.mxu0 0.0
    %v100 = vand.u32 %v64, 4294901760
    %101 = vmatprep.subr.mxu0 %v100
    %v102 = vand.u32 %v62, 4294901760
    %103 = vmatpush1.msra.mxu0 %v102
    %104 = vmatprep.subr.mxu0 0.0
    %105 = vmatpush2.msra.mxu0 0.0
    %106 = vmatprep.subr.mxu0 0.0
    %107 = vmatpush2.msra.mxu0 0.0
    %108 = vmatprep.subr.mxu0 0.0
    %109 = vmatpush2.msra.mxu0 0.0
    %110 = vmatprep.subr.mxu0 0.0
    %111 = vmatpush2.msra.mxu0 0.0
    %112 = vmatprep.subr.mxu0 0.0
    %113 = vmatpush2.msra.mxu0 0.0
    %114 = vmatprep.subr.mxu0 0.0
    %115 = vmatpush2.msra.mxu0 0.0
    %116 = vmatprep.subr.mxu0 0.0
    %117 = vmatpush2.msra.mxu0 0.0
    %118 = vmatprep.subr.mxu0 0.0
    %119 = vmatpush2.msra.mxu0 0.0
    %120 = vmatprep.subr.mxu0 0.0
    %121 = vmatpush2.msra.mxu0 0.0
    %122 = vmatprep.subr.mxu0 0.0
    %123 = vmatpush2.msra.mxu0 0.0
    %124 = vmatprep.subr.mxu0 0.0
    %125 = vmatpush2.msra.mxu0 0.0
    %126 = vmatprep.subr.mxu0 0.0
    %127 = vmatpush2.msra.mxu0 0.0
    %128 = vmatprep.subr.mxu0 0.0
    %129 = vmatpush2.msra.mxu0 0.0
    %130 = vmatprep.subr.mxu0 0.0
    %131 = vmatpush2.msra.mxu0 0.0
    %132 = vmatprep.subr.mxu0 0.0
    %133 = vmatpush2.msra.mxu0 0.0
    %134 = vmatprep.subr.mxu0 0.0
    %135 = vmatpush2.msra.mxu0 0.0
    %136 = vmatprep.mubr.f32.mxu0 0.0
    %v137 = vand.u32 %v59, 4294901760
    %v138 = vsub.f32 %v59, %v137
    %v139 = vand.u32 %v138, 4294901760
    %v140 = vsub.f32 %v138, %v139
    %v141 = vand.u32 %v140, 4294901760
    %142 = vmatmul.mubr.f32.gmra.mxu0 %v141
    %v143 = vpop.f32.mrf.mxu0
    %v144 = vadd.f32 %v51, %v143
    %v145 = vpop.f32.mrf.mxu0
    %v146 = vadd.f32 %v51, %v145
    %147 = vdwg.mxu0
    %148 = vmatprep.subr.mxu0 0.0
    %149 = vmatpush1.msra.mxu0 0.0
    %150 = vmatprep.subr.mxu0 0.0
    %151 = vmatpush1.msra.mxu0 0.0
    %152 = vmatprep.subr.mxu0 0.0
    %153 = vmatpush1.msra.mxu0 0.0
    %154 = vmatprep.subr.mxu0 0.0
    %155 = vmatpush1.msra.mxu0 0.0
    %156 = vmatprep.subr.mxu0 0.0
    %157 = vmatpush1.msra.mxu0 0.0
    %158 = vmatprep.subr.mxu0 0.0
    %159 = vmatpush1.msra.mxu0 0.0
    %160 = vmatprep.subr.mxu0 0.0
    %161 = vmatpush1.msra.mxu0 0.0
    %162 = vmatprep.subr.mxu0 0.0
    %163 = vmatpush1.msra.mxu0 0.0
    %164 = vmatprep.subr.mxu0 0.0
    %165 = vmatpush1.msra.mxu0 0.0
    %166 = vmatprep.subr.mxu0 0.0
    %167 = vmatpush1.msra.mxu0 0.0
    %168 = vmatprep.subr.mxu0 0.0
    %169 = vmatpush1.msra.mxu0 0.0
    %170 = vmatprep.subr.mxu0 0.0
    %171 = vmatpush1.msra.mxu0 0.0
    %172 = vmatprep.subr.mxu0 0.0
    %173 = vmatpush1.msra.mxu0 0.0
    %174 = vmatprep.subr.mxu0 0.0
    %175 = vmatpush1.msra.mxu0 0.0
    %176 = vmatprep.subr.mxu0 0.0
    %177 = vmatpush1.msra.mxu0 0.0
    %v178 = vand.u32 %v64, 4294901760
    %v179 = vsub.f32 %v64, %v178
    %v180 = vand.u32 %v179, 4294901760
    %v181 = vsub.f32 %v179, %v180
    %v182 = vand.u32 %v181, 4294901760
    %183 = vmatprep.subr.mxu0 %v182
    %v184 = vand.u32 %v62, 4294901760
    %v185 = vsub.f32 %v62, %v184
    %v186 = vand.u32 %v185, 4294901760
    %v187 = vsub.f32 %v185, %v186
    %v188 = vand.u32 %v187, 4294901760
    %189 = vmatpush1.msra.mxu0 %v188
    %190 = vmatprep.subr.mxu0 0.0
    %191 = vmatpush2.msra.mxu0 0.0
    %192 = vmatprep.subr.mxu0 0.0
    %193 = vmatpush2.msra.mxu0 0.0
    %194 = vmatprep.subr.mxu0 0.0
    %195 = vmatpush2.msra.mxu0 0.0
    %196 = vmatprep.subr.mxu0 0.0
    %197 = vmatpush2.msra.mxu0 0.0
    %198 = vmatprep.subr.mxu0 0.0
    %199 = vmatpush2.msra.mxu0 0.0
    %200 = vmatprep.subr.mxu0 0.0
    %201 = vmatpush2.msra.mxu0 0.0
    %202 = vmatprep.subr.mxu0 0.0
    %203 = vmatpush2.msra.mxu0 0.0
    %204 = vmatprep.subr.mxu0 0.0
    %205 = vmatpush2.msra.mxu0 0.0
    %206 = vmatprep.subr.mxu0 0.0
    %207 = vmatpush2.msra.mxu0 0.0
    %208 = vmatprep.subr.mxu0 0.0
    %209 = vmatpush2.msra.mxu0 0.0
    %210 = vmatprep.subr.mxu0 0.0
    %211 = vmatpush2.msra.mxu0 0.0
    %212 = vmatprep.subr.mxu0 0.0
    %213 = vmatpush2.msra.mxu0 0.0
    %214 = vmatprep.subr.mxu0 0.0
    %215 = vmatpush2.msra.mxu0 0.0
    %216 = vmatprep.subr.mxu0 0.0
    %217 = vmatpush2.msra.mxu0 0.0
    %218 = vmatprep.subr.mxu0 0.0
    %219 = vmatpush2.msra.mxu0 0.0
    %220 = vmatprep.subr.mxu0 0.0
    %221 = vmatpush2.msra.mxu0 0.0
    %222 = vmatprep.mubr.f32.mxu0 0.0
    %v223 = vand.u32 %v59, 4294901760
    %224 = vmatmul.mubr.f32.gmra.mxu0 %v223
    %v225 = vpop.f32.mrf.mxu0
    %v226 = vadd.f32 %v144, %v225
    %v227 = vpop.f32.mrf.mxu0
    %v228 = vadd.f32 %v146, %v227
    %229 = vdwg.mxu0
    %230 = vmatprep.subr.mxu0 0.0
    %231 = vmatpush1.msra.mxu0 0.0
    %232 = vmatprep.subr.mxu0 0.0
    %233 = vmatpush1.msra.mxu0 0.0
    %234 = vmatprep.subr.mxu0 0.0
    %235 = vmatpush1.msra.mxu0 0.0
    %236 = vmatprep.subr.mxu0 0.0
    %237 = vmatpush1.msra.mxu0 0.0
    %238 = vmatprep.subr.mxu0 0.0
    %239 = vmatpush1.msra.mxu0 0.0
    %240 = vmatprep.subr.mxu0 0.0
    %241 = vmatpush1.msra.mxu0 0.0
    %242 = vmatprep.subr.mxu0 0.0
    %243 = vmatpush1.msra.mxu0 0.0
    %244 = vmatprep.subr.mxu0 0.0
    %245 = vmatpush1.msra.mxu0 0.0
    %246 = vmatprep.subr.mxu0 0.0
    %247 = vmatpush1.msra.mxu0 0.0
    %248 = vmatprep.subr.mxu0 0.0
    %249 = vmatpush1.msra.mxu0 0.0
    %250 = vmatprep.subr.mxu0 0.0
    %251 = vmatpush1.msra.mxu0 0.0
    %252 = vmatprep.subr.mxu0 0.0
    %253 = vmatpush1.msra.mxu0 0.0
    %254 = vmatprep.subr.mxu0 0.0
    %255 = vmatpush1.msra.mxu0 0.0
    %256 = vmatprep.subr.mxu0 0.0
    %257 = vmatpush1.msra.mxu0 0.0
    %258 = vmatprep.subr.mxu0 0.0
    %259 = vmatpush1.msra.mxu0 0.0
    %v260 = vand.u32 %v64, 4294901760
    %v261 = vsub.f32 %v64, %v260
    %262 = vmatprep.subr.mxu0 %v261
    %v263 = vand.u32 %v62, 4294901760
    %v264 = vsub.f32 %v62, %v263
    %265 = vmatpush1.msra.mxu0 %v264
    %266 = vmatprep.subr.mxu0 0.0
    %267 = vmatpush2.msra.mxu0 0.0
    %268 = vmatprep.subr.mxu0 0.0
    %269 = vmatpush2.msra.mxu0 0.0
    %270 = vmatprep.subr.mxu0 0.0
    %271 = vmatpush2.msra.mxu0 0.0
    %272 = vmatprep.subr.mxu0 0.0
    %273 = vmatpush2.msra.mxu0 0.0
    %274 = vmatprep.subr.mxu0 0.0
    %275 = vmatpush2.msra.mxu0 0.0
    %276 = vmatprep.subr.mxu0 0.0
    %277 = vmatpush2.msra.mxu0 0.0
    %278 = vmatprep.subr.mxu0 0.0
    %279 = vmatpush2.msra.mxu0 0.0
    %280 = vmatprep.subr.mxu0 0.0
    %281 = vmatpush2.msra.mxu0 0.0
    %282 = vmatprep.subr.mxu0 0.0
    %283 = vmatpush2.msra.mxu0 0.0
    %284 = vmatprep.subr.mxu0 0.0
    %285 = vmatpush2.msra.mxu0 0.0
    %286 = vmatprep.subr.mxu0 0.0
    %287 = vmatpush2.msra.mxu0 0.0
    %288 = vmatprep.subr.mxu0 0.0
    %289 = vmatpush2.msra.mxu0 0.0
    %290 = vmatprep.subr.mxu0 0.0
    %291 = vmatpush2.msra.mxu0 0.0
    %292 = vmatprep.subr.mxu0 0.0
    %293 = vmatpush2.msra.mxu0 0.0
    %294 = vmatprep.subr.mxu0 0.0
    %295 = vmatpush2.msra.mxu0 0.0
    %296 = vmatprep.subr.mxu0 0.0
    %297 = vmatpush2.msra.mxu0 0.0
    %298 = vmatprep.mubr.f32.mxu0 0.0
    %v299 = vand.u32 %v59, 4294901760
    %v300 = vsub.f32 %v59, %v299
    %301 = vmatmul.mubr.f32.gmra.mxu0 %v300
    %v302 = vpop.f32.mrf.mxu0
    %v303 = vadd.f32 %v226, %v302
    %v304 = vpop.f32.mrf.mxu0
    %v305 = vadd.f32 %v228, %v304
    %306 = vdwg.mxu0
    %307 = vmatprep.subr.mxu0 0.0
    %308 = vmatpush1.msra.mxu0 0.0
    %309 = vmatprep.subr.mxu0 0.0
    %310 = vmatpush1.msra.mxu0 0.0
    %311 = vmatprep.subr.mxu0 0.0
    %312 = vmatpush1.msra.mxu0 0.0
    %313 = vmatprep.subr.mxu0 0.0
    %314 = vmatpush1.msra.mxu0 0.0
    %315 = vmatprep.subr.mxu0 0.0
    %316 = vmatpush1.msra.mxu0 0.0
    %317 = vmatprep.subr.mxu0 0.0
    %318 = vmatpush1.msra.mxu0 0.0
    %319 = vmatprep.subr.mxu0 0.0
    %320 = vmatpush1.msra.mxu0 0.0
    %321 = vmatprep.subr.mxu0 0.0
    %322 = vmatpush1.msra.mxu0 0.0
    %323 = vmatprep.subr.mxu0 0.0
    %324 = vmatpush1.msra.mxu0 0.0
    %325 = vmatprep.subr.mxu0 0.0
    %326 = vmatpush1.msra.mxu0 0.0
    %327 = vmatprep.subr.mxu0 0.0
    %328 = vmatpush1.msra.mxu0 0.0
    %329 = vmatprep.subr.mxu0 0.0
    %330 = vmatpush1.msra.mxu0 0.0
    %331 = vmatprep.subr.mxu0 0.0
    %332 = vmatpush1.msra.mxu0 0.0
    %333 = vmatprep.subr.mxu0 0.0
    %334 = vmatpush1.msra.mxu0 0.0
    %335 = vmatprep.subr.mxu0 0.0
    %336 = vmatpush1.msra.mxu0 0.0
    %v337 = vand.u32 %v64, 4294901760
    %338 = vmatprep.subr.mxu0 %v337
    %v339 = vand.u32 %v62, 4294901760
    %340 = vmatpush1.msra.mxu0 %v339
    %341 = vmatprep.subr.mxu0 0.0
    %342 = vmatpush2.msra.mxu0 0.0
    %343 = vmatprep.subr.mxu0 0.0
    %344 = vmatpush2.msra.mxu0 0.0
    %345 = vmatprep.subr.mxu0 0.0
    %346 = vmatpush2.msra.mxu0 0.0
    %347 = vmatprep.subr.mxu0 0.0
    %348 = vmatpush2.msra.mxu0 0.0
    %349 = vmatprep.subr.mxu0 0.0
    %350 = vmatpush2.msra.mxu0 0.0
    %351 = vmatprep.subr.mxu0 0.0
    %352 = vmatpush2.msra.mxu0 0.0
    %353 = vmatprep.subr.mxu0 0.0
    %354 = vmatpush2.msra.mxu0 0.0
    %355 = vmatprep.subr.mxu0 0.0
    %356 = vmatpush2.msra.mxu0 0.0
    %357 = vmatprep.subr.mxu0 0.0
    %358 = vmatpush2.msra.mxu0 0.0
    %359 = vmatprep.subr.mxu0 0.0
    %360 = vmatpush2.msra.mxu0 0.0
    %361 = vmatprep.subr.mxu0 0.0
    %362 = vmatpush2.msra.mxu0 0.0
    %363 = vmatprep.subr.mxu0 0.0
    %364 = vmatpush2.msra.mxu0 0.0
    %365 = vmatprep.subr.mxu0 0.0
    %366 = vmatpush2.msra.mxu0 0.0
    %367 = vmatprep.subr.mxu0 0.0
    %368 = vmatpush2.msra.mxu0 0.0
    %369 = vmatprep.subr.mxu0 0.0
    %370 = vmatpush2.msra.mxu0 0.0
    %371 = vmatprep.subr.mxu0 0.0
    %372 = vmatpush2.msra.mxu0 0.0
    %373 = vmatprep.mubr.f32.mxu0 0.0
    %v374 = vand.u32 %v59, 4294901760
    %v375 = vsub.f32 %v59, %v374
    %v376 = vand.u32 %v375, 4294901760
    %377 = vmatmul.mubr.f32.gmra.mxu0 %v376
    %v378 = vpop.f32.mrf.mxu0
    %v379 = vadd.f32 %v303, %v378
    %v380 = vpop.f32.mrf.mxu0
    %v381 = vadd.f32 %v305, %v380
    %382 = vdwg.mxu0
    %383 = vmatprep.subr.mxu0 0.0
    %384 = vmatpush1.msra.mxu0 0.0
    %385 = vmatprep.subr.mxu0 0.0
    %386 = vmatpush1.msra.mxu0 0.0
    %387 = vmatprep.subr.mxu0 0.0
    %388 = vmatpush1.msra.mxu0 0.0
    %389 = vmatprep.subr.mxu0 0.0
    %390 = vmatpush1.msra.mxu0 0.0
    %391 = vmatprep.subr.mxu0 0.0
    %392 = vmatpush1.msra.mxu0 0.0
    %393 = vmatprep.subr.mxu0 0.0
    %394 = vmatpush1.msra.mxu0 0.0
    %395 = vmatprep.subr.mxu0 0.0
    %396 = vmatpush1.msra.mxu0 0.0
    %397 = vmatprep.subr.mxu0 0.0
    %398 = vmatpush1.msra.mxu0 0.0
    %399 = vmatprep.subr.mxu0 0.0
    %400 = vmatpush1.msra.mxu0 0.0
    %401 = vmatprep.subr.mxu0 0.0
    %402 = vmatpush1.msra.mxu0 0.0
    %403 = vmatprep.subr.mxu0 0.0
    %404 = vmatpush1.msra.mxu0 0.0
    %405 = vmatprep.subr.mxu0 0.0
    %406 = vmatpush1.msra.mxu0 0.0
    %407 = vmatprep.subr.mxu0 0.0
    %408 = vmatpush1.msra.mxu0 0.0
    %409 = vmatprep.subr.mxu0 0.0
    %410 = vmatpush1.msra.mxu0 0.0
    %411 = vmatprep.subr.mxu0 0.0
    %412 = vmatpush1.msra.mxu0 0.0
    %v413 = vand.u32 %v64, 4294901760
    %v414 = vsub.f32 %v64, %v413
    %v415 = vand.u32 %v414, 4294901760
    %416 = vmatprep.subr.mxu0 %v415
    %v417 = vand.u32 %v62, 4294901760
    %v418 = vsub.f32 %v62, %v417
    %v419 = vand.u32 %v418, 4294901760
    %420 = vmatpush1.msra.mxu0 %v419
    %421 = vmatprep.subr.mxu0 0.0
    %422 = vmatpush2.msra.mxu0 0.0
    %423 = vmatprep.subr.mxu0 0.0
    %424 = vmatpush2.msra.mxu0 0.0
    %425 = vmatprep.subr.mxu0 0.0
    %426 = vmatpush2.msra.mxu0 0.0
    %427 = vmatprep.subr.mxu0 0.0
    %428 = vmatpush2.msra.mxu0 0.0
    %429 = vmatprep.subr.mxu0 0.0
    %430 = vmatpush2.msra.mxu0 0.0
    %431 = vmatprep.subr.mxu0 0.0
    %432 = vmatpush2.msra.mxu0 0.0
    %433 = vmatprep.subr.mxu0 0.0
    %434 = vmatpush2.msra.mxu0 0.0
    %435 = vmatprep.subr.mxu0 0.0
    %436 = vmatpush2.msra.mxu0 0.0
    %437 = vmatprep.subr.mxu0 0.0
    %438 = vmatpush2.msra.mxu0 0.0
    %439 = vmatprep.subr.mxu0 0.0
    %440 = vmatpush2.msra.mxu0 0.0
    %441 = vmatprep.subr.mxu0 0.0
    %442 = vmatpush2.msra.mxu0 0.0
    %443 = vmatprep.subr.mxu0 0.0
    %444 = vmatpush2.msra.mxu0 0.0
    %445 = vmatprep.subr.mxu0 0.0
    %446 = vmatpush2.msra.mxu0 0.0
    %447 = vmatprep.subr.mxu0 0.0
    %448 = vmatpush2.msra.mxu0 0.0
    %449 = vmatprep.subr.mxu0 0.0
    %450 = vmatpush2.msra.mxu0 0.0
    %451 = vmatprep.subr.mxu0 0.0
    %452 = vmatpush2.msra.mxu0 0.0
    %453 = vmatprep.mubr.f32.mxu0 0.0
    %v454 = vand.u32 %v59, 4294901760
    %455 = vmatmul.mubr.f32.gmra.mxu0 %v454
    %v456 = vpop.f32.mrf.mxu0
    %v457 = vadd.f32 %v379, %v456
    %v458 = vpop.f32.mrf.mxu0
    %v459 = vadd.f32 %v381, %v458
    %460 = vdwg.mxu0
    %461 = vmatprep.subr.mxu0 0.0
    %462 = vmatpush1.msra.mxu0 0.0
    %463 = vmatprep.subr.mxu0 0.0
    %464 = vmatpush1.msra.mxu0 0.0
    %465 = vmatprep.subr.mxu0 0.0
    %466 = vmatpush1.msra.mxu0 0.0
    %467 = vmatprep.subr.mxu0 0.0
    %468 = vmatpush1.msra.mxu0 0.0
    %469 = vmatprep.subr.mxu0 0.0
    %470 = vmatpush1.msra.mxu0 0.0
    %471 = vmatprep.subr.mxu0 0.0
    %472 = vmatpush1.msra.mxu0 0.0
    %473 = vmatprep.subr.mxu0 0.0
    %474 = vmatpush1.msra.mxu0 0.0
    %475 = vmatprep.subr.mxu0 0.0
    %476 = vmatpush1.msra.mxu0 0.0
    %477 = vmatprep.subr.mxu0 0.0
    %478 = vmatpush1.msra.mxu0 0.0
    %479 = vmatprep.subr.mxu0 0.0
    %480 = vmatpush1.msra.mxu0 0.0
    %481 = vmatprep.subr.mxu0 0.0
    %482 = vmatpush1.msra.mxu0 0.0
    %483 = vmatprep.subr.mxu0 0.0
    %484 = vmatpush1.msra.mxu0 0.0
    %485 = vmatprep.subr.mxu0 0.0
    %486 = vmatpush1.msra.mxu0 0.0
    %487 = vmatprep.subr.mxu0 0.0
    %488 = vmatpush1.msra.mxu0 0.0
    %489 = vmatprep.subr.mxu0 0.0
    %490 = vmatpush1.msra.mxu0 0.0
    %v491 = vand.u32 %v64, 4294901760
    %492 = vmatprep.subr.mxu0 %v491
    %v493 = vand.u32 %v62, 4294901760
    %494 = vmatpush1.msra.mxu0 %v493
    %495 = vmatprep.subr.mxu0 0.0
    %496 = vmatpush2.msra.mxu0 0.0
    %497 = vmatprep.subr.mxu0 0.0
    %498 = vmatpush2.msra.mxu0 0.0
    %499 = vmatprep.subr.mxu0 0.0
    %500 = vmatpush2.msra.mxu0 0.0
    %501 = vmatprep.subr.mxu0 0.0
    %502 = vmatpush2.msra.mxu0 0.0
    %503 = vmatprep.subr.mxu0 0.0
    %504 = vmatpush2.msra.mxu0 0.0
    %505 = vmatprep.subr.mxu0 0.0
    %506 = vmatpush2.msra.mxu0 0.0
    %507 = vmatprep.subr.mxu0 0.0
    %508 = vmatpush2.msra.mxu0 0.0
    %509 = vmatprep.subr.mxu0 0.0
    %510 = vmatpush2.msra.mxu0 0.0
    %511 = vmatprep.subr.mxu0 0.0
    %512 = vmatpush2.msra.mxu0 0.0
    %513 = vmatprep.subr.mxu0 0.0
    %514 = vmatpush2.msra.mxu0 0.0
    %515 = vmatprep.subr.mxu0 0.0
    %516 = vmatpush2.msra.mxu0 0.0
    %517 = vmatprep.subr.mxu0 0.0
    %518 = vmatpush2.msra.mxu0 0.0
    %519 = vmatprep.subr.mxu0 0.0
    %520 = vmatpush2.msra.mxu0 0.0
    %521 = vmatprep.subr.mxu0 0.0
    %522 = vmatpush2.msra.mxu0 0.0
    %523 = vmatprep.subr.mxu0 0.0
    %524 = vmatpush2.msra.mxu0 0.0
    %525 = vmatprep.subr.mxu0 0.0
    %526 = vmatpush2.msra.mxu0 0.0
    %527 = vmatprep.mubr.f32.mxu0 0.0
    %v528 = vand.u32 %v59, 4294901760
    %529 = vmatmul.mubr.f32.gmra.mxu0 %v528
    %v530 = vpop.f32.mrf.mxu0
    %v531 = vadd.f32 %v457, %v530
    %v532 = vpop.f32.mrf.mxu0
    %v533 = vadd.f32 %v459, %v532
    %534 = vdwg.mxu0
    %535 = vmatprep.subr.mxu0 0.0
    %536 = vmatpush1.msra.mxu0 0.0
    %537 = vmatprep.subr.mxu0 0.0
    %538 = vmatpush1.msra.mxu0 0.0
    %539 = vmatprep.subr.mxu0 0.0
    %540 = vmatpush1.msra.mxu0 0.0
    %541 = vmatprep.subr.mxu0 0.0
    %542 = vmatpush1.msra.mxu0 0.0
    %543 = vmatprep.subr.mxu0 0.0
    %544 = vmatpush1.msra.mxu0 0.0
    %545 = vmatprep.subr.mxu0 0.0
    %546 = vmatpush1.msra.mxu0 0.0
    %547 = vmatprep.subr.mxu0 0.0
    %548 = vmatpush1.msra.mxu0 0.0
    %549 = vmatprep.subr.mxu0 0.0
    %550 = vmatpush1.msra.mxu0 0.0
    %551 = vmatprep.subr.mxu0 0.0
    %552 = vmatpush1.msra.mxu0 0.0
    %553 = vmatprep.subr.mxu0 0.0
    %554 = vmatpush1.msra.mxu0 0.0
    %555 = vmatprep.subr.mxu0 0.0
    %556 = vmatpush1.msra.mxu0 0.0
    %557 = vmatprep.subr.mxu0 0.0
    %558 = vmatpush1.msra.mxu0 0.0
    %559 = vmatprep.subr.mxu0 0.0
    %560 = vmatpush1.msra.mxu0 0.0
    %561 = vmatprep.subr.mxu0 0.0
    %562 = vmatpush1.msra.mxu0 0.0
    %563 = vmatprep.subr.mxu0 0.0
    %564 = vmatpush1.msra.mxu0 0.0
    %v565 = vand.u32 %v68, 4294901760
    %566 = vmatprep.subr.mxu0 %v565
    %v567 = vand.u32 %v66, 4294901760
    %568 = vmatpush1.msra.mxu0 %v567
    %569 = vmatprep.subr.mxu0 0.0
    %570 = vmatpush2.msra.mxu0 0.0
    %571 = vmatprep.subr.mxu0 0.0
    %572 = vmatpush2.msra.mxu0 0.0
    %573 = vmatprep.subr.mxu0 0.0
    %574 = vmatpush2.msra.mxu0 0.0
    %575 = vmatprep.subr.mxu0 0.0
    %576 = vmatpush2.msra.mxu0 0.0
    %577 = vmatprep.subr.mxu0 0.0
    %578 = vmatpush2.msra.mxu0 0.0
    %579 = vmatprep.subr.mxu0 0.0
    %580 = vmatpush2.msra.mxu0 0.0
    %581 = vmatprep.subr.mxu0 0.0
    %582 = vmatpush2.msra.mxu0 0.0
    %583 = vmatprep.subr.mxu0 0.0
    %584 = vmatpush2.msra.mxu0 0.0
    %585 = vmatprep.subr.mxu0 0.0
    %586 = vmatpush2.msra.mxu0 0.0
    %587 = vmatprep.subr.mxu0 0.0
    %588 = vmatpush2.msra.mxu0 0.0
    %589 = vmatprep.subr.mxu0 0.0
    %590 = vmatpush2.msra.mxu0 0.0
    %591 = vmatprep.subr.mxu0 0.0
    %592 = vmatpush2.msra.mxu0 0.0
    %593 = vmatprep.subr.mxu0 0.0
    %594 = vmatpush2.msra.mxu0 0.0
    %595 = vmatprep.subr.mxu0 0.0
    %596 = vmatpush2.msra.mxu0 0.0
    %597 = vmatprep.subr.mxu0 0.0
    %598 = vmatpush2.msra.mxu0 0.0
    %599 = vmatprep.subr.mxu0 0.0
    %600 = vmatpush2.msra.mxu0 0.0
    %601 = vmatprep.mubr.f32.mxu0 0.0
    %v602 = vand.u32 %v59, 4294901760
    %v603 = vsub.f32 %v59, %v602
    %v604 = vand.u32 %v603, 4294901760
    %v605 = vsub.f32 %v603, %v604
    %v606 = vand.u32 %v605, 4294901760
    %607 = vmatmul.mubr.f32.gmra.mxu0 %v606
    %v608 = vpop.f32.mrf.mxu0
    %v609 = vadd.f32 %v51, %v608
    %v610 = vpop.f32.mrf.mxu0
    %v611 = vadd.f32 %v51, %v610
    %612 = vdwg.mxu0
    %613 = vmatprep.subr.mxu0 0.0
    %614 = vmatpush1.msra.mxu0 0.0
    %615 = vmatprep.subr.mxu0 0.0
    %616 = vmatpush1.msra.mxu0 0.0
    %617 = vmatprep.subr.mxu0 0.0
    %618 = vmatpush1.msra.mxu0 0.0
    %619 = vmatprep.subr.mxu0 0.0
    %620 = vmatpush1.msra.mxu0 0.0
    %621 = vmatprep.subr.mxu0 0.0
    %622 = vmatpush1.msra.mxu0 0.0
    %623 = vmatprep.subr.mxu0 0.0
    %624 = vmatpush1.msra.mxu0 0.0
    %625 = vmatprep.subr.mxu0 0.0
    %626 = vmatpush1.msra.mxu0 0.0
    %627 = vmatprep.subr.mxu0 0.0
    %628 = vmatpush1.msra.mxu0 0.0
    %629 = vmatprep.subr.mxu0 0.0
    %630 = vmatpush1.msra.mxu0 0.0
    %631 = vmatprep.subr.mxu0 0.0
    %632 = vmatpush1.msra.mxu0 0.0
    %633 = vmatprep.subr.mxu0 0.0
    %634 = vmatpush1.msra.mxu0 0.0
    %635 = vmatprep.subr.mxu0 0.0
    %636 = vmatpush1.msra.mxu0 0.0
    %637 = vmatprep.subr.mxu0 0.0
    %638 = vmatpush1.msra.mxu0 0.0
    %639 = vmatprep.subr.mxu0 0.0
    %640 = vmatpush1.msra.mxu0 0.0
    %641 = vmatprep.subr.mxu0 0.0
    %642 = vmatpush1.msra.mxu0 0.0
    %v643 = vand.u32 %v68, 4294901760
    %v644 = vsub.f32 %v68, %v643
    %v645 = vand.u32 %v644, 4294901760
    %v646 = vsub.f32 %v644, %v645
    %v647 = vand.u32 %v646, 4294901760
    %648 = vmatprep.subr.mxu0 %v647
    %v649 = vand.u32 %v66, 4294901760
    %v650 = vsub.f32 %v66, %v649
    %v651 = vand.u32 %v650, 4294901760
    %v652 = vsub.f32 %v650, %v651
    %v653 = vand.u32 %v652, 4294901760
    %654 = vmatpush1.msra.mxu0 %v653
    %655 = vmatprep.subr.mxu0 0.0
    %656 = vmatpush2.msra.mxu0 0.0
    %657 = vmatprep.subr.mxu0 0.0
    %658 = vmatpush2.msra.mxu0 0.0
    %659 = vmatprep.subr.mxu0 0.0
    %660 = vmatpush2.msra.mxu0 0.0
    %661 = vmatprep.subr.mxu0 0.0
    %662 = vmatpush2.msra.mxu0 0.0
    %663 = vmatprep.subr.mxu0 0.0
    %664 = vmatpush2.msra.mxu0 0.0
    %665 = vmatprep.subr.mxu0 0.0
    %666 = vmatpush2.msra.mxu0 0.0
    %667 = vmatprep.subr.mxu0 0.0
    %668 = vmatpush2.msra.mxu0 0.0
    %669 = vmatprep.subr.mxu0 0.0
    %670 = vmatpush2.msra.mxu0 0.0
    %671 = vmatprep.subr.mxu0 0.0
    %672 = vmatpush2.msra.mxu0 0.0
    %673 = vmatprep.subr.mxu0 0.0
    %674 = vmatpush2.msra.mxu0 0.0
    %675 = vmatprep.subr.mxu0 0.0
    %676 = vmatpush2.msra.mxu0 0.0
    %677 = vmatprep.subr.mxu0 0.0
    %678 = vmatpush2.msra.mxu0 0.0
    %679 = vmatprep.subr.mxu0 0.0
    %680 = vmatpush2.msra.mxu0 0.0
    %681 = vmatprep.subr.mxu0 0.0
    %682 = vmatpush2.msra.mxu0 0.0
    %683 = vmatprep.subr.mxu0 0.0
    %684 = vmatpush2.msra.mxu0 0.0
    %685 = vmatprep.subr.mxu0 0.0
    %686 = vmatpush2.msra.mxu0 0.0
    %687 = vmatprep.mubr.f32.mxu0 0.0
    %v688 = vand.u32 %v59, 4294901760
    %689 = vmatmul.mubr.f32.gmra.mxu0 %v688
    %v690 = vpop.f32.mrf.mxu0
    %v691 = vadd.f32 %v609, %v690
    %v692 = vpop.f32.mrf.mxu0
    %v693 = vadd.f32 %v611, %v692
    %694 = vdwg.mxu0
    %695 = vmatprep.subr.mxu0 0.0
    %696 = vmatpush1.msra.mxu0 0.0
    %697 = vmatprep.subr.mxu0 0.0
    %698 = vmatpush1.msra.mxu0 0.0
    %699 = vmatprep.subr.mxu0 0.0
    %700 = vmatpush1.msra.mxu0 0.0
    %701 = vmatprep.subr.mxu0 0.0
    %702 = vmatpush1.msra.mxu0 0.0
    %703 = vmatprep.subr.mxu0 0.0
    %704 = vmatpush1.msra.mxu0 0.0
    %705 = vmatprep.subr.mxu0 0.0
    %706 = vmatpush1.msra.mxu0 0.0
    %707 = vmatprep.subr.mxu0 0.0
    %708 = vmatpush1.msra.mxu0 0.0
    %709 = vmatprep.subr.mxu0 0.0
    %710 = vmatpush1.msra.mxu0 0.0
    %711 = vmatprep.subr.mxu0 0.0
    %712 = vmatpush1.msra.mxu0 0.0
    %713 = vmatprep.subr.mxu0 0.0
    %714 = vmatpush1.msra.mxu0 0.0
    %715 = vmatprep.subr.mxu0 0.0
    %716 = vmatpush1.msra.mxu0 0.0
    %717 = vmatprep.subr.mxu0 0.0
    %718 = vmatpush1.msra.mxu0 0.0
    %719 = vmatprep.subr.mxu0 0.0
    %720 = vmatpush1.msra.mxu0 0.0
    %721 = vmatprep.subr.mxu0 0.0
    %722 = vmatpush1.msra.mxu0 0.0
    %723 = vmatprep.subr.mxu0 0.0
    %724 = vmatpush1.msra.mxu0 0.0
    %v725 = vand.u32 %v68, 4294901760
    %v726 = vsub.f32 %v68, %v725
    %727 = vmatprep.subr.mxu0 %v726
    %v728 = vand.u32 %v66, 4294901760
    %v729 = vsub.f32 %v66, %v728
    %730 = vmatpush1.msra.mxu0 %v729
    %731 = vmatprep.subr.mxu0 0.0
    %732 = vmatpush2.msra.mxu0 0.0
    %733 = vmatprep.subr.mxu0 0.0
    %734 = vmatpush2.msra.mxu0 0.0
    %735 = vmatprep.subr.mxu0 0.0
    %736 = vmatpush2.msra.mxu0 0.0
    %737 = vmatprep.subr.mxu0 0.0
    %738 = vmatpush2.msra.mxu0 0.0
    %739 = vmatprep.subr.mxu0 0.0
    %740 = vmatpush2.msra.mxu0 0.0
    %741 = vmatprep.subr.mxu0 0.0
    %742 = vmatpush2.msra.mxu0 0.0
    %743 = vmatprep.subr.mxu0 0.0
    %744 = vmatpush2.msra.mxu0 0.0
    %745 = vmatprep.subr.mxu0 0.0
    %746 = vmatpush2.msra.mxu0 0.0
    %747 = vmatprep.subr.mxu0 0.0
    %748 = vmatpush2.msra.mxu0 0.0
    %749 = vmatprep.subr.mxu0 0.0
    %750 = vmatpush2.msra.mxu0 0.0
    %751 = vmatprep.subr.mxu0 0.0
    %752 = vmatpush2.msra.mxu0 0.0
    %753 = vmatprep.subr.mxu0 0.0
    %754 = vmatpush2.msra.mxu0 0.0
    %755 = vmatprep.subr.mxu0 0.0
    %756 = vmatpush2.msra.mxu0 0.0
    %757 = vmatprep.subr.mxu0 0.0
    %758 = vmatpush2.msra.mxu0 0.0
    %759 = vmatprep.subr.mxu0 0.0
    %760 = vmatpush2.msra.mxu0 0.0
    %761 = vmatprep.subr.mxu0 0.0
    %762 = vmatpush2.msra.mxu0 0.0
    %763 = vmatprep.mubr.f32.mxu0 0.0
    %v764 = vand.u32 %v59, 4294901760
    %v765 = vsub.f32 %v59, %v764
    %766 = vmatmul.mubr.f32.gmra.mxu0 %v765
    %v767 = vpop.f32.mrf.mxu0
    %v768 = vadd.f32 %v691, %v767
    %v769 = vpop.f32.mrf.mxu0
    %v770 = vadd.f32 %v693, %v769
    %771 = vdwg.mxu0
    %772 = vmatprep.subr.mxu0 0.0
    %773 = vmatpush1.msra.mxu0 0.0
    %774 = vmatprep.subr.mxu0 0.0
    %775 = vmatpush1.msra.mxu0 0.0
    %776 = vmatprep.subr.mxu0 0.0
    %777 = vmatpush1.msra.mxu0 0.0
    %778 = vmatprep.subr.mxu0 0.0
    %779 = vmatpush1.msra.mxu0 0.0
    %780 = vmatprep.subr.mxu0 0.0
    %781 = vmatpush1.msra.mxu0 0.0
    %782 = vmatprep.subr.mxu0 0.0
    %783 = vmatpush1.msra.mxu0 0.0
    %784 = vmatprep.subr.mxu0 0.0
    %785 = vmatpush1.msra.mxu0 0.0
    %786 = vmatprep.subr.mxu0 0.0
    %787 = vmatpush1.msra.mxu0 0.0
    %788 = vmatprep.subr.mxu0 0.0
    %789 = vmatpush1.msra.mxu0 0.0
    %790 = vmatprep.subr.mxu0 0.0
    %791 = vmatpush1.msra.mxu0 0.0
    %792 = vmatprep.subr.mxu0 0.0
    %793 = vmatpush1.msra.mxu0 0.0
    %794 = vmatprep.subr.mxu0 0.0
    %795 = vmatpush1.msra.mxu0 0.0
    %796 = vmatprep.subr.mxu0 0.0
    %797 = vmatpush1.msra.mxu0 0.0
    %798 = vmatprep.subr.mxu0 0.0
    %799 = vmatpush1.msra.mxu0 0.0
    %800 = vmatprep.subr.mxu0 0.0
    %801 = vmatpush1.msra.mxu0 0.0
    %v802 = vand.u32 %v68, 4294901760
    %803 = vmatprep.subr.mxu0 %v802
    %v804 = vand.u32 %v66, 4294901760
    %805 = vmatpush1.msra.mxu0 %v804
    %806 = vmatprep.subr.mxu0 0.0
    %807 = vmatpush2.msra.mxu0 0.0
    %808 = vmatprep.subr.mxu0 0.0
    %809 = vmatpush2.msra.mxu0 0.0
    %810 = vmatprep.subr.mxu0 0.0
    %811 = vmatpush2.msra.mxu0 0.0
    %812 = vmatprep.subr.mxu0 0.0
    %813 = vmatpush2.msra.mxu0 0.0
    %814 = vmatprep.subr.mxu0 0.0
    %815 = vmatpush2.msra.mxu0 0.0
    %816 = vmatprep.subr.mxu0 0.0
    %817 = vmatpush2.msra.mxu0 0.0
    %818 = vmatprep.subr.mxu0 0.0
    %819 = vmatpush2.msra.mxu0 0.0
    %820 = vmatprep.subr.mxu0 0.0
    %821 = vmatpush2.msra.mxu0 0.0
    %822 = vmatprep.subr.mxu0 0.0
    %823 = vmatpush2.msra.mxu0 0.0
    %824 = vmatprep.subr.mxu0 0.0
    %825 = vmatpush2.msra.mxu0 0.0
    %826 = vmatprep.subr.mxu0 0.0
    %827 = vmatpush2.msra.mxu0 0.0
    %828 = vmatprep.subr.mxu0 0.0
    %829 = vmatpush2.msra.mxu0 0.0
    %830 = vmatprep.subr.mxu0 0.0
    %831 = vmatpush2.msra.mxu0 0.0
    %832 = vmatprep.subr.mxu0 0.0
    %833 = vmatpush2.msra.mxu0 0.0
    %834 = vmatprep.subr.mxu0 0.0
    %835 = vmatpush2.msra.mxu0 0.0
    %836 = vmatprep.subr.mxu0 0.0
    %837 = vmatpush2.msra.mxu0 0.0
    %838 = vmatprep.mubr.f32.mxu0 0.0
    %v839 = vand.u32 %v59, 4294901760
    %v840 = vsub.f32 %v59, %v839
    %v841 = vand.u32 %v840, 4294901760
    %842 = vmatmul.mubr.f32.gmra.mxu0 %v841
    %v843 = vpop.f32.mrf.mxu0
    %v844 = vadd.f32 %v768, %v843
    %v845 = vpop.f32.mrf.mxu0
    %v846 = vadd.f32 %v770, %v845
    %847 = vdwg.mxu0
    %848 = vmatprep.subr.mxu0 0.0
    %849 = vmatpush1.msra.mxu0 0.0
    %850 = vmatprep.subr.mxu0 0.0
    %851 = vmatpush1.msra.mxu0 0.0
    %852 = vmatprep.subr.mxu0 0.0
    %853 = vmatpush1.msra.mxu0 0.0
    %854 = vmatprep.subr.mxu0 0.0
    %855 = vmatpush1.msra.mxu0 0.0
    %856 = vmatprep.subr.mxu0 0.0
    %857 = vmatpush1.msra.mxu0 0.0
    %858 = vmatprep.subr.mxu0 0.0
    %859 = vmatpush1.msra.mxu0 0.0
    %860 = vmatprep.subr.mxu0 0.0
    %861 = vmatpush1.msra.mxu0 0.0
    %862 = vmatprep.subr.mxu0 0.0
    %863 = vmatpush1.msra.mxu0 0.0
    %864 = vmatprep.subr.mxu0 0.0
    %865 = vmatpush1.msra.mxu0 0.0
    %866 = vmatprep.subr.mxu0 0.0
    %867 = vmatpush1.msra.mxu0 0.0
    %868 = vmatprep.subr.mxu0 0.0
    %869 = vmatpush1.msra.mxu0 0.0
    %870 = vmatprep.subr.mxu0 0.0
    %871 = vmatpush1.msra.mxu0 0.0
    %872 = vmatprep.subr.mxu0 0.0
    %873 = vmatpush1.msra.mxu0 0.0
    %874 = vmatprep.subr.mxu0 0.0
    %875 = vmatpush1.msra.mxu0 0.0
    %876 = vmatprep.subr.mxu0 0.0
    %877 = vmatpush1.msra.mxu0 0.0
    %v878 = vand.u32 %v68, 4294901760
    %v879 = vsub.f32 %v68, %v878
    %v880 = vand.u32 %v879, 4294901760
    %881 = vmatprep.subr.mxu0 %v880
    %v882 = vand.u32 %v66, 4294901760
    %v883 = vsub.f32 %v66, %v882
    %v884 = vand.u32 %v883, 4294901760
    %885 = vmatpush1.msra.mxu0 %v884
    %886 = vmatprep.subr.mxu0 0.0
    %887 = vmatpush2.msra.mxu0 0.0
    %888 = vmatprep.subr.mxu0 0.0
    %889 = vmatpush2.msra.mxu0 0.0
    %890 = vmatprep.subr.mxu0 0.0
    %891 = vmatpush2.msra.mxu0 0.0
    %892 = vmatprep.subr.mxu0 0.0
    %893 = vmatpush2.msra.mxu0 0.0
    %894 = vmatprep.subr.mxu0 0.0
    %895 = vmatpush2.msra.mxu0 0.0
    %896 = vmatprep.subr.mxu0 0.0
    %897 = vmatpush2.msra.mxu0 0.0
    %898 = vmatprep.subr.mxu0 0.0
    %899 = vmatpush2.msra.mxu0 0.0
    %900 = vmatprep.subr.mxu0 0.0
    %901 = vmatpush2.msra.mxu0 0.0
    %902 = vmatprep.subr.mxu0 0.0
    %903 = vmatpush2.msra.mxu0 0.0
    %904 = vmatprep.subr.mxu0 0.0
    %905 = vmatpush2.msra.mxu0 0.0
    %906 = vmatprep.subr.mxu0 0.0
    %907 = vmatpush2.msra.mxu0 0.0
    %908 = vmatprep.subr.mxu0 0.0
    %909 = vmatpush2.msra.mxu0 0.0
    %910 = vmatprep.subr.mxu0 0.0
    %911 = vmatpush2.msra.mxu0 0.0
    %912 = vmatprep.subr.mxu0 0.0
    %913 = vmatpush2.msra.mxu0 0.0
    %914 = vmatprep.subr.mxu0 0.0
    %915 = vmatpush2.msra.mxu0 0.0
    %916 = vmatprep.subr.mxu0 0.0
    %917 = vmatpush2.msra.mxu0 0.0
    %918 = vmatprep.mubr.f32.mxu0 0.0
    %v919 = vand.u32 %v59, 4294901760
    %920 = vmatmul.mubr.f32.gmra.mxu0 %v919
    %v921 = vpop.f32.mrf.mxu0
    %v922 = vadd.f32 %v844, %v921
    %v923 = vpop.f32.mrf.mxu0
    %v924 = vadd.f32 %v846, %v923
    %925 = vdwg.mxu0
    %926 = vmatprep.subr.mxu0 0.0
    %927 = vmatpush1.msra.mxu0 0.0
    %928 = vmatprep.subr.mxu0 0.0
    %929 = vmatpush1.msra.mxu0 0.0
    %930 = vmatprep.subr.mxu0 0.0
    %931 = vmatpush1.msra.mxu0 0.0
    %932 = vmatprep.subr.mxu0 0.0
    %933 = vmatpush1.msra.mxu0 0.0
    %934 = vmatprep.subr.mxu0 0.0
    %935 = vmatpush1.msra.mxu0 0.0
    %936 = vmatprep.subr.mxu0 0.0
    %937 = vmatpush1.msra.mxu0 0.0
    %938 = vmatprep.subr.mxu0 0.0
    %939 = vmatpush1.msra.mxu0 0.0
    %940 = vmatprep.subr.mxu0 0.0
    %941 = vmatpush1.msra.mxu0 0.0
    %942 = vmatprep.subr.mxu0 0.0
    %943 = vmatpush1.msra.mxu0 0.0
    %944 = vmatprep.subr.mxu0 0.0
    %945 = vmatpush1.msra.mxu0 0.0
    %946 = vmatprep.subr.mxu0 0.0
    %947 = vmatpush1.msra.mxu0 0.0
    %948 = vmatprep.subr.mxu0 0.0
    %949 = vmatpush1.msra.mxu0 0.0
    %950 = vmatprep.subr.mxu0 0.0
    %951 = vmatpush1.msra.mxu0 0.0
    %952 = vmatprep.subr.mxu0 0.0
    %953 = vmatpush1.msra.mxu0 0.0
    %954 = vmatprep.subr.mxu0 0.0
    %955 = vmatpush1.msra.mxu0 0.0
    %v956 = vand.u32 %v68, 4294901760
    %957 = vmatprep.subr.mxu0 %v956
    %v958 = vand.u32 %v66, 4294901760
    %959 = vmatpush1.msra.mxu0 %v958
    %960 = vmatprep.subr.mxu0 0.0
    %961 = vmatpush2.msra.mxu0 0.0
    %962 = vmatprep.subr.mxu0 0.0
    %963 = vmatpush2.msra.mxu0 0.0
    %964 = vmatprep.subr.mxu0 0.0
    %965 = vmatpush2.msra.mxu0 0.0
    %966 = vmatprep.subr.mxu0 0.0
    %967 = vmatpush2.msra.mxu0 0.0
    %968 = vmatprep.subr.mxu0 0.0
    %969 = vmatpush2.msra.mxu0 0.0
    %970 = vmatprep.subr.mxu0 0.0
    %971 = vmatpush2.msra.mxu0 0.0
    %972 = vmatprep.subr.mxu0 0.0
    %973 = vmatpush2.msra.mxu0 0.0
    %974 = vmatprep.subr.mxu0 0.0
    %975 = vmatpush2.msra.mxu0 0.0
    %976 = vmatprep.subr.mxu0 0.0
    %977 = vmatpush2.msra.mxu0 0.0
    %978 = vmatprep.subr.mxu0 0.0
    %979 = vmatpush2.msra.mxu0 0.0
    %980 = vmatprep.subr.mxu0 0.0
    %981 = vmatpush2.msra.mxu0 0.0
    %982 = vmatprep.subr.mxu0 0.0
    %983 = vmatpush2.msra.mxu0 0.0
    %984 = vmatprep.subr.mxu0 0.0
    %985 = vmatpush2.msra.mxu0 0.0
    %986 = vmatprep.subr.mxu0 0.0
    %987 = vmatpush2.msra.mxu0 0.0
    %988 = vmatprep.subr.mxu0 0.0
    %989 = vmatpush2.msra.mxu0 0.0
    %990 = vmatprep.subr.mxu0 0.0
    %991 = vmatpush2.msra.mxu0 0.0
    %992 = vmatprep.mubr.f32.mxu0 0.0
    %v993 = vand.u32 %v59, 4294901760
    %994 = vmatmul.mubr.f32.gmra.mxu0 %v993
    %v995 = vpop.f32.mrf.mxu0
    %v996 = vadd.f32 %v922, %v995
    %v997 = vpop.f32.mrf.mxu0
    %v998 = vadd.f32 %v924, %v997
    %999 = vdwg.mxu0
    %v1000 = vmul.f32 %v531, 0.70710677
    %v1001 = vmul.f32 %v533, 0.70710677
    %v1002 = vmul.f32 %v996, 0.70710677
    %v1003 = vmul.f32 %v998, 0.70710677
    %v1004 = vand.u32 2147483647, %v1000
    %v1005 = vand.u32 2147483647, %v1001
    %v1006 = vand.u32 2147483647, %v1002
    %v1007 = vand.u32 2147483647, %v1003
    %v1008 = vmul.f32 %v1004, 0.3275911
    %v1009 = vmul.f32 %v1005, 0.3275911
    %v1010 = vmul.f32 %v1006, 0.3275911
    %v1011 = vmul.f32 %v1007, 0.3275911
    %v1012 = vadd.f32 %v1008, 1.0
    %v1013 = vadd.f32 %v1009, 1.0
    %v1014 = vadd.f32 %v1010, 1.0
    %v1015 = vadd.f32 %v1011, 1.0
    %v1016 = vrcp.pop %v1012
    %v1017 = vmul.f32 1.0, %v1016
    %v1018 = vrcp.pop %v1013
    %v1019 = vmul.f32 1.0, %v1018
    %v1020 = vrcp.pop %v1014
    %v1021 = vmul.f32 1.0, %v1020
    %v1022 = vrcp.pop %v1015
    %v1023 = vmul.f32 1.0, %v1022
    %v1024 = vmul.f32 %v1017, 1.0614054
    %v1025 = vmul.f32 %v1019, 1.0614054
    %v1026 = vmul.f32 %v1021, 1.0614054
    %v1027 = vmul.f32 %v1023, 1.0614054
    %v1028 = vadd.f32 %v1024, -1.4531521
    %v1029 = vadd.f32 %v1025, -1.4531521
    %v1030 = vadd.f32 %v1026, -1.4531521
    %v1031 = vadd.f32 %v1027, -1.4531521
    %v1032 = vmul.f32 %v1017, %v1028
    %v1033 = vmul.f32 %v1019, %v1029
    %v1034 = vmul.f32 %v1021, %v1030
    %v1035 = vmul.f32 %v1023, %v1031
    %v1036 = vadd.f32 %v1032, 1.4214138
    %v1037 = vadd.f32 %v1033, 1.4214138
    %v1038 = vadd.f32 %v1034, 1.4214138
    %v1039 = vadd.f32 %v1035, 1.4214138
    %v1040 = vmul.f32 %v1017, %v1036
    %v1041 = vmul.f32 %v1019, %v1037
    %v1042 = vmul.f32 %v1021, %v1038
    %v1043 = vmul.f32 %v1023, %v1039
    %v1044 = vadd.f32 %v1040, -0.28449672
    %v1045 = vadd.f32 %v1041, -0.28449672
    %v1046 = vadd.f32 %v1042, -0.28449672
    %v1047 = vadd.f32 %v1043, -0.28449672
    %v1048 = vmul.f32 %v1017, %v1044
    %v1049 = vmul.f32 %v1019, %v1045
    %v1050 = vmul.f32 %v1021, %v1046
    %v1051 = vmul.f32 %v1023, %v1047
    %v1052 = vadd.f32 %v1048, 0.2548296
    %v1053 = vadd.f32 %v1049, 0.2548296
    %v1054 = vadd.f32 %v1050, 0.2548296
    %v1055 = vadd.f32 %v1051, 0.2548296
    %v1056 = vmul.f32 %v1017, %v1052
    %v1057 = vmul.f32 %v1019, %v1053
    %v1058 = vmul.f32 %v1021, %v1054
    %v1059 = vmul.f32 %v1023, %v1055
    %v1060 = vsub.f32 0.0, %v1004
    %v1061 = vsub.f32 0.0, %v1005
    %v1062 = vsub.f32 0.0, %v1006
    %v1063 = vsub.f32 0.0, %v1007
    %v1064 = vmul.f32 %v1060, %v1004
    %v1065 = vmul.f32 %v1061, %v1005
    %v1066 = vmul.f32 %v1062, %v1006
    %v1067 = vmul.f32 %v1063, %v1007
    %v1068 = vmul.f32 %v1064, 1.442695
    %v1069 = vpow.pop %v1068
    %v1070 = vmul.f32 %v1065, 1.442695
    %v1071 = vpow.pop %v1070
    %v1072 = vmul.f32 %v1066, 1.442695
    %v1073 = vpow.pop %v1072
    %v1074 = vmul.f32 %v1067, 1.442695
    %v1075 = vpow.pop %v1074
    %v1076 = vmul.f32 %v1056, %v1069
    %v1077 = vmul.f32 %v1057, %v1071
    %v1078 = vmul.f32 %v1058, %v1073
    %v1079 = vmul.f32 %v1059, %v1075
    %v1080 = vsub.f32 1.0, %v1076
    %v1081 = vsub.f32 1.0, %v1077
    %v1082 = vsub.f32 1.0, %v1078
    %v1083 = vsub.f32 1.0, %v1079
    %vm1084 = vcmp.ge.f32.partialorder %v1000, 0.0
    %vm1085 = vcmp.ge.f32.partialorder %v1001, 0.0
    %vm1086 = vcmp.ge.f32.partialorder %v1002, 0.0
    %vm1087 = vcmp.ge.f32.partialorder %v1003, 0.0
    %v1088 = vsub.f32 0.0, %v1080
    %v1089 = vsub.f32 0.0, %v1081
    %v1090 = vsub.f32 0.0, %v1082
    %v1091 = vsub.f32 0.0, %v1083
    %v1092 = vsel %vm1084, %v1080, %v1088
    %v1093 = vsel %vm1085, %v1081, %v1089
    %v1094 = vsel %vm1086, %v1082, %v1090
    %v1095 = vsel %vm1087, %v1083, %v1091
    %v1096 = vmul.f32 %v531, 0.5
    %v1097 = vmul.f32 %v533, 0.5
    %v1098 = vmul.f32 %v996, 0.5
    %v1099 = vmul.f32 %v998, 0.5
    %v1100 = vadd.f32 %v1092, 1.0
    %v1101 = vadd.f32 %v1093, 1.0
    %v1102 = vadd.f32 %v1094, 1.0
    %v1103 = vadd.f32 %v1095, 1.0
    %v1104 = vmul.f32 %v1096, %v1100
    %v1105 = vmul.f32 %v1097, %v1101
    %v1106 = vmul.f32 %v1098, %v1102
    %v1107 = vmul.f32 %v1099, %v1103
    %1113 = vrot.lane.b32.xlu0 0.0, 127
    %v1114 = vpop.permute.xlu0 %1113
    %1115 = vrot.lane.b32.xlu0 %v1104, 127
    %v1116 = vpop.permute.xlu0 %1115
    %1117 = vrot.lane.b32.xlu0 %v1105, 127
    %v1118 = vpop.permute.xlu0 %1117
    %1119 = vrot.lane.b32.xlu0 %v1106, 127
    %v1120 = vpop.permute.xlu0 %1119
    %1121 = vrot.lane.b32.xlu0 %v1107, 127
    %v1122 = vpop.permute.xlu0 %1121
    %vm1123 = vcmask 1039360
    %v1124 = vsel %vm1123, %v1114, %v1116
    %v1125 = vsel %vm1123, %v1116, %v1118
    %v1126 = vsel %vm1123, %v1118, %v1120
    %v1127 = vsel %vm1123, %v1120, %v1122
    %1133 = vrot.lane.b32.xlu0 0.0, 126
    %v1134 = vpop.permute.xlu0 %1133
    %1135 = vrot.lane.b32.xlu0 %v1104, 126
    %v1136 = vpop.permute.xlu0 %1135
    %1137 = vrot.lane.b32.xlu0 %v1105, 126
    %v1138 = vpop.permute.xlu0 %1137
    %1139 = vrot.lane.b32.xlu0 %v1106, 126
    %v1140 = vpop.permute.xlu0 %1139
    %1141 = vrot.lane.b32.xlu0 %v1107, 126
    %v1142 = vpop.permute.xlu0 %1141
    %vm1143 = vcmask 1031168
    %v1144 = vsel %vm1143, %v1134, %v1136
    %v1145 = vsel %vm1143, %v1136, %v1138
    %v1146 = vsel %vm1143, %v1138, %v1140
    %v1147 = vsel %vm1143, %v1140, %v1142
    %1153 = vrot.lane.b32.xlu0 0.0, 112
    %v1154 = vpop.permute.xlu0 %1153
    %1155 = vrot.lane.b32.xlu0 %v1104, 112
    %v1156 = vpop.permute.xlu0 %1155
    %1157 = vrot.lane.b32.xlu0 %v1105, 112
    %v1158 = vpop.permute.xlu0 %1157
    %1159 = vrot.lane.b32.xlu0 %v1106, 112
    %v1160 = vpop.permute.xlu0 %1159
    %1161 = vrot.lane.b32.xlu0 %v1107, 112
    %v1162 = vpop.permute.xlu0 %1161
    %vm1163 = vcmask 916480
    %v1164 = vsel %vm1163, %v1154, %v1156
    %v1165 = vsel %vm1163, %v1156, %v1158
    %v1166 = vsel %vm1163, %v1158, %v1160
    %v1167 = vsel %vm1163, %v1160, %v1162
    %1173 = vrot.lane.b32.xlu0 %v1104, 111
    %v1174 = vpop.permute.xlu0 %1173
    %1175 = vrot.lane.b32.xlu0 %v1105, 111
    %v1176 = vpop.permute.xlu0 %1175
    %1177 = vrot.lane.b32.xlu0 %v1106, 111
    %v1178 = vpop.permute.xlu0 %1177
    %1179 = vrot.lane.b32.xlu0 %v1107, 111
    %v1180 = vpop.permute.xlu0 %1179
    %vm1181 = vcmask 908288
    %v1182 = vsel %vm1181, %v1174, %v1176
    %v1183 = vsel %vm1181, %v1176, %v1178
    %v1184 = vsel %vm1181, %v1178, %v1180
    %1190 = vrot.lane.b32.xlu0 %v1104, 110
    %v1191 = vpop.permute.xlu0 %1190
    %1192 = vrot.lane.b32.xlu0 %v1105, 110
    %v1193 = vpop.permute.xlu0 %1192
    %1194 = vrot.lane.b32.xlu0 %v1106, 110
    %v1195 = vpop.permute.xlu0 %1194
    %1196 = vrot.lane.b32.xlu0 %v1107, 110
    %v1197 = vpop.permute.xlu0 %1196
    %1198 = vrot.lane.b32.xlu0 0.0, 110
    %v1199 = vpop.permute.xlu0 %1198
    %vm1200 = vcmask 900096
    %v1201 = vsel %vm1200, %v1191, %v1193
    %v1202 = vsel %vm1200, %v1193, %v1195
    %v1203 = vsel %vm1200, %v1195, %v1197
    %v1204 = vsel %vm1200, %v1197, %v1199
    %1210 = vrot.lane.b32.xlu0 %v1104, 96
    %v1211 = vpop.permute.xlu0 %1210
    %1212 = vrot.lane.b32.xlu0 %v1105, 96
    %v1213 = vpop.permute.xlu0 %1212
    %1214 = vrot.lane.b32.xlu0 %v1106, 96
    %v1215 = vpop.permute.xlu0 %1214
    %1216 = vrot.lane.b32.xlu0 %v1107, 96
    %v1217 = vpop.permute.xlu0 %1216
    %1218 = vrot.lane.b32.xlu0 0.0, 96
    %v1219 = vpop.permute.xlu0 %1218
    %vm1220 = vcmask 785408
    %v1221 = vsel %vm1220, %v1211, %v1213
    %v1222 = vsel %vm1220, %v1213, %v1215
    %v1223 = vsel %vm1220, %v1215, %v1217
    %v1224 = vsel %vm1220, %v1217, %v1219
    %1230 = vrot.lane.b32.xlu0 %v1104, 95
    %v1231 = vpop.permute.xlu0 %1230
    %1232 = vrot.lane.b32.xlu0 %v1105, 95
    %v1233 = vpop.permute.xlu0 %1232
    %1234 = vrot.lane.b32.xlu0 %v1106, 95
    %v1235 = vpop.permute.xlu0 %1234
    %1236 = vrot.lane.b32.xlu0 %v1107, 95
    %v1237 = vpop.permute.xlu0 %1236
    %1238 = vrot.lane.b32.xlu0 0.0, 95
    %v1239 = vpop.permute.xlu0 %1238
    %vm1240 = vcmask 777216
    %v1241 = vsel %vm1240, %v1231, %v1233
    %v1242 = vsel %vm1240, %v1233, %v1235
    %v1243 = vsel %vm1240, %v1235, %v1237
    %v1244 = vsel %vm1240, %v1237, %v1239
    %1250 = vrot.lane.b32.xlu0 %v1104, 94
    %v1251 = vpop.permute.xlu0 %1250
    %1252 = vrot.lane.b32.xlu0 %v1105, 94
    %v1253 = vpop.permute.xlu0 %1252
    %1254 = vrot.lane.b32.xlu0 %v1106, 94
    %v1255 = vpop.permute.xlu0 %1254
    %1256 = vrot.lane.b32.xlu0 %v1107, 94
    %v1257 = vpop.permute.xlu0 %1256
    %1258 = vrot.lane.b32.xlu0 0.0, 94
    %v1259 = vpop.permute.xlu0 %1258
    %vm1260 = vcmask 769024
    %v1261 = vsel %vm1260, %v1251, %v1253
    %v1262 = vsel %vm1260, %v1253, %v1255
    %v1263 = vsel %vm1260, %v1255, %v1257
    %v1264 = vsel %vm1260, %v1257, %v1259
    %v1270 = vld [vmem:[#allocation2] sm:$0xff]
    %v1271 = vld [vmem:[#allocation2 + $0x8] sm:$0xff]
    %v1272 = vld [vmem:[#allocation2 + $0x10] sm:$0xff]
    %v1273 = vld [vmem:[#allocation2 + $0x18] sm:$0xff]
    %v1274 = vld [vmem:[#allocation2 + $0x20] sm:$0xff]
    %v1275 = vld [vmem:[#allocation2 + $0x28] sm:$0xff]
    %v1276 = vld [vmem:[#allocation2 + $0x30] sm:$0xff]
    %v1277 = vld [vmem:[#allocation2 + $0x38] sm:$0xff]
    %v1278 = vld [vmem:[#allocation2 + $0x40] sm:$0xff]
    %v1279 = vld [vmem:[#allocation2 + $0x48] sm:$0xff]
    %v1280 = vld [vmem:[#allocation2 + $0x50] sm:$0xff]
    %v1281 = vld [vmem:[#allocation2 + $0x58] sm:$0xff]
    %v1282 = vld [vmem:[#allocation2 + $0x60] sm:$0xff]
    %v1283 = vld [vmem:[#allocation2 + $0x68] sm:$0xff]
    %v1284 = vld [vmem:[#allocation2 + $0x70] sm:$0xff]
    %v1285 = vld [vmem:[#allocation2 + $0x78] sm:$0xff]
    %v1286 = vld [vmem:[#allocation2 + $0x80] sm:$0xff]
    %v1287 = vld [vmem:[#allocation2 + $0x88] sm:$0xff]
    %v1288 = vld [vmem:[#allocation2 + $0x90] sm:$0xff]
    %v1289 = vld [vmem:[#allocation2 + $0x98] sm:$0xff]
    %v1290 = vld [vmem:[#allocation2 + $0xa0] sm:$0xff]
    %v1291 = vld [vmem:[#allocation2 + $0xa8] sm:$0xff]
    %v1292 = vld [vmem:[#allocation2 + $0xb0] sm:$0xff]
    %v1293 = vld [vmem:[#allocation2 + $0xb8] sm:$0xff]
    %v1294 = vld [vmem:[#allocation2 + $0xc0] sm:$0xff]
    %v1295 = vld [vmem:[#allocation2 + $0xc8] sm:$0xff]
    %v1296 = vld [vmem:[#allocation2 + $0xd0] sm:$0xff]
    %v1297 = vld [vmem:[#allocation2 + $0xd8] sm:$0xff]
    %v1298 = vld [vmem:[#allocation2 + $0xe0] sm:$0xff]
    %v1299 = vld [vmem:[#allocation2 + $0xe8] sm:$0xff]
    %v1300 = vld [vmem:[#allocation2 + $0xf0] sm:$0xff]
    %v1301 = vld [vmem:[#allocation2 + $0xf8] sm:$0xff]
    %v1302 = vld [vmem:[#allocation2 + $0x100] sm:$0xff]
    %v1303 = vld [vmem:[#allocation2 + $0x108] sm:$0xff]
    %v1304 = vld [vmem:[#allocation2 + $0x110] sm:$0xff]
    %v1305 = vld [vmem:[#allocation2 + $0x118] sm:$0xff]
    %1342 = vrot.lane.b32.xlu0 %v1270, 111
    %v1343 = vpop.permute.xlu0 %1342
    %1344 = vrot.lane.b32.xlu0 %v1271, 111
    %v1345 = vpop.permute.xlu0 %1344
    %1346 = vrot.lane.b32.xlu0 %v1272, 111
    %v1347 = vpop.permute.xlu0 %1346
    %1348 = vrot.lane.b32.xlu0 %v1273, 111
    %v1349 = vpop.permute.xlu0 %1348
    %1350 = vrot.lane.b32.xlu0 %v1274, 111
    %v1351 = vpop.permute.xlu0 %1350
    %1352 = vrot.lane.b32.xlu0 %v1275, 111
    %v1353 = vpop.permute.xlu0 %1352
    %1354 = vrot.lane.b32.xlu0 %v1276, 111
    %v1355 = vpop.permute.xlu0 %1354
    %1356 = vrot.lane.b32.xlu0 %v1277, 111
    %v1357 = vpop.permute.xlu0 %1356
    %1358 = vrot.lane.b32.xlu0 %v1278, 111
    %v1359 = vpop.permute.xlu0 %1358
    %1360 = vrot.lane.b32.xlu0 %v1279, 111
    %v1361 = vpop.permute.xlu0 %1360
    %1362 = vrot.lane.b32.xlu0 %v1280, 111
    %v1363 = vpop.permute.xlu0 %1362
    %1364 = vrot.lane.b32.xlu0 %v1281, 111
    %v1365 = vpop.permute.xlu0 %1364
    %1366 = vrot.lane.b32.xlu0 %v1282, 111
    %v1367 = vpop.permute.xlu0 %1366
    %1368 = vrot.lane.b32.xlu0 %v1283, 111
    %v1369 = vpop.permute.xlu0 %1368
    %1370 = vrot.lane.b32.xlu0 %v1284, 111
    %v1371 = vpop.permute.xlu0 %1370
    %1372 = vrot.lane.b32.xlu0 %v1285, 111
    %v1373 = vpop.permute.xlu0 %1372
    %1374 = vrot.lane.b32.xlu0 %v1286, 111
    %v1375 = vpop.permute.xlu0 %1374
    %1376 = vrot.lane.b32.xlu0 %v1287, 111
    %v1377 = vpop.permute.xlu0 %1376
    %1378 = vrot.lane.b32.xlu0 %v1288, 111
    %v1379 = vpop.permute.xlu0 %1378
    %1380 = vrot.lane.b32.xlu0 %v1289, 111
    %v1381 = vpop.permute.xlu0 %1380
    %1382 = vrot.lane.b32.xlu0 %v1290, 111
    %v1383 = vpop.permute.xlu0 %1382
    %1384 = vrot.lane.b32.xlu0 %v1291, 111
    %v1385 = vpop.permute.xlu0 %1384
    %1386 = vrot.lane.b32.xlu0 %v1292, 111
    %v1387 = vpop.permute.xlu0 %1386
    %1388 = vrot.lane.b32.xlu0 %v1293, 111
    %v1389 = vpop.permute.xlu0 %1388
    %1390 = vrot.lane.b32.xlu0 %v1294, 111
    %v1391 = vpop.permute.xlu0 %1390
    %1392 = vrot.lane.b32.xlu0 %v1295, 111
    %v1393 = vpop.permute.xlu0 %1392
    %1394 = vrot.lane.b32.xlu0 %v1296, 111
    %v1395 = vpop.permute.xlu0 %1394
    %1396 = vrot.lane.b32.xlu0 %v1297, 111
    %v1397 = vpop.permute.xlu0 %1396
    %1398 = vrot.lane.b32.xlu0 %v1298, 111
    %v1399 = vpop.permute.xlu0 %1398
    %1400 = vrot.lane.b32.xlu0 %v1299, 111
    %v1401 = vpop.permute.xlu0 %1400
    %1402 = vrot.lane.b32.xlu0 %v1300, 111
    %v1403 = vpop.permute.xlu0 %1402
    %1404 = vrot.lane.b32.xlu0 %v1301, 111
    %v1405 = vpop.permute.xlu0 %1404
    %1406 = vrot.lane.b32.xlu0 %v1302, 111
    %v1407 = vpop.permute.xlu0 %1406
    %1408 = vrot.lane.b32.xlu0 %v1303, 111
    %v1409 = vpop.permute.xlu0 %1408
    %1410 = vrot.lane.b32.xlu0 %v1304, 111
    %v1411 = vpop.permute.xlu0 %1410
    %1412 = vrot.lane.b32.xlu0 %v1305, 111
    %v1413 = vpop.permute.xlu0 %1412
    %v1414 = vsel %vm1181, %v1343, %v1345
    %v1415 = vsel %vm1181, %v1345, %v1347
    %v1416 = vsel %vm1181, %v1347, %v1349
    %v1417 = vsel %vm1181, %v1351, %v1353
    %v1418 = vsel %vm1181, %v1353, %v1355
    %v1419 = vsel %vm1181, %v1355, %v1357
    %v1420 = vsel %vm1181, %v1359, %v1361
    %v1421 = vsel %vm1181, %v1361, %v1363
    %v1422 = vsel %vm1181, %v1363, %v1365
    %v1423 = vsel %vm1181, %v1367, %v1369
    %v1424 = vsel %vm1181, %v1369, %v1371
    %v1425 = vsel %vm1181, %v1371, %v1373
    %v1426 = vsel %vm1181, %v1375, %v1377
    %v1427 = vsel %vm1181, %v1377, %v1379
    %v1428 = vsel %vm1181, %v1379, %v1381
    %v1429 = vsel %vm1181, %v1383, %v1385
    %v1430 = vsel %vm1181, %v1385, %v1387
    %v1431 = vsel %vm1181, %v1387, %v1389
    %v1432 = vsel %vm1181, %v1391, %v1393
    %v1433 = vsel %vm1181, %v1393, %v1395
    %v1434 = vsel %vm1181, %v1395, %v1397
    %v1435 = vsel %vm1181, %v1399, %v1401
    %v1436 = vsel %vm1181, %v1401, %v1403
    %v1437 = vsel %vm1181, %v1403, %v1405
    %v1438 = vsel %vm1181, %v1407, %v1409
    %v1439 = vsel %vm1181, %v1409, %v1411
    %v1440 = vsel %vm1181, %v1411, %v1413
    %v1486 = vmul.f32 %v1343, 0.0
    %v1487 = vmul.f32 %v1104, %v1414
    %v1488 = vmul.f32 %v1105, %v1415
    %v1489 = vmul.f32 %v1106, %v1416
    %v1490 = vmul.f32 %v1107, %v1349
    %v1491 = vmul.f32 %v1124, %v1351
    %v1492 = vmul.f32 %v1125, %v1417
    %v1493 = vmul.f32 %v1126, %v1418
    %v1494 = vmul.f32 %v1127, %v1419
    %v1495 = vmul.f32 %v1122, %v1357
    %v1496 = vmul.f32 %v1144, %v1359
    %v1497 = vmul.f32 %v1145, %v1420
    %v1498 = vmul.f32 %v1146, %v1421
    %v1499 = vmul.f32 %v1147, %v1422
    %v1500 = vmul.f32 %v1142, %v1365
    %v1501 = vmul.f32 %v1164, %v1367
    %v1502 = vmul.f32 %v1165, %v1423
    %v1503 = vmul.f32 %v1166, %v1424
    %v1504 = vmul.f32 %v1167, %v1425
    %v1505 = vmul.f32 %v1162, %v1373
    %v1506 = vmul.f32 %v1174, %v1375
    %v1507 = vmul.f32 %v1182, %v1426
    %v1508 = vmul.f32 %v1183, %v1427
    %v1509 = vmul.f32 %v1184, %v1428
    %v1510 = vmul.f32 %v1180, %v1381
    %v1511 = vmul.f32 %v1191, %v1383
    %v1512 = vmul.f32 %v1201, %v1429
    %v1513 = vmul.f32 %v1202, %v1430
    %v1514 = vmul.f32 %v1203, %v1431
    %v1515 = vmul.f32 %v1204, %v1389
    %v1516 = vmul.f32 %v1211, %v1391
    %v1517 = vmul.f32 %v1221, %v1432
    %v1518 = vmul.f32 %v1222, %v1433
    %v1519 = vmul.f32 %v1223, %v1434
    %v1520 = vmul.f32 %v1224, %v1397
    %v1521 = vmul.f32 %v1231, %v1399
    %v1522 = vmul.f32 %v1241, %v1435
    %v1523 = vmul.f32 %v1242, %v1436
    %v1524 = vmul.f32 %v1243, %v1437
    %v1525 = vmul.f32 %v1244, %v1405
    %v1526 = vmul.f32 %v1251, %v1407
    %v1527 = vmul.f32 %v1261, %v1438
    %v1528 = vmul.f32 %v1262, %v1439
    %v1529 = vmul.f32 %v1263, %v1440
    %v1530 = vmul.f32 %v1264, %v1413
    %v1531 = vld [vmem:[%s4] sm:$0xff]
    %v1532 = vld [vmem:[%s5] sm:$0xff]
    %1534 = vset.pattern.permute.xlu0 0
    %1535 = vperm.xlu0 %1534, %v1532
    %v1536 = vpop.permute.xlu0 %1535
    %1583 = vrot.lane.b32.xlu0 %v1486, 17
    %v1584 = vpop.permute.xlu0 %1583
    %1585 = vrot.lane.b32.xlu0 %v1487, 17
    %v1586 = vpop.permute.xlu0 %1585
    %1587 = vrot.lane.b32.xlu0 %v1488, 17
    %v1588 = vpop.permute.xlu0 %1587
    %1589 = vrot.lane.b32.xlu0 %v1489, 17
    %v1590 = vpop.permute.xlu0 %1589
    %1591 = vrot.lane.b32.xlu0 %v1490, 17
    %v1592 = vpop.permute.xlu0 %1591
    %1593 = vrot.lane.b32.xlu0 %v1491, 17
    %v1594 = vpop.permute.xlu0 %1593
    %1595 = vrot.lane.b32.xlu0 %v1492, 17
    %v1596 = vpop.permute.xlu0 %1595
    %1597 = vrot.lane.b32.xlu0 %v1493, 17
    %v1598 = vpop.permute.xlu0 %1597
    %1599 = vrot.lane.b32.xlu0 %v1494, 17
    %v1600 = vpop.permute.xlu0 %1599
    %1601 = vrot.lane.b32.xlu0 %v1495, 17
    %v1602 = vpop.permute.xlu0 %1601
    %1603 = vrot.lane.b32.xlu0 %v1496, 17
    %v1604 = vpop.permute.xlu0 %1603
    %1605 = vrot.lane.b32.xlu0 %v1497, 17
    %v1606 = vpop.permute.xlu0 %1605
    %1607 = vrot.lane.b32.xlu0 %v1498, 17
    %v1608 = vpop.permute.xlu0 %1607
    %1609 = vrot.lane.b32.xlu0 %v1499, 17
    %v1610 = vpop.permute.xlu0 %1609
    %1611 = vrot.lane.b32.xlu0 %v1500, 17
    %v1612 = vpop.permute.xlu0 %1611
    %1613 = vrot.lane.b32.xlu0 %v1501, 17
    %v1614 = vpop.permute.xlu0 %1613
    %1615 = vrot.lane.b32.xlu0 %v1502, 17
    %v1616 = vpop.permute.xlu0 %1615
    %1617 = vrot.lane.b32.xlu0 %v1503, 17
    %v1618 = vpop.permute.xlu0 %1617
    %1619 = vrot.lane.b32.xlu0 %v1504, 17
    %v1620 = vpop.permute.xlu0 %1619
    %1621 = vrot.lane.b32.xlu0 %v1505, 17
    %v1622 = vpop.permute.xlu0 %1621
    %1623 = vrot.lane.b32.xlu0 %v1506, 17
    %v1624 = vpop.permute.xlu0 %1623
    %1625 = vrot.lane.b32.xlu0 %v1507, 17
    %v1626 = vpop.permute.xlu0 %1625
    %1627 = vrot.lane.b32.xlu0 %v1508, 17
    %v1628 = vpop.permute.xlu0 %1627
    %1629 = vrot.lane.b32.xlu0 %v1509, 17
    %v1630 = vpop.permute.xlu0 %1629
    %1631 = vrot.lane.b32.xlu0 %v1510, 17
    %v1632 = vpop.permute.xlu0 %1631
    %1633 = vrot.lane.b32.xlu0 %v1511, 17
    %v1634 = vpop.permute.xlu0 %1633
    %1635 = vrot.lane.b32.xlu0 %v1512, 17
    %v1636 = vpop.permute.xlu0 %1635
    %1637 = vrot.lane.b32.xlu0 %v1513, 17
    %v1638 = vpop.permute.xlu0 %1637
    %1639 = vrot.lane.b32.xlu0 %v1514, 17
    %v1640 = vpop.permute.xlu0 %1639
    %1641 = vrot.lane.b32.xlu0 %v1515, 17
    %v1642 = vpop.permute.xlu0 %1641
    %1643 = vrot.lane.b32.xlu0 %v1516, 17
    %v1644 = vpop.permute.xlu0 %1643
    %1645 = vrot.lane.b32.xlu0 %v1517, 17
    %v1646 = vpop.permute.xlu0 %1645
    %1647 = vrot.lane.b32.xlu0 %v1518, 17
    %v1648 = vpop.permute.xlu0 %1647
    %1649 = vrot.lane.b32.xlu0 %v1519, 17
    %v1650 = vpop.permute.xlu0 %1649
    %1651 = vrot.lane.b32.xlu0 %v1520, 17
    %v1652 = vpop.permute.xlu0 %1651
    %1653 = vrot.lane.b32.xlu0 %v1521, 17
    %v1654 = vpop.permute.xlu0 %1653
    %1655 = vrot.lane.b32.xlu0 %v1522, 17
    %v1656 = vpop.permute.xlu0 %1655
    %1657 = vrot.lane.b32.xlu0 %v1523, 17
    %v1658 = vpop.permute.xlu0 %1657
    %1659 = vrot.lane.b32.xlu0 %v1524, 17
    %v1660 = vpop.permute.xlu0 %1659
    %1661 = vrot.lane.b32.xlu0 %v1525, 17
    %v1662 = vpop.permute.xlu0 %1661
    %1663 = vrot.lane.b32.xlu0 %v1526, 17
    %v1664 = vpop.permute.xlu0 %1663
    %1665 = vrot.lane.b32.xlu0 %v1527, 17
    %v1666 = vpop.permute.xlu0 %1665
    %1667 = vrot.lane.b32.xlu0 %v1528, 17
    %v1668 = vpop.permute.xlu0 %1667
    %1669 = vrot.lane.b32.xlu0 %v1529, 17
    %v1670 = vpop.permute.xlu0 %1669
    %1671 = vrot.lane.b32.xlu0 %v1530, 17
    %v1672 = vpop.permute.xlu0 %1671
    %vm1673 = vcmask 138240
    %v1674 = vsel %vm1673, %v1584, %v1586
    %v1675 = vsel %vm1673, %v1586, %v1588
    %v1676 = vsel %vm1673, %v1588, %v1590
    %v1677 = vsel %vm1673, %v1590, %v1592
    %v1678 = vsel %vm1673, %v1594, %v1596
    %v1679 = vsel %vm1673, %v1596, %v1598
    %v1680 = vsel %vm1673, %v1598, %v1600
    %v1681 = vsel %vm1673, %v1600, %v1602
    %v1682 = vsel %vm1673, %v1604, %v1606
    %v1683 = vsel %vm1673, %v1606, %v1608
    %v1684 = vsel %vm1673, %v1608, %v1610
    %v1685 = vsel %vm1673, %v1610, %v1612
    %v1686 = vsel %vm1673, %v1614, %v1616
    %v1687 = vsel %vm1673, %v1616, %v1618
    %v1688 = vsel %vm1673, %v1618, %v1620
    %v1689 = vsel %vm1673, %v1620, %v1622
    %v1690 = vsel %vm1673, %v1624, %v1626
    %v1691 = vsel %vm1673, %v1626, %v1628
    %v1692 = vsel %vm1673, %v1628, %v1630
    %v1693 = vsel %vm1673, %v1630, %v1632
    %v1694 = vsel %vm1673, %v1634, %v1636
    %v1695 = vsel %vm1673, %v1636, %v1638
    %v1696 = vsel %vm1673, %v1638, %v1640
    %v1697 = vsel %vm1673, %v1640, %v1642
    %v1698 = vsel %vm1673, %v1644, %v1646
    %v1699 = vsel %vm1673, %v1646, %v1648
    %v1700 = vsel %vm1673, %v1648, %v1650
    %v1701 = vsel %vm1673, %v1650, %v1652
    %v1702 = vsel %vm1673, %v1654, %v1656
    %v1703 = vsel %vm1673, %v1656, %v1658
    %v1704 = vsel %vm1673, %v1658, %v1660
    %v1705 = vsel %vm1673, %v1660, %v1662
    %v1706 = vsel %vm1673, %v1664, %v1666
    %v1707 = vsel %vm1673, %v1666, %v1668
    %v1708 = vsel %vm1673, %v1668, %v1670
    %v1709 = vsel %vm1673, %v1670, %v1672
    %vm1746 = vcmask 588800
    %v1748 = vsel %vm1746, %v1531, 0
    %1750 = vmatprep.subr.mxu0 0.0
    %1751 = vmatpush1.msra.mxu0 0.0
    %1752 = vmatprep.subr.mxu0 0.0
    %1753 = vmatpush1.msra.mxu0 0.0
    %1754 = vmatprep.subr.mxu0 0.0
    %1755 = vmatpush1.msra.mxu0 0.0
    %1756 = vmatprep.subr.mxu0 0.0
    %1757 = vmatpush1.msra.mxu0 0.0
    %1758 = vmatprep.subr.mxu0 0.0
    %1759 = vmatpush1.msra.mxu0 0.0
    %1760 = vmatprep.subr.mxu0 0.0
    %1761 = vmatpush1.msra.mxu0 0.0
    %1762 = vmatprep.subr.mxu0 0.0
    %1763 = vmatpush1.msra.mxu0 0.0
    %v1764 = vand.u32 %v1707, 4294901760
    %1765 = vmatprep.subr.mxu0 %v1764
    %v1766 = vand.u32 %v1706, 4294901760
    %1767 = vmatpush1.msra.mxu0 %v1766
    %v1768 = vand.u32 %v1703, 4294901760
    %1769 = vmatprep.subr.mxu0 %v1768
    %v1770 = vand.u32 %v1702, 4294901760
    %1771 = vmatpush1.msra.mxu0 %v1770
    %v1772 = vand.u32 %v1699, 4294901760
    %1773 = vmatprep.subr.mxu0 %v1772
    %v1774 = vand.u32 %v1698, 4294901760
    %1775 = vmatpush1.msra.mxu0 %v1774
    %v1776 = vand.u32 %v1695, 4294901760
    %1777 = vmatprep.subr.mxu0 %v1776
    %v1778 = vand.u32 %v1694, 4294901760
    %1779 = vmatpush1.msra.mxu0 %v1778
    %v1780 = vand.u32 %v1691, 4294901760
    %1781 = vmatprep.subr.mxu0 %v1780
    %v1782 = vand.u32 %v1690, 4294901760
    %1783 = vmatpush1.msra.mxu0 %v1782
    %v1784 = vand.u32 %v1687, 4294901760
    %1785 = vmatprep.subr.mxu0 %v1784
    %v1786 = vand.u32 %v1686, 4294901760
    %1787 = vmatpush1.msra.mxu0 %v1786
    %v1788 = vand.u32 %v1683, 4294901760
    %1789 = vmatprep.subr.mxu0 %v1788
    %v1790 = vand.u32 %v1682, 4294901760
    %1791 = vmatpush1.msra.mxu0 %v1790
    %v1792 = vand.u32 %v1679, 4294901760
    %1793 = vmatprep.subr.mxu0 %v1792
    %v1794 = vand.u32 %v1678, 4294901760
    %1795 = vmatpush1.msra.mxu0 %v1794
    %v1796 = vand.u32 %v1675, 4294901760
    %1797 = vmatprep.subr.mxu0 %v1796
    %v1798 = vand.u32 %v1674, 4294901760
    %1799 = vmatpush1.msra.mxu0 %v1798
    %1800 = vmatprep.subr.mxu0 0.0
    %1801 = vmatpush2.msra.mxu0 0.0
    %1802 = vmatprep.subr.mxu0 0.0
    %1803 = vmatpush2.msra.mxu0 0.0
    %1804 = vmatprep.subr.mxu0 0.0
    %1805 = vmatpush2.msra.mxu0 0.0
    %1806 = vmatprep.subr.mxu0 0.0
    %1807 = vmatpush2.msra.mxu0 0.0
    %1808 = vmatprep.subr.mxu0 0.0
    %1809 = vmatpush2.msra.mxu0 0.0
    %1810 = vmatprep.subr.mxu0 0.0
    %1811 = vmatpush2.msra.mxu0 0.0
    %1812 = vmatprep.subr.mxu0 0.0
    %1813 = vmatpush2.msra.mxu0 0.0
    %1814 = vmatprep.subr.mxu0 0.0
    %1815 = vmatpush2.msra.mxu0 0.0
    %1816 = vmatprep.subr.mxu0 0.0
    %1817 = vmatpush2.msra.mxu0 0.0
    %1818 = vmatprep.subr.mxu0 0.0
    %1819 = vmatpush2.msra.mxu0 0.0
    %1820 = vmatprep.subr.mxu0 0.0
    %1821 = vmatpush2.msra.mxu0 0.0
    %1822 = vmatprep.subr.mxu0 0.0
    %1823 = vmatpush2.msra.mxu0 0.0
    %1824 = vmatprep.subr.mxu0 0.0
    %1825 = vmatpush2.msra.mxu0 0.0
    %1826 = vmatprep.subr.mxu0 0.0
    %1827 = vmatpush2.msra.mxu0 0.0
    %1828 = vmatprep.subr.mxu0 0.0
    %1829 = vmatpush2.msra.mxu0 0.0
    %1830 = vmatprep.subr.mxu0 0.0
    %1831 = vmatpush2.msra.mxu0 0.0
    %1832 = vmatprep.mubr.f32.mxu0 0.0
    %v1833 = vand.u32 %v1748, 4294901760
    %v1834 = vsub.f32 %v1748, %v1833
    %v1835 = vand.u32 %v1834, 4294901760
    %v1836 = vsub.f32 %v1834, %v1835
    %v1837 = vand.u32 %v1836, 4294901760
    %1838 = vmatmul.mubr.f32.gmra.mxu0 %v1837
    %v1839 = vpop.f32.mrf.mxu0
    %v1840 = vadd.f32 %v1536, %v1839
    %v1841 = vpop.f32.mrf.mxu0
    %v1842 = vadd.f32 %v1536, %v1841
    %1843 = vdwg.mxu0
    %1844 = vmatprep.subr.mxu0 0.0
    %1845 = vmatpush1.msra.mxu0 0.0
    %1846 = vmatprep.subr.mxu0 0.0
    %1847 = vmatpush1.msra.mxu0 0.0
    %1848 = vmatprep.subr.mxu0 0.0
    %1849 = vmatpush1.msra.mxu0 0.0
    %1850 = vmatprep.subr.mxu0 0.0
    %1851 = vmatpush1.msra.mxu0 0.0
    %1852 = vmatprep.subr.mxu0 0.0
    %1853 = vmatpush1.msra.mxu0 0.0
    %1854 = vmatprep.subr.mxu0 0.0
    %1855 = vmatpush1.msra.mxu0 0.0
    %1856 = vmatprep.subr.mxu0 0.0
    %1857 = vmatpush1.msra.mxu0 0.0
    %v1858 = vand.u32 %v1707, 4294901760
    %v1859 = vsub.f32 %v1707, %v1858
    %v1860 = vand.u32 %v1859, 4294901760
    %v1861 = vsub.f32 %v1859, %v1860
    %v1862 = vand.u32 %v1861, 4294901760
    %1863 = vmatprep.subr.mxu0 %v1862
    %v1864 = vand.u32 %v1706, 4294901760
    %v1865 = vsub.f32 %v1706, %v1864
    %v1866 = vand.u32 %v1865, 4294901760
    %v1867 = vsub.f32 %v1865, %v1866
    %v1868 = vand.u32 %v1867, 4294901760
    %1869 = vmatpush1.msra.mxu0 %v1868
    %v1870 = vand.u32 %v1703, 4294901760
    %v1871 = vsub.f32 %v1703, %v1870
    %v1872 = vand.u32 %v1871, 4294901760
    %v1873 = vsub.f32 %v1871, %v1872
    %v1874 = vand.u32 %v1873, 4294901760
    %1875 = vmatprep.subr.mxu0 %v1874
    %v1876 = vand.u32 %v1702, 4294901760
    %v1877 = vsub.f32 %v1702, %v1876
    %v1878 = vand.u32 %v1877, 4294901760
    %v1879 = vsub.f32 %v1877, %v1878
    %v1880 = vand.u32 %v1879, 4294901760
    %1881 = vmatpush1.msra.mxu0 %v1880
    %v1882 = vand.u32 %v1699, 4294901760
    %v1883 = vsub.f32 %v1699, %v1882
    %v1884 = vand.u32 %v1883, 4294901760
    %v1885 = vsub.f32 %v1883, %v1884
    %v1886 = vand.u32 %v1885, 4294901760
    %1887 = vmatprep.subr.mxu0 %v1886
    %v1888 = vand.u32 %v1698, 4294901760
    %v1889 = vsub.f32 %v1698, %v1888
    %v1890 = vand.u32 %v1889, 4294901760
    %v1891 = vsub.f32 %v1889, %v1890
    %v1892 = vand.u32 %v1891, 4294901760
    %1893 = vmatpush1.msra.mxu0 %v1892
    %v1894 = vand.u32 %v1695, 4294901760
    %v1895 = vsub.f32 %v1695, %v1894
    %v1896 = vand.u32 %v1895, 4294901760
    %v1897 = vsub.f32 %v1895, %v1896
    %v1898 = vand.u32 %v1897, 4294901760
    %1899 = vmatprep.subr.mxu0 %v1898
    %v1900 = vand.u32 %v1694, 4294901760
    %v1901 = vsub.f32 %v1694, %v1900
    %v1902 = vand.u32 %v1901, 4294901760
    %v1903 = vsub.f32 %v1901, %v1902
    %v1904 = vand.u32 %v1903, 4294901760
    %1905 = vmatpush1.msra.mxu0 %v1904
    %v1906 = vand.u32 %v1691, 4294901760
    %v1907 = vsub.f32 %v1691, %v1906
    %v1908 = vand.u32 %v1907, 4294901760
    %v1909 = vsub.f32 %v1907, %v1908
    %v1910 = vand.u32 %v1909, 4294901760
    %1911 = vmatprep.subr.mxu0 %v1910
    %v1912 = vand.u32 %v1690, 4294901760
    %v1913 = vsub.f32 %v1690, %v1912
    %v1914 = vand.u32 %v1913, 4294901760
    %v1915 = vsub.f32 %v1913, %v1914
    %v1916 = vand.u32 %v1915, 4294901760
    %1917 = vmatpush1.msra.mxu0 %v1916
    %v1918 = vand.u32 %v1687, 4294901760
    %v1919 = vsub.f32 %v1687, %v1918
    %v1920 = vand.u32 %v1919, 4294901760
    %v1921 = vsub.f32 %v1919, %v1920
    %v1922 = vand.u32 %v1921, 4294901760
    %1923 = vmatprep.subr.mxu0 %v1922
    %v1924 = vand.u32 %v1686, 4294901760
    %v1925 = vsub.f32 %v1686, %v1924
    %v1926 = vand.u32 %v1925, 4294901760
    %v1927 = vsub.f32 %v1925, %v1926
    %v1928 = vand.u32 %v1927, 4294901760
    %1929 = vmatpush1.msra.mxu0 %v1928
    %v1930 = vand.u32 %v1683, 4294901760
    %v1931 = vsub.f32 %v1683, %v1930
    %v1932 = vand.u32 %v1931, 4294901760
    %v1933 = vsub.f32 %v1931, %v1932
    %v1934 = vand.u32 %v1933, 4294901760
    %1935 = vmatprep.subr.mxu0 %v1934
    %v1936 = vand.u32 %v1682, 4294901760
    %v1937 = vsub.f32 %v1682, %v1936
    %v1938 = vand.u32 %v1937, 4294901760
    %v1939 = vsub.f32 %v1937, %v1938
    %v1940 = vand.u32 %v1939, 4294901760
    %1941 = vmatpush1.msra.mxu0 %v1940
    %v1942 = vand.u32 %v1679, 4294901760
    %v1943 = vsub.f32 %v1679, %v1942
    %v1944 = vand.u32 %v1943, 4294901760
    %v1945 = vsub.f32 %v1943, %v1944
    %v1946 = vand.u32 %v1945, 4294901760
    %1947 = vmatprep.subr.mxu0 %v1946
    %v1948 = vand.u32 %v1678, 4294901760
    %v1949 = vsub.f32 %v1678, %v1948
    %v1950 = vand.u32 %v1949, 4294901760
    %v1951 = vsub.f32 %v1949, %v1950
    %v1952 = vand.u32 %v1951, 4294901760
    %1953 = vmatpush1.msra.mxu0 %v1952
    %v1954 = vand.u32 %v1675, 4294901760
    %v1955 = vsub.f32 %v1675, %v1954
    %v1956 = vand.u32 %v1955, 4294901760
    %v1957 = vsub.f32 %v1955, %v1956
    %v1958 = vand.u32 %v1957, 4294901760
    %1959 = vmatprep.subr.mxu0 %v1958
    %v1960 = vand.u32 %v1674, 4294901760
    %v1961 = vsub.f32 %v1674, %v1960
    %v1962 = vand.u32 %v1961, 4294901760
    %v1963 = vsub.f32 %v1961, %v1962
    %v1964 = vand.u32 %v1963, 4294901760
    %1965 = vmatpush1.msra.mxu0 %v1964
    %1966 = vmatprep.subr.mxu0 0.0
    %1967 = vmatpush2.msra.mxu0 0.0
    %1968 = vmatprep.subr.mxu0 0.0
    %1969 = vmatpush2.msra.mxu0 0.0
    %1970 = vmatprep.subr.mxu0 0.0
    %1971 = vmatpush2.msra.mxu0 0.0
    %1972 = vmatprep.subr.mxu0 0.0
    %1973 = vmatpush2.msra.mxu0 0.0
    %1974 = vmatprep.subr.mxu0 0.0
    %1975 = vmatpush2.msra.mxu0 0.0
    %1976 = vmatprep.subr.mxu0 0.0
    %1977 = vmatpush2.msra.mxu0 0.0
    %1978 = vmatprep.subr.mxu0 0.0
    %1979 = vmatpush2.msra.mxu0 0.0
    %1980 = vmatprep.subr.mxu0 0.0
    %1981 = vmatpush2.msra.mxu0 0.0
    %1982 = vmatprep.subr.mxu0 0.0
    %1983 = vmatpush2.msra.mxu0 0.0
    %1984 = vmatprep.subr.mxu0 0.0
    %1985 = vmatpush2.msra.mxu0 0.0
    %1986 = vmatprep.subr.mxu0 0.0
    %1987 = vmatpush2.msra.mxu0 0.0
    %1988 = vmatprep.subr.mxu0 0.0
    %1989 = vmatpush2.msra.mxu0 0.0
    %1990 = vmatprep.subr.mxu0 0.0
    %1991 = vmatpush2.msra.mxu0 0.0
    %1992 = vmatprep.subr.mxu0 0.0
    %1993 = vmatpush2.msra.mxu0 0.0
    %1994 = vmatprep.subr.mxu0 0.0
    %1995 = vmatpush2.msra.mxu0 0.0
    %1996 = vmatprep.subr.mxu0 0.0
    %1997 = vmatpush2.msra.mxu0 0.0
    %1998 = vmatprep.mubr.f32.mxu0 0.0
    %v1999 = vand.u32 %v1748, 4294901760
    %2000 = vmatmul.mubr.f32.gmra.mxu0 %v1999
    %v2001 = vpop.f32.mrf.mxu0
    %v2002 = vadd.f32 %v1840, %v2001
    %v2003 = vpop.f32.mrf.mxu0
    %v2004 = vadd.f32 %v1842, %v2003
    %2005 = vdwg.mxu0
    %2006 = vmatprep.subr.mxu0 0.0
    %2007 = vmatpush1.msra.mxu0 0.0
    %2008 = vmatprep.subr.mxu0 0.0
    %2009 = vmatpush1.msra.mxu0 0.0
    %2010 = vmatprep.subr.mxu0 0.0
    %2011 = vmatpush1.msra.mxu0 0.0
    %2012 = vmatprep.subr.mxu0 0.0
    %2013 = vmatpush1.msra.mxu0 0.0
    %2014 = vmatprep.subr.mxu0 0.0
    %2015 = vmatpush1.msra.mxu0 0.0
    %2016 = vmatprep.subr.mxu0 0.0
    %2017 = vmatpush1.msra.mxu0 0.0
    %2018 = vmatprep.subr.mxu0 0.0
    %2019 = vmatpush1.msra.mxu0 0.0
    %v2020 = vand.u32 %v1707, 4294901760
    %v2021 = vsub.f32 %v1707, %v2020
    %2022 = vmatprep.subr.mxu0 %v2021
    %v2023 = vand.u32 %v1706, 4294901760
    %v2024 = vsub.f32 %v1706, %v2023
    %2025 = vmatpush1.msra.mxu0 %v2024
    %v2026 = vand.u32 %v1703, 4294901760
    %v2027 = vsub.f32 %v1703, %v2026
    %2028 = vmatprep.subr.mxu0 %v2027
    %v2029 = vand.u32 %v1702, 4294901760
    %v2030 = vsub.f32 %v1702, %v2029
    %2031 = vmatpush1.msra.mxu0 %v2030
    %v2032 = vand.u32 %v1699, 4294901760
    %v2033 = vsub.f32 %v1699, %v2032
    %2034 = vmatprep.subr.mxu0 %v2033
    %v2035 = vand.u32 %v1698, 4294901760
    %v2036 = vsub.f32 %v1698, %v2035
    %2037 = vmatpush1.msra.mxu0 %v2036
    %v2038 = vand.u32 %v1695, 4294901760
    %v2039 = vsub.f32 %v1695, %v2038
    %2040 = vmatprep.subr.mxu0 %v2039
    %v2041 = vand.u32 %v1694, 4294901760
    %v2042 = vsub.f32 %v1694, %v2041
    %2043 = vmatpush1.msra.mxu0 %v2042
    %v2044 = vand.u32 %v1691, 4294901760
    %v2045 = vsub.f32 %v1691, %v2044
    %2046 = vmatprep.subr.mxu0 %v2045
    %v2047 = vand.u32 %v1690, 4294901760
    %v2048 = vsub.f32 %v1690, %v2047
    %2049 = vmatpush1.msra.mxu0 %v2048
    %v2050 = vand.u32 %v1687, 4294901760
    %v2051 = vsub.f32 %v1687, %v2050
    %2052 = vmatprep.subr.mxu0 %v2051
    %v2053 = vand.u32 %v1686, 4294901760
    %v2054 = vsub.f32 %v1686, %v2053
    %2055 = vmatpush1.msra.mxu0 %v2054
    %v2056 = vand.u32 %v1683, 4294901760
    %v2057 = vsub.f32 %v1683, %v2056
    %2058 = vmatprep.subr.mxu0 %v2057
    %v2059 = vand.u32 %v1682, 4294901760
    %v2060 = vsub.f32 %v1682, %v2059
    %2061 = vmatpush1.msra.mxu0 %v2060
    %v2062 = vand.u32 %v1679, 4294901760
    %v2063 = vsub.f32 %v1679, %v2062
    %2064 = vmatprep.subr.mxu0 %v2063
    %v2065 = vand.u32 %v1678, 4294901760
    %v2066 = vsub.f32 %v1678, %v2065
    %2067 = vmatpush1.msra.mxu0 %v2066
    %v2068 = vand.u32 %v1675, 4294901760
    %v2069 = vsub.f32 %v1675, %v2068
    %2070 = vmatprep.subr.mxu0 %v2069
    %v2071 = vand.u32 %v1674, 4294901760
    %v2072 = vsub.f32 %v1674, %v2071
    %2073 = vmatpush1.msra.mxu0 %v2072
    %2074 = vmatprep.subr.mxu0 0.0
    %2075 = vmatpush2.msra.mxu0 0.0
    %2076 = vmatprep.subr.mxu0 0.0
    %2077 = vmatpush2.msra.mxu0 0.0
    %2078 = vmatprep.subr.mxu0 0.0
    %2079 = vmatpush2.msra.mxu0 0.0
    %2080 = vmatprep.subr.mxu0 0.0
    %2081 = vmatpush2.msra.mxu0 0.0
    %2082 = vmatprep.subr.mxu0 0.0
    %2083 = vmatpush2.msra.mxu0 0.0
    %2084 = vmatprep.subr.mxu0 0.0
    %2085 = vmatpush2.msra.mxu0 0.0
    %2086 = vmatprep.subr.mxu0 0.0
    %2087 = vmatpush2.msra.mxu0 0.0
    %2088 = vmatprep.subr.mxu0 0.0
    %2089 = vmatpush2.msra.mxu0 0.0
    %2090 = vmatprep.subr.mxu0 0.0
    %2091 = vmatpush2.msra.mxu0 0.0
    %2092 = vmatprep.subr.mxu0 0.0
    %2093 = vmatpush2.msra.mxu0 0.0
    %2094 = vmatprep.subr.mxu0 0.0
    %2095 = vmatpush2.msra.mxu0 0.0
    %2096 = vmatprep.subr.mxu0 0.0
    %2097 = vmatpush2.msra.mxu0 0.0
    %2098 = vmatprep.subr.mxu0 0.0
    %2099 = vmatpush2.msra.mxu0 0.0
    %2100 = vmatprep.subr.mxu0 0.0
    %2101 = vmatpush2.msra.mxu0 0.0
    %2102 = vmatprep.subr.mxu0 0.0
    %2103 = vmatpush2.msra.mxu0 0.0
    %2104 = vmatprep.subr.mxu0 0.0
    %2105 = vmatpush2.msra.mxu0 0.0
    %2106 = vmatprep.mubr.f32.mxu0 0.0
    %v2107 = vand.u32 %v1748, 4294901760
    %v2108 = vsub.f32 %v1748, %v2107
    %2109 = vmatmul.mubr.f32.gmra.mxu0 %v2108
    %v2110 = vpop.f32.mrf.mxu0
    %v2111 = vadd.f32 %v2002, %v2110
    %v2112 = vpop.f32.mrf.mxu0
    %v2113 = vadd.f32 %v2004, %v2112
    %2114 = vdwg.mxu0
    %2115 = vmatprep.subr.mxu0 0.0
    %2116 = vmatpush1.msra.mxu0 0.0
    %2117 = vmatprep.subr.mxu0 0.0
    %2118 = vmatpush1.msra.mxu0 0.0
    %2119 = vmatprep.subr.mxu0 0.0
    %2120 = vmatpush1.msra.mxu0 0.0
    %2121 = vmatprep.subr.mxu0 0.0
    %2122 = vmatpush1.msra.mxu0 0.0
    %2123 = vmatprep.subr.mxu0 0.0
    %2124 = vmatpush1.msra.mxu0 0.0
    %2125 = vmatprep.subr.mxu0 0.0
    %2126 = vmatpush1.msra.mxu0 0.0
    %2127 = vmatprep.subr.mxu0 0.0
    %2128 = vmatpush1.msra.mxu0 0.0
    %v2129 = vand.u32 %v1707, 4294901760
    %2130 = vmatprep.subr.mxu0 %v2129
    %v2131 = vand.u32 %v1706, 4294901760
    %2132 = vmatpush1.msra.mxu0 %v2131
    %v2133 = vand.u32 %v1703, 4294901760
    %2134 = vmatprep.subr.mxu0 %v2133
    %v2135 = vand.u32 %v1702, 4294901760
    %2136 = vmatpush1.msra.mxu0 %v2135
    %v2137 = vand.u32 %v1699, 4294901760
    %2138 = vmatprep.subr.mxu0 %v2137
    %v2139 = vand.u32 %v1698, 4294901760
    %2140 = vmatpush1.msra.mxu0 %v2139
    %v2141 = vand.u32 %v1695, 4294901760
    %2142 = vmatprep.subr.mxu0 %v2141
    %v2143 = vand.u32 %v1694, 4294901760
    %2144 = vmatpush1.msra.mxu0 %v2143
    %v2145 = vand.u32 %v1691, 4294901760
    %2146 = vmatprep.subr.mxu0 %v2145
    %v2147 = vand.u32 %v1690, 4294901760
    %2148 = vmatpush1.msra.mxu0 %v2147
    %v2149 = vand.u32 %v1687, 4294901760
    %2150 = vmatprep.subr.mxu0 %v2149
    %v2151 = vand.u32 %v1686, 4294901760
    %2152 = vmatpush1.msra.mxu0 %v2151
    %v2153 = vand.u32 %v1683, 4294901760
    %2154 = vmatprep.subr.mxu0 %v2153
    %v2155 = vand.u32 %v1682, 4294901760
    %2156 = vmatpush1.msra.mxu0 %v2155
    %v2157 = vand.u32 %v1679, 4294901760
    %2158 = vmatprep.subr.mxu0 %v2157
    %v2159 = vand.u32 %v1678, 4294901760
    %2160 = vmatpush1.msra.mxu0 %v2159
    %v2161 = vand.u32 %v1675, 4294901760
    %2162 = vmatprep.subr.mxu0 %v2161
    %v2163 = vand.u32 %v1674, 4294901760
    %2164 = vmatpush1.msra.mxu0 %v2163
    %2165 = vmatprep.subr.mxu0 0.0
    %2166 = vmatpush2.msra.mxu0 0.0
    %2167 = vmatprep.subr.mxu0 0.0
    %2168 = vmatpush2.msra.mxu0 0.0
    %2169 = vmatprep.subr.mxu0 0.0
    %2170 = vmatpush2.msra.mxu0 0.0
    %2171 = vmatprep.subr.mxu0 0.0
    %2172 = vmatpush2.msra.mxu0 0.0
    %2173 = vmatprep.subr.mxu0 0.0
    %2174 = vmatpush2.msra.mxu0 0.0
    %2175 = vmatprep.subr.mxu0 0.0
    %2176 = vmatpush2.msra.mxu0 0.0
    %2177 = vmatprep.subr.mxu0 0.0
    %2178 = vmatpush2.msra.mxu0 0.0
    %2179 = vmatprep.subr.mxu0 0.0
    %2180 = vmatpush2.msra.mxu0 0.0
    %2181 = vmatprep.subr.mxu0 0.0
    %2182 = vmatpush2.msra.mxu0 0.0
    %2183 = vmatprep.subr.mxu0 0.0
    %2184 = vmatpush2.msra.mxu0 0.0
    %2185 = vmatprep.subr.mxu0 0.0
    %2186 = vmatpush2.msra.mxu0 0.0
    %2187 = vmatprep.subr.mxu0 0.0
    %2188 = vmatpush2.msra.mxu0 0.0
    %2189 = vmatprep.subr.mxu0 0.0
    %2190 = vmatpush2.msra.mxu0 0.0
    %2191 = vmatprep.subr.mxu0 0.0
    %2192 = vmatpush2.msra.mxu0 0.0
    %2193 = vmatprep.subr.mxu0 0.0
    %2194 = vmatpush2.msra.mxu0 0.0
    %2195 = vmatprep.subr.mxu0 0.0
    %2196 = vmatpush2.msra.mxu0 0.0
    %2197 = vmatprep.mubr.f32.mxu0 0.0
    %v2198 = vand.u32 %v1748, 4294901760
    %v2199 = vsub.f32 %v1748, %v2198
    %v2200 = vand.u32 %v2199, 4294901760
    %2201 = vmatmul.mubr.f32.gmra.mxu0 %v2200
    %v2202 = vpop.f32.mrf.mxu0
    %v2203 = vadd.f32 %v2111, %v2202
    %v2204 = vpop.f32.mrf.mxu0
    %v2205 = vadd.f32 %v2113, %v2204
    %2206 = vdwg.mxu0
    %2207 = vmatprep.subr.mxu0 0.0
    %2208 = vmatpush1.msra.mxu0 0.0
    %2209 = vmatprep.subr.mxu0 0.0
    %2210 = vmatpush1.msra.mxu0 0.0
    %2211 = vmatprep.subr.mxu0 0.0
    %2212 = vmatpush1.msra.mxu0 0.0
    %2213 = vmatprep.subr.mxu0 0.0
    %2214 = vmatpush1.msra.mxu0 0.0
    %2215 = vmatprep.subr.mxu0 0.0
    %2216 = vmatpush1.msra.mxu0 0.0
    %2217 = vmatprep.subr.mxu0 0.0
    %2218 = vmatpush1.msra.mxu0 0.0
    %2219 = vmatprep.subr.mxu0 0.0
    %2220 = vmatpush1.msra.mxu0 0.0
    %v2221 = vand.u32 %v1707, 4294901760
    %v2222 = vsub.f32 %v1707, %v2221
    %v2223 = vand.u32 %v2222, 4294901760
    %2224 = vmatprep.subr.mxu0 %v2223
    %v2225 = vand.u32 %v1706, 4294901760
    %v2226 = vsub.f32 %v1706, %v2225
    %v2227 = vand.u32 %v2226, 4294901760
    %2228 = vmatpush1.msra.mxu0 %v2227
    %v2229 = vand.u32 %v1703, 4294901760
    %v2230 = vsub.f32 %v1703, %v2229
    %v2231 = vand.u32 %v2230, 4294901760
    %2232 = vmatprep.subr.mxu0 %v2231
    %v2233 = vand.u32 %v1702, 4294901760
    %v2234 = vsub.f32 %v1702, %v2233
    %v2235 = vand.u32 %v2234, 4294901760
    %2236 = vmatpush1.msra.mxu0 %v2235
    %v2237 = vand.u32 %v1699, 4294901760
    %v2238 = vsub.f32 %v1699, %v2237
    %v2239 = vand.u32 %v2238, 4294901760
    %2240 = vmatprep.subr.mxu0 %v2239
    %v2241 = vand.u32 %v1698, 4294901760
    %v2242 = vsub.f32 %v1698, %v2241
    %v2243 = vand.u32 %v2242, 4294901760
    %2244 = vmatpush1.msra.mxu0 %v2243
    %v2245 = vand.u32 %v1695, 4294901760
    %v2246 = vsub.f32 %v1695, %v2245
    %v2247 = vand.u32 %v2246, 4294901760
    %2248 = vmatprep.subr.mxu0 %v2247
    %v2249 = vand.u32 %v1694, 4294901760
    %v2250 = vsub.f32 %v1694, %v2249
    %v2251 = vand.u32 %v2250, 4294901760
    %2252 = vmatpush1.msra.mxu0 %v2251
    %v2253 = vand.u32 %v1691, 4294901760
    %v2254 = vsub.f32 %v1691, %v2253
    %v2255 = vand.u32 %v2254, 4294901760
    %2256 = vmatprep.subr.mxu0 %v2255
    %v2257 = vand.u32 %v1690, 4294901760
    %v2258 = vsub.f32 %v1690, %v2257
    %v2259 = vand.u32 %v2258, 4294901760
    %2260 = vmatpush1.msra.mxu0 %v2259
    %v2261 = vand.u32 %v1687, 4294901760
    %v2262 = vsub.f32 %v1687, %v2261
    %v2263 = vand.u32 %v2262, 4294901760
    %2264 = vmatprep.subr.mxu0 %v2263
    %v2265 = vand.u32 %v1686, 4294901760
    %v2266 = vsub.f32 %v1686, %v2265
    %v2267 = vand.u32 %v2266, 4294901760
    %2268 = vmatpush1.msra.mxu0 %v2267
    %v2269 = vand.u32 %v1683, 4294901760
    %v2270 = vsub.f32 %v1683, %v2269
    %v2271 = vand.u32 %v2270, 4294901760
    %2272 = vmatprep.subr.mxu0 %v2271
    %v2273 = vand.u32 %v1682, 4294901760
    %v2274 = vsub.f32 %v1682, %v2273
    %v2275 = vand.u32 %v2274, 4294901760
    %2276 = vmatpush1.msra.mxu0 %v2275
    %v2277 = vand.u32 %v1679, 4294901760
    %v2278 = vsub.f32 %v1679, %v2277
    %v2279 = vand.u32 %v2278, 4294901760
    %2280 = vmatprep.subr.mxu0 %v2279
    %v2281 = vand.u32 %v1678, 4294901760
    %v2282 = vsub.f32 %v1678, %v2281
    %v2283 = vand.u32 %v2282, 4294901760
    %2284 = vmatpush1.msra.mxu0 %v2283
    %v2285 = vand.u32 %v1675, 4294901760
    %v2286 = vsub.f32 %v1675, %v2285
    %v2287 = vand.u32 %v2286, 4294901760
    %2288 = vmatprep.subr.mxu0 %v2287
    %v2289 = vand.u32 %v1674, 4294901760
    %v2290 = vsub.f32 %v1674, %v2289
    %v2291 = vand.u32 %v2290, 4294901760
    %2292 = vmatpush1.msra.mxu0 %v2291
    %2293 = vmatprep.subr.mxu0 0.0
    %2294 = vmatpush2.msra.mxu0 0.0
    %2295 = vmatprep.subr.mxu0 0.0
    %2296 = vmatpush2.msra.mxu0 0.0
    %2297 = vmatprep.subr.mxu0 0.0
    %2298 = vmatpush2.msra.mxu0 0.0
    %2299 = vmatprep.subr.mxu0 0.0
    %2300 = vmatpush2.msra.mxu0 0.0
    %2301 = vmatprep.subr.mxu0 0.0
    %2302 = vmatpush2.msra.mxu0 0.0
    %2303 = vmatprep.subr.mxu0 0.0
    %2304 = vmatpush2.msra.mxu0 0.0
    %2305 = vmatprep.subr.mxu0 0.0
    %2306 = vmatpush2.msra.mxu0 0.0
    %2307 = vmatprep.subr.mxu0 0.0
    %2308 = vmatpush2.msra.mxu0 0.0
    %2309 = vmatprep.subr.mxu0 0.0
    %2310 = vmatpush2.msra.mxu0 0.0
    %2311 = vmatprep.subr.mxu0 0.0
    %2312 = vmatpush2.msra.mxu0 0.0
    %2313 = vmatprep.subr.mxu0 0.0
    %2314 = vmatpush2.msra.mxu0 0.0
    %2315 = vmatprep.subr.mxu0 0.0
    %2316 = vmatpush2.msra.mxu0 0.0
    %2317 = vmatprep.subr.mxu0 0.0
    %2318 = vmatpush2.msra.mxu0 0.0
    %2319 = vmatprep.subr.mxu0 0.0
    %2320 = vmatpush2.msra.mxu0 0.0
    %2321 = vmatprep.subr.mxu0 0.0
    %2322 = vmatpush2.msra.mxu0 0.0
    %2323 = vmatprep.subr.mxu0 0.0
    %2324 = vmatpush2.msra.mxu0 0.0
    %2325 = vmatprep.mubr.f32.mxu0 0.0
    %v2326 = vand.u32 %v1748, 4294901760
    %2327 = vmatmul.mubr.f32.gmra.mxu0 %v2326
    %v2328 = vpop.f32.mrf.mxu0
    %v2329 = vadd.f32 %v2203, %v2328
    %v2330 = vpop.f32.mrf.mxu0
    %v2331 = vadd.f32 %v2205, %v2330
    %2332 = vdwg.mxu0
    %2333 = vmatprep.subr.mxu0 0.0
    %2334 = vmatpush1.msra.mxu0 0.0
    %2335 = vmatprep.subr.mxu0 0.0
    %2336 = vmatpush1.msra.mxu0 0.0
    %2337 = vmatprep.subr.mxu0 0.0
    %2338 = vmatpush1.msra.mxu0 0.0
    %2339 = vmatprep.subr.mxu0 0.0
    %2340 = vmatpush1.msra.mxu0 0.0
    %2341 = vmatprep.subr.mxu0 0.0
    %2342 = vmatpush1.msra.mxu0 0.0
    %2343 = vmatprep.subr.mxu0 0.0
    %2344 = vmatpush1.msra.mxu0 0.0
    %2345 = vmatprep.subr.mxu0 0.0
    %2346 = vmatpush1.msra.mxu0 0.0
    %v2347 = vand.u32 %v1707, 4294901760
    %2348 = vmatprep.subr.mxu0 %v2347
    %v2349 = vand.u32 %v1706, 4294901760
    %2350 = vmatpush1.msra.mxu0 %v2349
    %v2351 = vand.u32 %v1703, 4294901760
    %2352 = vmatprep.subr.mxu0 %v2351
    %v2353 = vand.u32 %v1702, 4294901760
    %2354 = vmatpush1.msra.mxu0 %v2353
    %v2355 = vand.u32 %v1699, 4294901760
    %2356 = vmatprep.subr.mxu0 %v2355
    %v2357 = vand.u32 %v1698, 4294901760
    %2358 = vmatpush1.msra.mxu0 %v2357
    %v2359 = vand.u32 %v1695, 4294901760
    %2360 = vmatprep.subr.mxu0 %v2359
    %v2361 = vand.u32 %v1694, 4294901760
    %2362 = vmatpush1.msra.mxu0 %v2361
    %v2363 = vand.u32 %v1691, 4294901760
    %2364 = vmatprep.subr.mxu0 %v2363
    %v2365 = vand.u32 %v1690, 4294901760
    %2366 = vmatpush1.msra.mxu0 %v2365
    %v2367 = vand.u32 %v1687, 4294901760
    %2368 = vmatprep.subr.mxu0 %v2367
    %v2369 = vand.u32 %v1686, 4294901760
    %2370 = vmatpush1.msra.mxu0 %v2369
    %v2371 = vand.u32 %v1683, 4294901760
    %2372 = vmatprep.subr.mxu0 %v2371
    %v2373 = vand.u32 %v1682, 4294901760
    %2374 = vmatpush1.msra.mxu0 %v2373
    %v2375 = vand.u32 %v1679, 4294901760
    %2376 = vmatprep.subr.mxu0 %v2375
    %v2377 = vand.u32 %v1678, 4294901760
    %2378 = vmatpush1.msra.mxu0 %v2377
    %v2379 = vand.u32 %v1675, 4294901760
    %2380 = vmatprep.subr.mxu0 %v2379
    %v2381 = vand.u32 %v1674, 4294901760
    %2382 = vmatpush1.msra.mxu0 %v2381
    %2383 = vmatprep.subr.mxu0 0.0
    %2384 = vmatpush2.msra.mxu0 0.0
    %2385 = vmatprep.subr.mxu0 0.0
    %2386 = vmatpush2.msra.mxu0 0.0
    %2387 = vmatprep.subr.mxu0 0.0
    %2388 = vmatpush2.msra.mxu0 0.0
    %2389 = vmatprep.subr.mxu0 0.0
    %2390 = vmatpush2.msra.mxu0 0.0
    %2391 = vmatprep.subr.mxu0 0.0
    %2392 = vmatpush2.msra.mxu0 0.0
    %2393 = vmatprep.subr.mxu0 0.0
    %2394 = vmatpush2.msra.mxu0 0.0
    %2395 = vmatprep.subr.mxu0 0.0
    %2396 = vmatpush2.msra.mxu0 0.0
    %2397 = vmatprep.subr.mxu0 0.0
    %2398 = vmatpush2.msra.mxu0 0.0
    %2399 = vmatprep.subr.mxu0 0.0
    %2400 = vmatpush2.msra.mxu0 0.0
    %2401 = vmatprep.subr.mxu0 0.0
    %2402 = vmatpush2.msra.mxu0 0.0
    %2403 = vmatprep.subr.mxu0 0.0
    %2404 = vmatpush2.msra.mxu0 0.0
    %2405 = vmatprep.subr.mxu0 0.0
    %2406 = vmatpush2.msra.mxu0 0.0
    %2407 = vmatprep.subr.mxu0 0.0
    %2408 = vmatpush2.msra.mxu0 0.0
    %2409 = vmatprep.subr.mxu0 0.0
    %2410 = vmatpush2.msra.mxu0 0.0
    %2411 = vmatprep.subr.mxu0 0.0
    %2412 = vmatpush2.msra.mxu0 0.0
    %2413 = vmatprep.subr.mxu0 0.0
    %2414 = vmatpush2.msra.mxu0 0.0
    %2415 = vmatprep.mubr.f32.mxu0 0.0
    %v2416 = vand.u32 %v1748, 4294901760
    %2417 = vmatmul.mubr.f32.gmra.mxu0 %v2416
    %v2418 = vpop.f32.mrf.mxu0
    %v2419 = vadd.f32 %v2329, %v2418
    %v2420 = vpop.f32.mrf.mxu0
    %v2421 = vadd.f32 %v2331, %v2420
    %2422 = vdwg.mxu0
    %2423 = vmatprep.subr.mxu0 0.0
    %2424 = vmatpush1.msra.mxu0 0.0
    %2425 = vmatprep.subr.mxu0 0.0
    %2426 = vmatpush1.msra.mxu0 0.0
    %2427 = vmatprep.subr.mxu0 0.0
    %2428 = vmatpush1.msra.mxu0 0.0
    %2429 = vmatprep.subr.mxu0 0.0
    %2430 = vmatpush1.msra.mxu0 0.0
    %2431 = vmatprep.subr.mxu0 0.0
    %2432 = vmatpush1.msra.mxu0 0.0
    %2433 = vmatprep.subr.mxu0 0.0
    %2434 = vmatpush1.msra.mxu0 0.0
    %2435 = vmatprep.subr.mxu0 0.0
    %2436 = vmatpush1.msra.mxu0 0.0
    %v2437 = vand.u32 %v1709, 4294901760
    %2438 = vmatprep.subr.mxu0 %v2437
    %v2439 = vand.u32 %v1708, 4294901760
    %2440 = vmatpush1.msra.mxu0 %v2439
    %v2441 = vand.u32 %v1705, 4294901760
    %2442 = vmatprep.subr.mxu0 %v2441
    %v2443 = vand.u32 %v1704, 4294901760
    %2444 = vmatpush1.msra.mxu0 %v2443
    %v2445 = vand.u32 %v1701, 4294901760
    %2446 = vmatprep.subr.mxu0 %v2445
    %v2447 = vand.u32 %v1700, 4294901760
    %2448 = vmatpush1.msra.mxu0 %v2447
    %v2449 = vand.u32 %v1697, 4294901760
    %2450 = vmatprep.subr.mxu0 %v2449
    %v2451 = vand.u32 %v1696, 4294901760
    %2452 = vmatpush1.msra.mxu0 %v2451
    %v2453 = vand.u32 %v1693, 4294901760
    %2454 = vmatprep.subr.mxu0 %v2453
    %v2455 = vand.u32 %v1692, 4294901760
    %2456 = vmatpush1.msra.mxu0 %v2455
    %v2457 = vand.u32 %v1689, 4294901760
    %2458 = vmatprep.subr.mxu0 %v2457
    %v2459 = vand.u32 %v1688, 4294901760
    %2460 = vmatpush1.msra.mxu0 %v2459
    %v2461 = vand.u32 %v1685, 4294901760
    %2462 = vmatprep.subr.mxu0 %v2461
    %v2463 = vand.u32 %v1684, 4294901760
    %2464 = vmatpush1.msra.mxu0 %v2463
    %v2465 = vand.u32 %v1681, 4294901760
    %2466 = vmatprep.subr.mxu0 %v2465
    %v2467 = vand.u32 %v1680, 4294901760
    %2468 = vmatpush1.msra.mxu0 %v2467
    %v2469 = vand.u32 %v1677, 4294901760
    %2470 = vmatprep.subr.mxu0 %v2469
    %v2471 = vand.u32 %v1676, 4294901760
    %2472 = vmatpush1.msra.mxu0 %v2471
    %2473 = vmatprep.subr.mxu0 0.0
    %2474 = vmatpush2.msra.mxu0 0.0
    %2475 = vmatprep.subr.mxu0 0.0
    %2476 = vmatpush2.msra.mxu0 0.0
    %2477 = vmatprep.subr.mxu0 0.0
    %2478 = vmatpush2.msra.mxu0 0.0
    %2479 = vmatprep.subr.mxu0 0.0
    %2480 = vmatpush2.msra.mxu0 0.0
    %2481 = vmatprep.subr.mxu0 0.0
    %2482 = vmatpush2.msra.mxu0 0.0
    %2483 = vmatprep.subr.mxu0 0.0
    %2484 = vmatpush2.msra.mxu0 0.0
    %2485 = vmatprep.subr.mxu0 0.0
    %2486 = vmatpush2.msra.mxu0 0.0
    %2487 = vmatprep.subr.mxu0 0.0
    %2488 = vmatpush2.msra.mxu0 0.0
    %2489 = vmatprep.subr.mxu0 0.0
    %2490 = vmatpush2.msra.mxu0 0.0
    %2491 = vmatprep.subr.mxu0 0.0
    %2492 = vmatpush2.msra.mxu0 0.0
    %2493 = vmatprep.subr.mxu0 0.0
    %2494 = vmatpush2.msra.mxu0 0.0
    %2495 = vmatprep.subr.mxu0 0.0
    %2496 = vmatpush2.msra.mxu0 0.0
    %2497 = vmatprep.subr.mxu0 0.0
    %2498 = vmatpush2.msra.mxu0 0.0
    %2499 = vmatprep.subr.mxu0 0.0
    %2500 = vmatpush2.msra.mxu0 0.0
    %2501 = vmatprep.subr.mxu0 0.0
    %2502 = vmatpush2.msra.mxu0 0.0
    %2503 = vmatprep.subr.mxu0 0.0
    %2504 = vmatpush2.msra.mxu0 0.0
    %2505 = vmatprep.mubr.f32.mxu0 0.0
    %v2506 = vand.u32 %v1748, 4294901760
    %v2507 = vsub.f32 %v1748, %v2506
    %v2508 = vand.u32 %v2507, 4294901760
    %v2509 = vsub.f32 %v2507, %v2508
    %v2510 = vand.u32 %v2509, 4294901760
    %2511 = vmatmul.mubr.f32.gmra.mxu0 %v2510
    %v2512 = vpop.f32.mrf.mxu0
    %v2513 = vadd.f32 %v1536, %v2512
    %v2514 = vpop.f32.mrf.mxu0
    %v2515 = vadd.f32 %v1536, %v2514
    %2516 = vdwg.mxu0
    %2517 = vmatprep.subr.mxu0 0.0
    %2518 = vmatpush1.msra.mxu0 0.0
    %2519 = vmatprep.subr.mxu0 0.0
    %2520 = vmatpush1.msra.mxu0 0.0
    %2521 = vmatprep.subr.mxu0 0.0
    %2522 = vmatpush1.msra.mxu0 0.0
    %2523 = vmatprep.subr.mxu0 0.0
    %2524 = vmatpush1.msra.mxu0 0.0
    %2525 = vmatprep.subr.mxu0 0.0
    %2526 = vmatpush1.msra.mxu0 0.0
    %2527 = vmatprep.subr.mxu0 0.0
    %2528 = vmatpush1.msra.mxu0 0.0
    %2529 = vmatprep.subr.mxu0 0.0
    %2530 = vmatpush1.msra.mxu0 0.0
    %v2531 = vand.u32 %v1709, 4294901760
    %v2532 = vsub.f32 %v1709, %v2531
    %v2533 = vand.u32 %v2532, 4294901760
    %v2534 = vsub.f32 %v2532, %v2533
    %v2535 = vand.u32 %v2534, 4294901760
    %2536 = vmatprep.subr.mxu0 %v2535
    %v2537 = vand.u32 %v1708, 4294901760
    %v2538 = vsub.f32 %v1708, %v2537
    %v2539 = vand.u32 %v2538, 4294901760
    %v2540 = vsub.f32 %v2538, %v2539
    %v2541 = vand.u32 %v2540, 4294901760
    %2542 = vmatpush1.msra.mxu0 %v2541
    %v2543 = vand.u32 %v1705, 4294901760
    %v2544 = vsub.f32 %v1705, %v2543
    %v2545 = vand.u32 %v2544, 4294901760
    %v2546 = vsub.f32 %v2544, %v2545
    %v2547 = vand.u32 %v2546, 4294901760
    %2548 = vmatprep.subr.mxu0 %v2547
    %v2549 = vand.u32 %v1704, 4294901760
    %v2550 = vsub.f32 %v1704, %v2549
    %v2551 = vand.u32 %v2550, 4294901760
    %v2552 = vsub.f32 %v2550, %v2551
    %v2553 = vand.u32 %v2552, 4294901760
    %2554 = vmatpush1.msra.mxu0 %v2553
    %v2555 = vand.u32 %v1701, 4294901760
    %v2556 = vsub.f32 %v1701, %v2555
    %v2557 = vand.u32 %v2556, 4294901760
    %v2558 = vsub.f32 %v2556, %v2557
    %v2559 = vand.u32 %v2558, 4294901760
    %2560 = vmatprep.subr.mxu0 %v2559
    %v2561 = vand.u32 %v1700, 4294901760
    %v2562 = vsub.f32 %v1700, %v2561
    %v2563 = vand.u32 %v2562, 4294901760
    %v2564 = vsub.f32 %v2562, %v2563
    %v2565 = vand.u32 %v2564, 4294901760
    %2566 = vmatpush1.msra.mxu0 %v2565
    %v2567 = vand.u32 %v1697, 4294901760
    %v2568 = vsub.f32 %v1697, %v2567
    %v2569 = vand.u32 %v2568, 4294901760
    %v2570 = vsub.f32 %v2568, %v2569
    %v2571 = vand.u32 %v2570, 4294901760
    %2572 = vmatprep.subr.mxu0 %v2571
    %v2573 = vand.u32 %v1696, 4294901760
    %v2574 = vsub.f32 %v1696, %v2573
    %v2575 = vand.u32 %v2574, 4294901760
    %v2576 = vsub.f32 %v2574, %v2575
    %v2577 = vand.u32 %v2576, 4294901760
    %2578 = vmatpush1.msra.mxu0 %v2577
    %v2579 = vand.u32 %v1693, 4294901760
    %v2580 = vsub.f32 %v1693, %v2579
    %v2581 = vand.u32 %v2580, 4294901760
    %v2582 = vsub.f32 %v2580, %v2581
    %v2583 = vand.u32 %v2582, 4294901760
    %2584 = vmatprep.subr.mxu0 %v2583
    %v2585 = vand.u32 %v1692, 4294901760
    %v2586 = vsub.f32 %v1692, %v2585
    %v2587 = vand.u32 %v2586, 4294901760
    %v2588 = vsub.f32 %v2586, %v2587
    %v2589 = vand.u32 %v2588, 4294901760
    %2590 = vmatpush1.msra.mxu0 %v2589
    %v2591 = vand.u32 %v1689, 4294901760
    %v2592 = vsub.f32 %v1689, %v2591
    %v2593 = vand.u32 %v2592, 4294901760
    %v2594 = vsub.f32 %v2592, %v2593
    %v2595 = vand.u32 %v2594, 4294901760
    %2596 = vmatprep.subr.mxu0 %v2595
    %v2597 = vand.u32 %v1688, 4294901760
    %v2598 = vsub.f32 %v1688, %v2597
    %v2599 = vand.u32 %v2598, 4294901760
    %v2600 = vsub.f32 %v2598, %v2599
    %v2601 = vand.u32 %v2600, 4294901760
    %2602 = vmatpush1.msra.mxu0 %v2601
    %v2603 = vand.u32 %v1685, 4294901760
    %v2604 = vsub.f32 %v1685, %v2603
    %v2605 = vand.u32 %v2604, 4294901760
    %v2606 = vsub.f32 %v2604, %v2605
    %v2607 = vand.u32 %v2606, 4294901760
    %2608 = vmatprep.subr.mxu0 %v2607
    %v2609 = vand.u32 %v1684, 4294901760
    %v2610 = vsub.f32 %v1684, %v2609
    %v2611 = vand.u32 %v2610, 4294901760
    %v2612 = vsub.f32 %v2610, %v2611
    %v2613 = vand.u32 %v2612, 4294901760
    %2614 = vmatpush1.msra.mxu0 %v2613
    %v2615 = vand.u32 %v1681, 4294901760
    %v2616 = vsub.f32 %v1681, %v2615
    %v2617 = vand.u32 %v2616, 4294901760
    %v2618 = vsub.f32 %v2616, %v2617
    %v2619 = vand.u32 %v2618, 4294901760
    %2620 = vmatprep.subr.mxu0 %v2619
    %v2621 = vand.u32 %v1680, 4294901760
    %v2622 = vsub.f32 %v1680, %v2621
    %v2623 = vand.u32 %v2622, 4294901760
    %v2624 = vsub.f32 %v2622, %v2623
    %v2625 = vand.u32 %v2624, 4294901760
    %2626 = vmatpush1.msra.mxu0 %v2625
    %v2627 = vand.u32 %v1677, 4294901760
    %v2628 = vsub.f32 %v1677, %v2627
    %v2629 = vand.u32 %v2628, 4294901760
    %v2630 = vsub.f32 %v2628, %v2629
    %v2631 = vand.u32 %v2630, 4294901760
    %2632 = vmatprep.subr.mxu0 %v2631
    %v2633 = vand.u32 %v1676, 4294901760
    %v2634 = vsub.f32 %v1676, %v2633
    %v2635 = vand.u32 %v2634, 4294901760
    %v2636 = vsub.f32 %v2634, %v2635
    %v2637 = vand.u32 %v2636, 4294901760
    %2638 = vmatpush1.msra.mxu0 %v2637
    %2639 = vmatprep.subr.mxu0 0.0
    %2640 = vmatpush2.msra.mxu0 0.0
    %2641 = vmatprep.subr.mxu0 0.0
    %2642 = vmatpush2.msra.mxu0 0.0
    %2643 = vmatprep.subr.mxu0 0.0
    %2644 = vmatpush2.msra.mxu0 0.0
    %2645 = vmatprep.subr.mxu0 0.0
    %2646 = vmatpush2.msra.mxu0 0.0
    %2647 = vmatprep.subr.mxu0 0.0
    %2648 = vmatpush2.msra.mxu0 0.0
    %2649 = vmatprep.subr.mxu0 0.0
    %2650 = vmatpush2.msra.mxu0 0.0
    %2651 = vmatprep.subr.mxu0 0.0
    %2652 = vmatpush2.msra.mxu0 0.0
    %2653 = vmatprep.subr.mxu0 0.0
    %2654 = vmatpush2.msra.mxu0 0.0
    %2655 = vmatprep.subr.mxu0 0.0
    %2656 = vmatpush2.msra.mxu0 0.0
    %2657 = vmatprep.subr.mxu0 0.0
    %2658 = vmatpush2.msra.mxu0 0.0
    %2659 = vmatprep.subr.mxu0 0.0
    %2660 = vmatpush2.msra.mxu0 0.0
    %2661 = vmatprep.subr.mxu0 0.0
    %2662 = vmatpush2.msra.mxu0 0.0
    %2663 = vmatprep.subr.mxu0 0.0
    %2664 = vmatpush2.msra.mxu0 0.0
    %2665 = vmatprep.subr.mxu0 0.0
    %2666 = vmatpush2.msra.mxu0 0.0
    %2667 = vmatprep.subr.mxu0 0.0
    %2668 = vmatpush2.msra.mxu0 0.0
    %2669 = vmatprep.subr.mxu0 0.0
    %2670 = vmatpush2.msra.mxu0 0.0
    %2671 = vmatprep.mubr.f32.mxu0 0.0
    %v2672 = vand.u32 %v1748, 4294901760
    %2673 = vmatmul.mubr.f32.gmra.mxu0 %v2672
    %v2674 = vpop.f32.mrf.mxu0
    %v2675 = vadd.f32 %v2513, %v2674
    %v2676 = vpop.f32.mrf.mxu0
    %v2677 = vadd.f32 %v2515, %v2676
    %2678 = vdwg.mxu0
    %2679 = vmatprep.subr.mxu0 0.0
    %2680 = vmatpush1.msra.mxu0 0.0
    %2681 = vmatprep.subr.mxu0 0.0
    %2682 = vmatpush1.msra.mxu0 0.0
    %2683 = vmatprep.subr.mxu0 0.0
    %2684 = vmatpush1.msra.mxu0 0.0
    %2685 = vmatprep.subr.mxu0 0.0
    %2686 = vmatpush1.msra.mxu0 0.0
    %2687 = vmatprep.subr.mxu0 0.0
    %2688 = vmatpush1.msra.mxu0 0.0
    %2689 = vmatprep.subr.mxu0 0.0
    %2690 = vmatpush1.msra.mxu0 0.0
    %2691 = vmatprep.subr.mxu0 0.0
    %2692 = vmatpush1.msra.mxu0 0.0
    %v2693 = vand.u32 %v1709, 4294901760
    %v2694 = vsub.f32 %v1709, %v2693
    %2695 = vmatprep.subr.mxu0 %v2694
    %v2696 = vand.u32 %v1708, 4294901760
    %v2697 = vsub.f32 %v1708, %v2696
    %2698 = vmatpush1.msra.mxu0 %v2697
    %v2699 = vand.u32 %v1705, 4294901760
    %v2700 = vsub.f32 %v1705, %v2699
    %2701 = vmatprep.subr.mxu0 %v2700
    %v2702 = vand.u32 %v1704, 4294901760
    %v2703 = vsub.f32 %v1704, %v2702
    %2704 = vmatpush1.msra.mxu0 %v2703
    %v2705 = vand.u32 %v1701, 4294901760
    %v2706 = vsub.f32 %v1701, %v2705
    %2707 = vmatprep.subr.mxu0 %v2706
    %v2708 = vand.u32 %v1700, 4294901760
    %v2709 = vsub.f32 %v1700, %v2708
    %2710 = vmatpush1.msra.mxu0 %v2709
    %v2711 = vand.u32 %v1697, 4294901760
    %v2712 = vsub.f32 %v1697, %v2711
    %2713 = vmatprep.subr.mxu0 %v2712
    %v2714 = vand.u32 %v1696, 4294901760
    %v2715 = vsub.f32 %v1696, %v2714
    %2716 = vmatpush1.msra.mxu0 %v2715
    %v2717 = vand.u32 %v1693, 4294901760
    %v2718 = vsub.f32 %v1693, %v2717
    %2719 = vmatprep.subr.mxu0 %v2718
    %v2720 = vand.u32 %v1692, 4294901760
    %v2721 = vsub.f32 %v1692, %v2720
    %2722 = vmatpush1.msra.mxu0 %v2721
    %v2723 = vand.u32 %v1689, 4294901760
    %v2724 = vsub.f32 %v1689, %v2723
    %2725 = vmatprep.subr.mxu0 %v2724
    %v2726 = vand.u32 %v1688, 4294901760
    %v2727 = vsub.f32 %v1688, %v2726
    %2728 = vmatpush1.msra.mxu0 %v2727
    %v2729 = vand.u32 %v1685, 4294901760
    %v2730 = vsub.f32 %v1685, %v2729
    %2731 = vmatprep.subr.mxu0 %v2730
    %v2732 = vand.u32 %v1684, 4294901760
    %v2733 = vsub.f32 %v1684, %v2732
    %2734 = vmatpush1.msra.mxu0 %v2733
    %v2735 = vand.u32 %v1681, 4294901760
    %v2736 = vsub.f32 %v1681, %v2735
    %2737 = vmatprep.subr.mxu0 %v2736
    %v2738 = vand.u32 %v1680, 4294901760
    %v2739 = vsub.f32 %v1680, %v2738
    %2740 = vmatpush1.msra.mxu0 %v2739
    %v2741 = vand.u32 %v1677, 4294901760
    %v2742 = vsub.f32 %v1677, %v2741
    %2743 = vmatprep.subr.mxu0 %v2742
    %v2744 = vand.u32 %v1676, 4294901760
    %v2745 = vsub.f32 %v1676, %v2744
    %2746 = vmatpush1.msra.mxu0 %v2745
    %2747 = vmatprep.subr.mxu0 0.0
    %2748 = vmatpush2.msra.mxu0 0.0
    %2749 = vmatprep.subr.mxu0 0.0
    %2750 = vmatpush2.msra.mxu0 0.0
    %2751 = vmatprep.subr.mxu0 0.0
    %2752 = vmatpush2.msra.mxu0 0.0
    %2753 = vmatprep.subr.mxu0 0.0
    %2754 = vmatpush2.msra.mxu0 0.0
    %2755 = vmatprep.subr.mxu0 0.0
    %2756 = vmatpush2.msra.mxu0 0.0
    %2757 = vmatprep.subr.mxu0 0.0
    %2758 = vmatpush2.msra.mxu0 0.0
    %2759 = vmatprep.subr.mxu0 0.0
    %2760 = vmatpush2.msra.mxu0 0.0
    %2761 = vmatprep.subr.mxu0 0.0
    %2762 = vmatpush2.msra.mxu0 0.0
    %2763 = vmatprep.subr.mxu0 0.0
    %2764 = vmatpush2.msra.mxu0 0.0
    %2765 = vmatprep.subr.mxu0 0.0
    %2766 = vmatpush2.msra.mxu0 0.0
    %2767 = vmatprep.subr.mxu0 0.0
    %2768 = vmatpush2.msra.mxu0 0.0
    %2769 = vmatprep.subr.mxu0 0.0
    %2770 = vmatpush2.msra.mxu0 0.0
    %2771 = vmatprep.subr.mxu0 0.0
    %2772 = vmatpush2.msra.mxu0 0.0
    %2773 = vmatprep.subr.mxu0 0.0
    %2774 = vmatpush2.msra.mxu0 0.0
    %2775 = vmatprep.subr.mxu0 0.0
    %2776 = vmatpush2.msra.mxu0 0.0
    %2777 = vmatprep.subr.mxu0 0.0
    %2778 = vmatpush2.msra.mxu0 0.0
    %2779 = vmatprep.mubr.f32.mxu0 0.0
    %v2780 = vand.u32 %v1748, 4294901760
    %v2781 = vsub.f32 %v1748, %v2780
    %2782 = vmatmul.mubr.f32.gmra.mxu0 %v2781
    %v2783 = vpop.f32.mrf.mxu0
    %v2784 = vadd.f32 %v2675, %v2783
    %v2785 = vpop.f32.mrf.mxu0
    %v2786 = vadd.f32 %v2677, %v2785
    %2787 = vdwg.mxu0
    %2788 = vmatprep.subr.mxu0 0.0
    %2789 = vmatpush1.msra.mxu0 0.0
    %2790 = vmatprep.subr.mxu0 0.0
    %2791 = vmatpush1.msra.mxu0 0.0
    %2792 = vmatprep.subr.mxu0 0.0
    %2793 = vmatpush1.msra.mxu0 0.0
    %2794 = vmatprep.subr.mxu0 0.0
    %2795 = vmatpush1.msra.mxu0 0.0
    %2796 = vmatprep.subr.mxu0 0.0
    %2797 = vmatpush1.msra.mxu0 0.0
    %2798 = vmatprep.subr.mxu0 0.0
    %2799 = vmatpush1.msra.mxu0 0.0
    %2800 = vmatprep.subr.mxu0 0.0
    %2801 = vmatpush1.msra.mxu0 0.0
    %v2802 = vand.u32 %v1709, 4294901760
    %2803 = vmatprep.subr.mxu0 %v2802
    %v2804 = vand.u32 %v1708, 4294901760
    %2805 = vmatpush1.msra.mxu0 %v2804
    %v2806 = vand.u32 %v1705, 4294901760
    %2807 = vmatprep.subr.mxu0 %v2806
    %v2808 = vand.u32 %v1704, 4294901760
    %2809 = vmatpush1.msra.mxu0 %v2808
    %v2810 = vand.u32 %v1701, 4294901760
    %2811 = vmatprep.subr.mxu0 %v2810
    %v2812 = vand.u32 %v1700, 4294901760
    %2813 = vmatpush1.msra.mxu0 %v2812
    %v2814 = vand.u32 %v1697, 4294901760
    %2815 = vmatprep.subr.mxu0 %v2814
    %v2816 = vand.u32 %v1696, 4294901760
    %2817 = vmatpush1.msra.mxu0 %v2816
    %v2818 = vand.u32 %v1693, 4294901760
    %2819 = vmatprep.subr.mxu0 %v2818
    %v2820 = vand.u32 %v1692, 4294901760
    %2821 = vmatpush1.msra.mxu0 %v2820
    %v2822 = vand.u32 %v1689, 4294901760
    %2823 = vmatprep.subr.mxu0 %v2822
    %v2824 = vand.u32 %v1688, 4294901760
    %2825 = vmatpush1.msra.mxu0 %v2824
    %v2826 = vand.u32 %v1685, 4294901760
    %2827 = vmatprep.subr.mxu0 %v2826
    %v2828 = vand.u32 %v1684, 4294901760
    %2829 = vmatpush1.msra.mxu0 %v2828
    %v2830 = vand.u32 %v1681, 4294901760
    %2831 = vmatprep.subr.mxu0 %v2830
    %v2832 = vand.u32 %v1680, 4294901760
    %2833 = vmatpush1.msra.mxu0 %v2832
    %v2834 = vand.u32 %v1677, 4294901760
    %2835 = vmatprep.subr.mxu0 %v2834
    %v2836 = vand.u32 %v1676, 4294901760
    %2837 = vmatpush1.msra.mxu0 %v2836
    %2838 = vmatprep.subr.mxu0 0.0
    %2839 = vmatpush2.msra.mxu0 0.0
    %2840 = vmatprep.subr.mxu0 0.0
    %2841 = vmatpush2.msra.mxu0 0.0
    %2842 = vmatprep.subr.mxu0 0.0
    %2843 = vmatpush2.msra.mxu0 0.0
    %2844 = vmatprep.subr.mxu0 0.0
    %2845 = vmatpush2.msra.mxu0 0.0
    %2846 = vmatprep.subr.mxu0 0.0
    %2847 = vmatpush2.msra.mxu0 0.0
    %2848 = vmatprep.subr.mxu0 0.0
    %2849 = vmatpush2.msra.mxu0 0.0
    %2850 = vmatprep.subr.mxu0 0.0
    %2851 = vmatpush2.msra.mxu0 0.0
    %2852 = vmatprep.subr.mxu0 0.0
    %2853 = vmatpush2.msra.mxu0 0.0
    %2854 = vmatprep.subr.mxu0 0.0
    %2855 = vmatpush2.msra.mxu0 0.0
    %2856 = vmatprep.subr.mxu0 0.0
    %2857 = vmatpush2.msra.mxu0 0.0
    %2858 = vmatprep.subr.mxu0 0.0
    %2859 = vmatpush2.msra.mxu0 0.0
    %2860 = vmatprep.subr.mxu0 0.0
    %2861 = vmatpush2.msra.mxu0 0.0
    %2862 = vmatprep.subr.mxu0 0.0
    %2863 = vmatpush2.msra.mxu0 0.0
    %2864 = vmatprep.subr.mxu0 0.0
    %2865 = vmatpush2.msra.mxu0 0.0
    %2866 = vmatprep.subr.mxu0 0.0
    %2867 = vmatpush2.msra.mxu0 0.0
    %2868 = vmatprep.subr.mxu0 0.0
    %2869 = vmatpush2.msra.mxu0 0.0
    %2870 = vmatprep.mubr.f32.mxu0 0.0
    %v2871 = vand.u32 %v1748, 4294901760
    %v2872 = vsub.f32 %v1748, %v2871
    %v2873 = vand.u32 %v2872, 4294901760
    %2874 = vmatmul.mubr.f32.gmra.mxu0 %v2873
    %v2875 = vpop.f32.mrf.mxu0
    %v2876 = vadd.f32 %v2784, %v2875
    %v2877 = vpop.f32.mrf.mxu0
    %v2878 = vadd.f32 %v2786, %v2877
    %2879 = vdwg.mxu0
    %2880 = vmatprep.subr.mxu0 0.0
    %2881 = vmatpush1.msra.mxu0 0.0
    %2882 = vmatprep.subr.mxu0 0.0
    %2883 = vmatpush1.msra.mxu0 0.0
    %2884 = vmatprep.subr.mxu0 0.0
    %2885 = vmatpush1.msra.mxu0 0.0
    %2886 = vmatprep.subr.mxu0 0.0
    %2887 = vmatpush1.msra.mxu0 0.0
    %2888 = vmatprep.subr.mxu0 0.0
    %2889 = vmatpush1.msra.mxu0 0.0
    %2890 = vmatprep.subr.mxu0 0.0
    %2891 = vmatpush1.msra.mxu0 0.0
    %2892 = vmatprep.subr.mxu0 0.0
    %2893 = vmatpush1.msra.mxu0 0.0
    %v2894 = vand.u32 %v1709, 4294901760
    %v2895 = vsub.f32 %v1709, %v2894
    %v2896 = vand.u32 %v2895, 4294901760
    %2897 = vmatprep.subr.mxu0 %v2896
    %v2898 = vand.u32 %v1708, 4294901760
    %v2899 = vsub.f32 %v1708, %v2898
    %v2900 = vand.u32 %v2899, 4294901760
    %2901 = vmatpush1.msra.mxu0 %v2900
    %v2902 = vand.u32 %v1705, 4294901760
    %v2903 = vsub.f32 %v1705, %v2902
    %v2904 = vand.u32 %v2903, 4294901760
    %2905 = vmatprep.subr.mxu0 %v2904
    %v2906 = vand.u32 %v1704, 4294901760
    %v2907 = vsub.f32 %v1704, %v2906
    %v2908 = vand.u32 %v2907, 4294901760
    %2909 = vmatpush1.msra.mxu0 %v2908
    %v2910 = vand.u32 %v1701, 4294901760
    %v2911 = vsub.f32 %v1701, %v2910
    %v2912 = vand.u32 %v2911, 4294901760
    %2913 = vmatprep.subr.mxu0 %v2912
    %v2914 = vand.u32 %v1700, 4294901760
    %v2915 = vsub.f32 %v1700, %v2914
    %v2916 = vand.u32 %v2915, 4294901760
    %2917 = vmatpush1.msra.mxu0 %v2916
    %v2918 = vand.u32 %v1697, 4294901760
    %v2919 = vsub.f32 %v1697, %v2918
    %v2920 = vand.u32 %v2919, 4294901760
    %2921 = vmatprep.subr.mxu0 %v2920
    %v2922 = vand.u32 %v1696, 4294901760
    %v2923 = vsub.f32 %v1696, %v2922
    %v2924 = vand.u32 %v2923, 4294901760
    %2925 = vmatpush1.msra.mxu0 %v2924
    %v2926 = vand.u32 %v1693, 4294901760
    %v2927 = vsub.f32 %v1693, %v2926
    %v2928 = vand.u32 %v2927, 4294901760
    %2929 = vmatprep.subr.mxu0 %v2928
    %v2930 = vand.u32 %v1692, 4294901760
    %v2931 = vsub.f32 %v1692, %v2930
    %v2932 = vand.u32 %v2931, 4294901760
    %2933 = vmatpush1.msra.mxu0 %v2932
    %v2934 = vand.u32 %v1689, 4294901760
    %v2935 = vsub.f32 %v1689, %v2934
    %v2936 = vand.u32 %v2935, 4294901760
    %2937 = vmatprep.subr.mxu0 %v2936
    %v2938 = vand.u32 %v1688, 4294901760
    %v2939 = vsub.f32 %v1688, %v2938
    %v2940 = vand.u32 %v2939, 4294901760
    %2941 = vmatpush1.msra.mxu0 %v2940
    %v2942 = vand.u32 %v1685, 4294901760
    %v2943 = vsub.f32 %v1685, %v2942
    %v2944 = vand.u32 %v2943, 4294901760
    %2945 = vmatprep.subr.mxu0 %v2944
    %v2946 = vand.u32 %v1684, 4294901760
    %v2947 = vsub.f32 %v1684, %v2946
    %v2948 = vand.u32 %v2947, 4294901760
    %2949 = vmatpush1.msra.mxu0 %v2948
    %v2950 = vand.u32 %v1681, 4294901760
    %v2951 = vsub.f32 %v1681, %v2950
    %v2952 = vand.u32 %v2951, 4294901760
    %2953 = vmatprep.subr.mxu0 %v2952
    %v2954 = vand.u32 %v1680, 4294901760
    %v2955 = vsub.f32 %v1680, %v2954
    %v2956 = vand.u32 %v2955, 4294901760
    %2957 = vmatpush1.msra.mxu0 %v2956
    %v2958 = vand.u32 %v1677, 4294901760
    %v2959 = vsub.f32 %v1677, %v2958
    %v2960 = vand.u32 %v2959, 4294901760
    %2961 = vmatprep.subr.mxu0 %v2960
    %v2962 = vand.u32 %v1676, 4294901760
    %v2963 = vsub.f32 %v1676, %v2962
    %v2964 = vand.u32 %v2963, 4294901760
    %2965 = vmatpush1.msra.mxu0 %v2964
    %2966 = vmatprep.subr.mxu0 0.0
    %2967 = vmatpush2.msra.mxu0 0.0
    %2968 = vmatprep.subr.mxu0 0.0
    %2969 = vmatpush2.msra.mxu0 0.0
    %2970 = vmatprep.subr.mxu0 0.0
    %2971 = vmatpush2.msra.mxu0 0.0
    %2972 = vmatprep.subr.mxu0 0.0
    %2973 = vmatpush2.msra.mxu0 0.0
    %2974 = vmatprep.subr.mxu0 0.0
    %2975 = vmatpush2.msra.mxu0 0.0
    %2976 = vmatprep.subr.mxu0 0.0
    %2977 = vmatpush2.msra.mxu0 0.0
    %2978 = vmatprep.subr.mxu0 0.0
    %2979 = vmatpush2.msra.mxu0 0.0
    %2980 = vmatprep.subr.mxu0 0.0
    %2981 = vmatpush2.msra.mxu0 0.0
    %2982 = vmatprep.subr.mxu0 0.0
    %2983 = vmatpush2.msra.mxu0 0.0
    %2984 = vmatprep.subr.mxu0 0.0
    %2985 = vmatpush2.msra.mxu0 0.0
    %2986 = vmatprep.subr.mxu0 0.0
    %2987 = vmatpush2.msra.mxu0 0.0
    %2988 = vmatprep.subr.mxu0 0.0
    %2989 = vmatpush2.msra.mxu0 0.0
    %2990 = vmatprep.subr.mxu0 0.0
    %2991 = vmatpush2.msra.mxu0 0.0
    %2992 = vmatprep.subr.mxu0 0.0
    %2993 = vmatpush2.msra.mxu0 0.0
    %2994 = vmatprep.subr.mxu0 0.0
    %2995 = vmatpush2.msra.mxu0 0.0
    %2996 = vmatprep.subr.mxu0 0.0
    %2997 = vmatpush2.msra.mxu0 0.0
    %2998 = vmatprep.mubr.f32.mxu0 0.0
    %v2999 = vand.u32 %v1748, 4294901760
    %3000 = vmatmul.mubr.f32.gmra.mxu0 %v2999
    %v3001 = vpop.f32.mrf.mxu0
    %v3002 = vadd.f32 %v2876, %v3001
    %v3003 = vpop.f32.mrf.mxu0
    %v3004 = vadd.f32 %v2878, %v3003
    %3005 = vdwg.mxu0
    %3006 = vmatprep.subr.mxu0 0.0
    %3007 = vmatpush1.msra.mxu0 0.0
    %3008 = vmatprep.subr.mxu0 0.0
    %3009 = vmatpush1.msra.mxu0 0.0
    %3010 = vmatprep.subr.mxu0 0.0
    %3011 = vmatpush1.msra.mxu0 0.0
    %3012 = vmatprep.subr.mxu0 0.0
    %3013 = vmatpush1.msra.mxu0 0.0
    %3014 = vmatprep.subr.mxu0 0.0
    %3015 = vmatpush1.msra.mxu0 0.0
    %3016 = vmatprep.subr.mxu0 0.0
    %3017 = vmatpush1.msra.mxu0 0.0
    %3018 = vmatprep.subr.mxu0 0.0
    %3019 = vmatpush1.msra.mxu0 0.0
    %v3020 = vand.u32 %v1709, 4294901760
    %3021 = vmatprep.subr.mxu0 %v3020
    %v3022 = vand.u32 %v1708, 4294901760
    %3023 = vmatpush1.msra.mxu0 %v3022
    %v3024 = vand.u32 %v1705, 4294901760
    %3025 = vmatprep.subr.mxu0 %v3024
    %v3026 = vand.u32 %v1704, 4294901760
    %3027 = vmatpush1.msra.mxu0 %v3026
    %v3028 = vand.u32 %v1701, 4294901760
    %3029 = vmatprep.subr.mxu0 %v3028
    %v3030 = vand.u32 %v1700, 4294901760
    %3031 = vmatpush1.msra.mxu0 %v3030
    %v3032 = vand.u32 %v1697, 4294901760
    %3033 = vmatprep.subr.mxu0 %v3032
    %v3034 = vand.u32 %v1696, 4294901760
    %3035 = vmatpush1.msra.mxu0 %v3034
    %v3036 = vand.u32 %v1693, 4294901760
    %3037 = vmatprep.subr.mxu0 %v3036
    %v3038 = vand.u32 %v1692, 4294901760
    %3039 = vmatpush1.msra.mxu0 %v3038
    %v3040 = vand.u32 %v1689, 4294901760
    %3041 = vmatprep.subr.mxu0 %v3040
    %v3042 = vand.u32 %v1688, 4294901760
    %3043 = vmatpush1.msra.mxu0 %v3042
    %v3044 = vand.u32 %v1685, 4294901760
    %3045 = vmatprep.subr.mxu0 %v3044
    %v3046 = vand.u32 %v1684, 4294901760
    %3047 = vmatpush1.msra.mxu0 %v3046
    %v3048 = vand.u32 %v1681, 4294901760
    %3049 = vmatprep.subr.mxu0 %v3048
    %v3050 = vand.u32 %v1680, 4294901760
    %3051 = vmatpush1.msra.mxu0 %v3050
    %v3052 = vand.u32 %v1677, 4294901760
    %3053 = vmatprep.subr.mxu0 %v3052
    %v3054 = vand.u32 %v1676, 4294901760
    %3055 = vmatpush1.msra.mxu0 %v3054
    %3056 = vmatprep.subr.mxu0 0.0
    %3057 = vmatpush2.msra.mxu0 0.0
    %3058 = vmatprep.subr.mxu0 0.0
    %3059 = vmatpush2.msra.mxu0 0.0
    %3060 = vmatprep.subr.mxu0 0.0
    %3061 = vmatpush2.msra.mxu0 0.0
    %3062 = vmatprep.subr.mxu0 0.0
    %3063 = vmatpush2.msra.mxu0 0.0
    %3064 = vmatprep.subr.mxu0 0.0
    %3065 = vmatpush2.msra.mxu0 0.0
    %3066 = vmatprep.subr.mxu0 0.0
    %3067 = vmatpush2.msra.mxu0 0.0
    %3068 = vmatprep.subr.mxu0 0.0
    %3069 = vmatpush2.msra.mxu0 0.0
    %3070 = vmatprep.subr.mxu0 0.0
    %3071 = vmatpush2.msra.mxu0 0.0
    %3072 = vmatprep.subr.mxu0 0.0
    %3073 = vmatpush2.msra.mxu0 0.0
    %3074 = vmatprep.subr.mxu0 0.0
    %3075 = vmatpush2.msra.mxu0 0.0
    %3076 = vmatprep.subr.mxu0 0.0
    %3077 = vmatpush2.msra.mxu0 0.0
    %3078 = vmatprep.subr.mxu0 0.0
    %3079 = vmatpush2.msra.mxu0 0.0
    %3080 = vmatprep.subr.mxu0 0.0
    %3081 = vmatpush2.msra.mxu0 0.0
    %3082 = vmatprep.subr.mxu0 0.0
    %3083 = vmatpush2.msra.mxu0 0.0
    %3084 = vmatprep.subr.mxu0 0.0
    %3085 = vmatpush2.msra.mxu0 0.0
    %3086 = vmatprep.subr.mxu0 0.0
    %3087 = vmatpush2.msra.mxu0 0.0
    %3088 = vmatprep.mubr.f32.mxu0 0.0
    %v3089 = vand.u32 %v1748, 4294901760
    %3090 = vmatmul.mubr.f32.gmra.mxu0 %v3089
    %v3091 = vpop.f32.mrf.mxu0
    %v3092 = vadd.f32 %v3002, %v3091
    %v3093 = vpop.f32.mrf.mxu0
    %v3094 = vadd.f32 %v3004, %v3093
    %3095 = vdwg.mxu0
    %v3096 = vmul.f32 %v2419, 0.70710677
    %v3097 = vmul.f32 %v2421, 0.70710677
    %v3098 = vmul.f32 %v3092, 0.70710677
    %v3099 = vmul.f32 %v3094, 0.70710677
    %v3100 = vand.u32 2147483647, %v3096
    %v3101 = vand.u32 2147483647, %v3097
    %v3102 = vand.u32 2147483647, %v3098
    %v3103 = vand.u32 2147483647, %v3099
    %v3104 = vmul.f32 %v3100, 0.3275911
    %v3105 = vmul.f32 %v3101, 0.3275911
    %v3106 = vmul.f32 %v3102, 0.3275911
    %v3107 = vmul.f32 %v3103, 0.3275911
    %v3108 = vadd.f32 %v3104, 1.0
    %v3109 = vadd.f32 %v3105, 1.0
    %v3110 = vadd.f32 %v3106, 1.0
    %v3111 = vadd.f32 %v3107, 1.0
    %v3112 = vrcp.pop %v3108
    %v3113 = vmul.f32 1.0, %v3112
    %v3114 = vrcp.pop %v3109
    %v3115 = vmul.f32 1.0, %v3114
    %v3116 = vrcp.pop %v3110
    %v3117 = vmul.f32 1.0, %v3116
    %v3118 = vrcp.pop %v3111
    %v3119 = vmul.f32 1.0, %v3118
    %v3120 = vmul.f32 %v3113, 1.0614054
    %v3121 = vmul.f32 %v3115, 1.0614054
    %v3122 = vmul.f32 %v3117, 1.0614054
    %v3123 = vmul.f32 %v3119, 1.0614054
    %v3124 = vadd.f32 %v3120, -1.4531521
    %v3125 = vadd.f32 %v3121, -1.4531521
    %v3126 = vadd.f32 %v3122, -1.4531521
    %v3127 = vadd.f32 %v3123, -1.4531521
    %v3128 = vmul.f32 %v3113, %v3124
    %v3129 = vmul.f32 %v3115, %v3125
    %v3130 = vmul.f32 %v3117, %v3126
    %v3131 = vmul.f32 %v3119, %v3127
    %v3132 = vadd.f32 %v3128, 1.4214138
    %v3133 = vadd.f32 %v3129, 1.4214138
    %v3134 = vadd.f32 %v3130, 1.4214138
    %v3135 = vadd.f32 %v3131, 1.4214138
    %v3136 = vmul.f32 %v3113, %v3132
    %v3137 = vmul.f32 %v3115, %v3133
    %v3138 = vmul.f32 %v3117, %v3134
    %v3139 = vmul.f32 %v3119, %v3135
    %v3140 = vadd.f32 %v3136, -0.28449672
    %v3141 = vadd.f32 %v3137, -0.28449672
    %v3142 = vadd.f32 %v3138, -0.28449672
    %v3143 = vadd.f32 %v3139, -0.28449672
    %v3144 = vmul.f32 %v3113, %v3140
    %v3145 = vmul.f32 %v3115, %v3141
    %v3146 = vmul.f32 %v3117, %v3142
    %v3147 = vmul.f32 %v3119, %v3143
    %v3148 = vadd.f32 %v3144, 0.2548296
    %v3149 = vadd.f32 %v3145, 0.2548296
    %v3150 = vadd.f32 %v3146, 0.2548296
    %v3151 = vadd.f32 %v3147, 0.2548296
    %v3152 = vmul.f32 %v3113, %v3148
    %v3153 = vmul.f32 %v3115, %v3149
    %v3154 = vmul.f32 %v3117, %v3150
    %v3155 = vmul.f32 %v3119, %v3151
    %v3156 = vsub.f32 0.0, %v3100
    %v3157 = vsub.f32 0.0, %v3101
    %v3158 = vsub.f32 0.0, %v3102
    %v3159 = vsub.f32 0.0, %v3103
    %v3160 = vmul.f32 %v3156, %v3100
    %v3161 = vmul.f32 %v3157, %v3101
    %v3162 = vmul.f32 %v3158, %v3102
    %v3163 = vmul.f32 %v3159, %v3103
    %v3164 = vmul.f32 %v3160, 1.442695
    %v3165 = vpow.pop %v3164
    %v3166 = vmul.f32 %v3161, 1.442695
    %v3167 = vpow.pop %v3166
    %v3168 = vmul.f32 %v3162, 1.442695
    %v3169 = vpow.pop %v3168
    %v3170 = vmul.f32 %v3163, 1.442695
    %v3171 = vpow.pop %v3170
    %v3172 = vmul.f32 %v3152, %v3165
    %v3173 = vmul.f32 %v3153, %v3167
    %v3174 = vmul.f32 %v3154, %v3169
    %v3175 = vmul.f32 %v3155, %v3171
    %v3176 = vsub.f32 1.0, %v3172
    %v3177 = vsub.f32 1.0, %v3173
    %v3178 = vsub.f32 1.0, %v3174
    %v3179 = vsub.f32 1.0, %v3175
    %vm3180 = vcmp.ge.f32.partialorder %v3096, 0.0
    %vm3181 = vcmp.ge.f32.partialorder %v3097, 0.0
    %vm3182 = vcmp.ge.f32.partialorder %v3098, 0.0
    %vm3183 = vcmp.ge.f32.partialorder %v3099, 0.0
    %v3184 = vsub.f32 0.0, %v3176
    %v3185 = vsub.f32 0.0, %v3177
    %v3186 = vsub.f32 0.0, %v3178
    %v3187 = vsub.f32 0.0, %v3179
    %v3188 = vsel %vm3180, %v3176, %v3184
    %v3189 = vsel %vm3181, %v3177, %v3185
    %v3190 = vsel %vm3182, %v3178, %v3186
    %v3191 = vsel %vm3183, %v3179, %v3187
    %v3192 = vmul.f32 %v2419, 0.5
    %v3193 = vmul.f32 %v2421, 0.5
    %v3194 = vmul.f32 %v3092, 0.5
    %v3195 = vmul.f32 %v3094, 0.5
    %v3196 = vadd.f32 %v3188, 1.0
    %v3197 = vadd.f32 %v3189, 1.0
    %v3198 = vadd.f32 %v3190, 1.0
    %v3199 = vadd.f32 %v3191, 1.0
    %v3200 = vmul.f32 %v3192, %v3196
    %v3201 = vmul.f32 %v3193, %v3197
    %v3202 = vmul.f32 %v3194, %v3198
    %v3203 = vmul.f32 %v3195, %v3199
    %3208 = vrot.lane.b32.xlu0 %v3200, 127
    %v3209 = vpop.permute.xlu0 %3208
    %3210 = vrot.lane.b32.xlu0 %v3201, 127
    %v3211 = vpop.permute.xlu0 %3210
    %3212 = vrot.lane.b32.xlu0 %v3202, 127
    %v3213 = vpop.permute.xlu0 %3212
    %3214 = vrot.lane.b32.xlu0 %v3203, 127
    %v3215 = vpop.permute.xlu0 %3214
    %v3216 = vsel %vm1123, %v1114, %v3209
    %v3217 = vsel %vm1123, %v3209, %v3211
    %v3218 = vsel %vm1123, %v3211, %v3213
    %v3219 = vsel %vm1123, %v3213, %v3215
    %3225 = vrot.lane.b32.xlu0 %v3200, 126
    %v3226 = vpop.permute.xlu0 %3225
    %3227 = vrot.lane.b32.xlu0 %v3201, 126
    %v3228 = vpop.permute.xlu0 %3227
    %3229 = vrot.lane.b32.xlu0 %v3202, 126
    %v3230 = vpop.permute.xlu0 %3229
    %3231 = vrot.lane.b32.xlu0 %v3203, 126
    %v3232 = vpop.permute.xlu0 %3231
    %v3233 = vsel %vm1143, %v1134, %v3226
    %v3234 = vsel %vm1143, %v3226, %v3228
    %v3235 = vsel %vm1143, %v3228, %v3230
    %v3236 = vsel %vm1143, %v3230, %v3232
    %3242 = vrot.lane.b32.xlu0 %v3200, 112
    %v3243 = vpop.permute.xlu0 %3242
    %3244 = vrot.lane.b32.xlu0 %v3201, 112
    %v3245 = vpop.permute.xlu0 %3244
    %3246 = vrot.lane.b32.xlu0 %v3202, 112
    %v3247 = vpop.permute.xlu0 %3246
    %3248 = vrot.lane.b32.xlu0 %v3203, 112
    %v3249 = vpop.permute.xlu0 %3248
    %v3250 = vsel %vm1163, %v1154, %v3243
    %v3251 = vsel %vm1163, %v3243, %v3245
    %v3252 = vsel %vm1163, %v3245, %v3247
    %v3253 = vsel %vm1163, %v3247, %v3249
    %3259 = vrot.lane.b32.xlu0 %v3200, 111
    %v3260 = vpop.permute.xlu0 %3259
    %3261 = vrot.lane.b32.xlu0 %v3201, 111
    %v3262 = vpop.permute.xlu0 %3261
    %3263 = vrot.lane.b32.xlu0 %v3202, 111
    %v3264 = vpop.permute.xlu0 %3263
    %3265 = vrot.lane.b32.xlu0 %v3203, 111
    %v3266 = vpop.permute.xlu0 %3265
    %v3267 = vsel %vm1181, %v3260, %v3262
    %v3268 = vsel %vm1181, %v3262, %v3264
    %v3269 = vsel %vm1181, %v3264, %v3266
    %3275 = vrot.lane.b32.xlu0 %v3200, 110
    %v3276 = vpop.permute.xlu0 %3275
    %3277 = vrot.lane.b32.xlu0 %v3201, 110
    %v3278 = vpop.permute.xlu0 %3277
    %3279 = vrot.lane.b32.xlu0 %v3202, 110
    %v3280 = vpop.permute.xlu0 %3279
    %3281 = vrot.lane.b32.xlu0 %v3203, 110
    %v3282 = vpop.permute.xlu0 %3281
    %v3283 = vsel %vm1200, %v3276, %v3278
    %v3284 = vsel %vm1200, %v3278, %v3280
    %v3285 = vsel %vm1200, %v3280, %v3282
    %v3286 = vsel %vm1200, %v3282, %v1199
    %3292 = vrot.lane.b32.xlu0 %v3200, 96
    %v3293 = vpop.permute.xlu0 %3292
    %3294 = vrot.lane.b32.xlu0 %v3201, 96
    %v3295 = vpop.permute.xlu0 %3294
    %3296 = vrot.lane.b32.xlu0 %v3202, 96
    %v3297 = vpop.permute.xlu0 %3296
    %3298 = vrot.lane.b32.xlu0 %v3203, 96
    %v3299 = vpop.permute.xlu0 %3298
    %v3300 = vsel %vm1220, %v3293, %v3295
    %v3301 = vsel %vm1220, %v3295, %v3297
    %v3302 = vsel %vm1220, %v3297, %v3299
    %v3303 = vsel %vm1220, %v3299, %v1219
    %3309 = vrot.lane.b32.xlu0 %v3200, 95
    %v3310 = vpop.permute.xlu0 %3309
    %3311 = vrot.lane.b32.xlu0 %v3201, 95
    %v3312 = vpop.permute.xlu0 %3311
    %3313 = vrot.lane.b32.xlu0 %v3202, 95
    %v3314 = vpop.permute.xlu0 %3313
    %3315 = vrot.lane.b32.xlu0 %v3203, 95
    %v3316 = vpop.permute.xlu0 %3315
    %v3317 = vsel %vm1240, %v3310, %v3312
    %v3318 = vsel %vm1240, %v3312, %v3314
    %v3319 = vsel %vm1240, %v3314, %v3316
    %v3320 = vsel %vm1240, %v3316, %v1239
    %3326 = vrot.lane.b32.xlu0 %v3200, 94
    %v3327 = vpop.permute.xlu0 %3326
    %3328 = vrot.lane.b32.xlu0 %v3201, 94
    %v3329 = vpop.permute.xlu0 %3328
    %3330 = vrot.lane.b32.xlu0 %v3202, 94
    %v3331 = vpop.permute.xlu0 %3330
    %3332 = vrot.lane.b32.xlu0 %v3203, 94
    %v3333 = vpop.permute.xlu0 %3332
    %v3334 = vsel %vm1260, %v3327, %v3329
    %v3335 = vsel %vm1260, %v3329, %v3331
    %v3336 = vsel %vm1260, %v3331, %v3333
    %v3337 = vsel %vm1260, %v3333, %v1259
    %v3343 = vmul.f32 %v3200, %v1414
    %v3344 = vmul.f32 %v3201, %v1415
    %v3345 = vmul.f32 %v3202, %v1416
    %v3346 = vmul.f32 %v3203, %v1349
    %v3347 = vmul.f32 %v3216, %v1351
    %v3348 = vmul.f32 %v3217, %v1417
    %v3349 = vmul.f32 %v3218, %v1418
    %v3350 = vmul.f32 %v3219, %v1419
    %v3351 = vmul.f32 %v3215, %v1357
    %v3352 = vmul.f32 %v3233, %v1359
    %v3353 = vmul.f32 %v3234, %v1420
    %v3354 = vmul.f32 %v3235, %v1421
    %v3355 = vmul.f32 %v3236, %v1422
    %v3356 = vmul.f32 %v3232, %v1365
    %v3357 = vmul.f32 %v3250, %v1367
    %v3358 = vmul.f32 %v3251, %v1423
    %v3359 = vmul.f32 %v3252, %v1424
    %v3360 = vmul.f32 %v3253, %v1425
    %v3361 = vmul.f32 %v3249, %v1373
    %v3362 = vmul.f32 %v3260, %v1375
    %v3363 = vmul.f32 %v3267, %v1426
    %v3364 = vmul.f32 %v3268, %v1427
    %v3365 = vmul.f32 %v3269, %v1428
    %v3366 = vmul.f32 %v3266, %v1381
    %v3367 = vmul.f32 %v3276, %v1383
    %v3368 = vmul.f32 %v3283, %v1429
    %v3369 = vmul.f32 %v3284, %v1430
    %v3370 = vmul.f32 %v3285, %v1431
    %v3371 = vmul.f32 %v3286, %v1389
    %v3372 = vmul.f32 %v3293, %v1391
    %v3373 = vmul.f32 %v3300, %v1432
    %v3374 = vmul.f32 %v3301, %v1433
    %v3375 = vmul.f32 %v3302, %v1434
    %v3376 = vmul.f32 %v3303, %v1397
    %v3377 = vmul.f32 %v3310, %v1399
    %v3378 = vmul.f32 %v3317, %v1435
    %v3379 = vmul.f32 %v3318, %v1436
    %v3380 = vmul.f32 %v3319, %v1437
    %v3381 = vmul.f32 %v3320, %v1405
    %v3382 = vmul.f32 %v3327, %v1407
    %v3383 = vmul.f32 %v3334, %v1438
    %v3384 = vmul.f32 %v3335, %v1439
    %v3385 = vmul.f32 %v3336, %v1440
    %v3386 = vmul.f32 %v3337, %v1413
    %v3387 = vld [vmem:[%s6] sm:$0xff]
    %v3388 = vld [vmem:[%s7] sm:$0xff]
    %3390 = vset.pattern.permute.xlu0 0
    %3391 = vperm.xlu0 %3390, %v3388
    %v3392 = vpop.permute.xlu0 %3391
    %3438 = vrot.lane.b32.xlu0 %v3343, 17
    %v3439 = vpop.permute.xlu0 %3438
    %3440 = vrot.lane.b32.xlu0 %v3344, 17
    %v3441 = vpop.permute.xlu0 %3440
    %3442 = vrot.lane.b32.xlu0 %v3345, 17
    %v3443 = vpop.permute.xlu0 %3442
    %3444 = vrot.lane.b32.xlu0 %v3346, 17
    %v3445 = vpop.permute.xlu0 %3444
    %3446 = vrot.lane.b32.xlu0 %v3347, 17
    %v3447 = vpop.permute.xlu0 %3446
    %3448 = vrot.lane.b32.xlu0 %v3348, 17
    %v3449 = vpop.permute.xlu0 %3448
    %3450 = vrot.lane.b32.xlu0 %v3349, 17
    %v3451 = vpop.permute.xlu0 %3450
    %3452 = vrot.lane.b32.xlu0 %v3350, 17
    %v3453 = vpop.permute.xlu0 %3452
    %3454 = vrot.lane.b32.xlu0 %v3351, 17
    %v3455 = vpop.permute.xlu0 %3454
    %3456 = vrot.lane.b32.xlu0 %v3352, 17
    %v3457 = vpop.permute.xlu0 %3456
    %3458 = vrot.lane.b32.xlu0 %v3353, 17
    %v3459 = vpop.permute.xlu0 %3458
    %3460 = vrot.lane.b32.xlu0 %v3354, 17
    %v3461 = vpop.permute.xlu0 %3460
    %3462 = vrot.lane.b32.xlu0 %v3355, 17
    %v3463 = vpop.permute.xlu0 %3462
    %3464 = vrot.lane.b32.xlu0 %v3356, 17
    %v3465 = vpop.permute.xlu0 %3464
    %3466 = vrot.lane.b32.xlu0 %v3357, 17
    %v3467 = vpop.permute.xlu0 %3466
    %3468 = vrot.lane.b32.xlu0 %v3358, 17
    %v3469 = vpop.permute.xlu0 %3468
    %3470 = vrot.lane.b32.xlu0 %v3359, 17
    %v3471 = vpop.permute.xlu0 %3470
    %3472 = vrot.lane.b32.xlu0 %v3360, 17
    %v3473 = vpop.permute.xlu0 %3472
    %3474 = vrot.lane.b32.xlu0 %v3361, 17
    %v3475 = vpop.permute.xlu0 %3474
    %3476 = vrot.lane.b32.xlu0 %v3362, 17
    %v3477 = vpop.permute.xlu0 %3476
    %3478 = vrot.lane.b32.xlu0 %v3363, 17
    %v3479 = vpop.permute.xlu0 %3478
    %3480 = vrot.lane.b32.xlu0 %v3364, 17
    %v3481 = vpop.permute.xlu0 %3480
    %3482 = vrot.lane.b32.xlu0 %v3365, 17
    %v3483 = vpop.permute.xlu0 %3482
    %3484 = vrot.lane.b32.xlu0 %v3366, 17
    %v3485 = vpop.permute.xlu0 %3484
    %3486 = vrot.lane.b32.xlu0 %v3367, 17
    %v3487 = vpop.permute.xlu0 %3486
    %3488 = vrot.lane.b32.xlu0 %v3368, 17
    %v3489 = vpop.permute.xlu0 %3488
    %3490 = vrot.lane.b32.xlu0 %v3369, 17
    %v3491 = vpop.permute.xlu0 %3490
    %3492 = vrot.lane.b32.xlu0 %v3370, 17
    %v3493 = vpop.permute.xlu0 %3492
    %3494 = vrot.lane.b32.xlu0 %v3371, 17
    %v3495 = vpop.permute.xlu0 %3494
    %3496 = vrot.lane.b32.xlu0 %v3372, 17
    %v3497 = vpop.permute.xlu0 %3496
    %3498 = vrot.lane.b32.xlu0 %v3373, 17
    %v3499 = vpop.permute.xlu0 %3498
    %3500 = vrot.lane.b32.xlu0 %v3374, 17
    %v3501 = vpop.permute.xlu0 %3500
    %3502 = vrot.lane.b32.xlu0 %v3375, 17
    %v3503 = vpop.permute.xlu0 %3502
    %3504 = vrot.lane.b32.xlu0 %v3376, 17
    %v3505 = vpop.permute.xlu0 %3504
    %3506 = vrot.lane.b32.xlu0 %v3377, 17
    %v3507 = vpop.permute.xlu0 %3506
    %3508 = vrot.lane.b32.xlu0 %v3378, 17
    %v3509 = vpop.permute.xlu0 %3508
    %3510 = vrot.lane.b32.xlu0 %v3379, 17
    %v3511 = vpop.permute.xlu0 %3510
    %3512 = vrot.lane.b32.xlu0 %v3380, 17
    %v3513 = vpop.permute.xlu0 %3512
    %3514 = vrot.lane.b32.xlu0 %v3381, 17
    %v3515 = vpop.permute.xlu0 %3514
    %3516 = vrot.lane.b32.xlu0 %v3382, 17
    %v3517 = vpop.permute.xlu0 %3516
    %3518 = vrot.lane.b32.xlu0 %v3383, 17
    %v3519 = vpop.permute.xlu0 %3518
    %3520 = vrot.lane.b32.xlu0 %v3384, 17
    %v3521 = vpop.permute.xlu0 %3520
    %3522 = vrot.lane.b32.xlu0 %v3385, 17
    %v3523 = vpop.permute.xlu0 %3522
    %3524 = vrot.lane.b32.xlu0 %v3386, 17
    %v3525 = vpop.permute.xlu0 %3524
    %v3526 = vsel %vm1673, %v1584, %v3439
    %v3527 = vsel %vm1673, %v3439, %v3441
    %v3528 = vsel %vm1673, %v3441, %v3443
    %v3529 = vsel %vm1673, %v3443, %v3445
    %v3530 = vsel %vm1673, %v3447, %v3449
    %v3531 = vsel %vm1673, %v3449, %v3451
    %v3532 = vsel %vm1673, %v3451, %v3453
    %v3533 = vsel %vm1673, %v3453, %v3455
    %v3534 = vsel %vm1673, %v3457, %v3459
    %v3535 = vsel %vm1673, %v3459, %v3461
    %v3536 = vsel %vm1673, %v3461, %v3463
    %v3537 = vsel %vm1673, %v3463, %v3465
    %v3538 = vsel %vm1673, %v3467, %v3469
    %v3539 = vsel %vm1673, %v3469, %v3471
    %v3540 = vsel %vm1673, %v3471, %v3473
    %v3541 = vsel %vm1673, %v3473, %v3475
    %v3542 = vsel %vm1673, %v3477, %v3479
    %v3543 = vsel %vm1673, %v3479, %v3481
    %v3544 = vsel %vm1673, %v3481, %v3483
    %v3545 = vsel %vm1673, %v3483, %v3485
    %v3546 = vsel %vm1673, %v3487, %v3489
    %v3547 = vsel %vm1673, %v3489, %v3491
    %v3548 = vsel %vm1673, %v3491, %v3493
    %v3549 = vsel %vm1673, %v3493, %v3495
    %v3550 = vsel %vm1673, %v3497, %v3499
    %v3551 = vsel %vm1673, %v3499, %v3501
    %v3552 = vsel %vm1673, %v3501, %v3503
    %v3553 = vsel %vm1673, %v3503, %v3505
    %v3554 = vsel %vm1673, %v3507, %v3509
    %v3555 = vsel %vm1673, %v3509, %v3511
    %v3556 = vsel %vm1673, %v3511, %v3513
    %v3557 = vsel %vm1673, %v3513, %v3515
    %v3558 = vsel %vm1673, %v3517, %v3519
    %v3559 = vsel %vm1673, %v3519, %v3521
    %v3560 = vsel %vm1673, %v3521, %v3523
    %v3561 = vsel %vm1673, %v3523, %v3525
    %v3599 = vsel %vm1746, %v3387, 0
    %3601 = vmatprep.subr.mxu0 0.0
    %3602 = vmatpush1.msra.mxu0 0.0
    %3603 = vmatprep.subr.mxu0 0.0
    %3604 = vmatpush1.msra.mxu0 0.0
    %3605 = vmatprep.subr.mxu0 0.0
    %3606 = vmatpush1.msra.mxu0 0.0
    %3607 = vmatprep.subr.mxu0 0.0
    %3608 = vmatpush1.msra.mxu0 0.0
    %3609 = vmatprep.subr.mxu0 0.0
    %3610 = vmatpush1.msra.mxu0 0.0
    %3611 = vmatprep.subr.mxu0 0.0
    %3612 = vmatpush1.msra.mxu0 0.0
    %3613 = vmatprep.subr.mxu0 0.0
    %3614 = vmatpush1.msra.mxu0 0.0
    %v3615 = vand.u32 %v3559, 4294901760
    %3616 = vmatprep.subr.mxu0 %v3615
    %v3617 = vand.u32 %v3558, 4294901760
    %3618 = vmatpush1.msra.mxu0 %v3617
    %v3619 = vand.u32 %v3555, 4294901760
    %3620 = vmatprep.subr.mxu0 %v3619
    %v3621 = vand.u32 %v3554, 4294901760
    %3622 = vmatpush1.msra.mxu0 %v3621
    %v3623 = vand.u32 %v3551, 4294901760
    %3624 = vmatprep.subr.mxu0 %v3623
    %v3625 = vand.u32 %v3550, 4294901760
    %3626 = vmatpush1.msra.mxu0 %v3625
    %v3627 = vand.u32 %v3547, 4294901760
    %3628 = vmatprep.subr.mxu0 %v3627
    %v3629 = vand.u32 %v3546, 4294901760
    %3630 = vmatpush1.msra.mxu0 %v3629
    %v3631 = vand.u32 %v3543, 4294901760
    %3632 = vmatprep.subr.mxu0 %v3631
    %v3633 = vand.u32 %v3542, 4294901760
    %3634 = vmatpush1.msra.mxu0 %v3633
    %v3635 = vand.u32 %v3539, 4294901760
    %3636 = vmatprep.subr.mxu0 %v3635
    %v3637 = vand.u32 %v3538, 4294901760
    %3638 = vmatpush1.msra.mxu0 %v3637
    %v3639 = vand.u32 %v3535, 4294901760
    %3640 = vmatprep.subr.mxu0 %v3639
    %v3641 = vand.u32 %v3534, 4294901760
    %3642 = vmatpush1.msra.mxu0 %v3641
    %v3643 = vand.u32 %v3531, 4294901760
    %3644 = vmatprep.subr.mxu0 %v3643
    %v3645 = vand.u32 %v3530, 4294901760
    %3646 = vmatpush1.msra.mxu0 %v3645
    %v3647 = vand.u32 %v3527, 4294901760
    %3648 = vmatprep.subr.mxu0 %v3647
    %v3649 = vand.u32 %v3526, 4294901760
    %3650 = vmatpush1.msra.mxu0 %v3649
    %3651 = vmatprep.subr.mxu0 0.0
    %3652 = vmatpush2.msra.mxu0 0.0
    %3653 = vmatprep.subr.mxu0 0.0
    %3654 = vmatpush2.msra.mxu0 0.0
    %3655 = vmatprep.subr.mxu0 0.0
    %3656 = vmatpush2.msra.mxu0 0.0
    %3657 = vmatprep.subr.mxu0 0.0
    %3658 = vmatpush2.msra.mxu0 0.0
    %3659 = vmatprep.subr.mxu0 0.0
    %3660 = vmatpush2.msra.mxu0 0.0
    %3661 = vmatprep.subr.mxu0 0.0
    %3662 = vmatpush2.msra.mxu0 0.0
    %3663 = vmatprep.subr.mxu0 0.0
    %3664 = vmatpush2.msra.mxu0 0.0
    %3665 = vmatprep.subr.mxu0 0.0
    %3666 = vmatpush2.msra.mxu0 0.0
    %3667 = vmatprep.subr.mxu0 0.0
    %3668 = vmatpush2.msra.mxu0 0.0
    %3669 = vmatprep.subr.mxu0 0.0
    %3670 = vmatpush2.msra.mxu0 0.0
    %3671 = vmatprep.subr.mxu0 0.0
    %3672 = vmatpush2.msra.mxu0 0.0
    %3673 = vmatprep.subr.mxu0 0.0
    %3674 = vmatpush2.msra.mxu0 0.0
    %3675 = vmatprep.subr.mxu0 0.0
    %3676 = vmatpush2.msra.mxu0 0.0
    %3677 = vmatprep.subr.mxu0 0.0
    %3678 = vmatpush2.msra.mxu0 0.0
    %3679 = vmatprep.subr.mxu0 0.0
    %3680 = vmatpush2.msra.mxu0 0.0
    %3681 = vmatprep.subr.mxu0 0.0
    %3682 = vmatpush2.msra.mxu0 0.0
    %3683 = vmatprep.mubr.f32.mxu0 0.0
    %v3684 = vand.u32 %v3599, 4294901760
    %v3685 = vsub.f32 %v3599, %v3684
    %v3686 = vand.u32 %v3685, 4294901760
    %v3687 = vsub.f32 %v3685, %v3686
    %v3688 = vand.u32 %v3687, 4294901760
    %3689 = vmatmul.mubr.f32.gmra.mxu0 %v3688
    %v3690 = vpop.f32.mrf.mxu0
    %v3691 = vadd.f32 %v3392, %v3690
    %v3692 = vpop.f32.mrf.mxu0
    %v3693 = vadd.f32 %v3392, %v3692
    %3694 = vdwg.mxu0
    %3695 = vmatprep.subr.mxu0 0.0
    %3696 = vmatpush1.msra.mxu0 0.0
    %3697 = vmatprep.subr.mxu0 0.0
    %3698 = vmatpush1.msra.mxu0 0.0
    %3699 = vmatprep.subr.mxu0 0.0
    %3700 = vmatpush1.msra.mxu0 0.0
    %3701 = vmatprep.subr.mxu0 0.0
    %3702 = vmatpush1.msra.mxu0 0.0
    %3703 = vmatprep.subr.mxu0 0.0
    %3704 = vmatpush1.msra.mxu0 0.0
    %3705 = vmatprep.subr.mxu0 0.0
    %3706 = vmatpush1.msra.mxu0 0.0
    %3707 = vmatprep.subr.mxu0 0.0
    %3708 = vmatpush1.msra.mxu0 0.0
    %v3709 = vand.u32 %v3559, 4294901760
    %v3710 = vsub.f32 %v3559, %v3709
    %v3711 = vand.u32 %v3710, 4294901760
    %v3712 = vsub.f32 %v3710, %v3711
    %v3713 = vand.u32 %v3712, 4294901760
    %3714 = vmatprep.subr.mxu0 %v3713
    %v3715 = vand.u32 %v3558, 4294901760
    %v3716 = vsub.f32 %v3558, %v3715
    %v3717 = vand.u32 %v3716, 4294901760
    %v3718 = vsub.f32 %v3716, %v3717
    %v3719 = vand.u32 %v3718, 4294901760
    %3720 = vmatpush1.msra.mxu0 %v3719
    %v3721 = vand.u32 %v3555, 4294901760
    %v3722 = vsub.f32 %v3555, %v3721
    %v3723 = vand.u32 %v3722, 4294901760
    %v3724 = vsub.f32 %v3722, %v3723
    %v3725 = vand.u32 %v3724, 4294901760
    %3726 = vmatprep.subr.mxu0 %v3725
    %v3727 = vand.u32 %v3554, 4294901760
    %v3728 = vsub.f32 %v3554, %v3727
    %v3729 = vand.u32 %v3728, 4294901760
    %v3730 = vsub.f32 %v3728, %v3729
    %v3731 = vand.u32 %v3730, 4294901760
    %3732 = vmatpush1.msra.mxu0 %v3731
    %v3733 = vand.u32 %v3551, 4294901760
    %v3734 = vsub.f32 %v3551, %v3733
    %v3735 = vand.u32 %v3734, 4294901760
    %v3736 = vsub.f32 %v3734, %v3735
    %v3737 = vand.u32 %v3736, 4294901760
    %3738 = vmatprep.subr.mxu0 %v3737
    %v3739 = vand.u32 %v3550, 4294901760
    %v3740 = vsub.f32 %v3550, %v3739
    %v3741 = vand.u32 %v3740, 4294901760
    %v3742 = vsub.f32 %v3740, %v3741
    %v3743 = vand.u32 %v3742, 4294901760
    %3744 = vmatpush1.msra.mxu0 %v3743
    %v3745 = vand.u32 %v3547, 4294901760
    %v3746 = vsub.f32 %v3547, %v3745
    %v3747 = vand.u32 %v3746, 4294901760
    %v3748 = vsub.f32 %v3746, %v3747
    %v3749 = vand.u32 %v3748, 4294901760
    %3750 = vmatprep.subr.mxu0 %v3749
    %v3751 = vand.u32 %v3546, 4294901760
    %v3752 = vsub.f32 %v3546, %v3751
    %v3753 = vand.u32 %v3752, 4294901760
    %v3754 = vsub.f32 %v3752, %v3753
    %v3755 = vand.u32 %v3754, 4294901760
    %3756 = vmatpush1.msra.mxu0 %v3755
    %v3757 = vand.u32 %v3543, 4294901760
    %v3758 = vsub.f32 %v3543, %v3757
    %v3759 = vand.u32 %v3758, 4294901760
    %v3760 = vsub.f32 %v3758, %v3759
    %v3761 = vand.u32 %v3760, 4294901760
    %3762 = vmatprep.subr.mxu0 %v3761
    %v3763 = vand.u32 %v3542, 4294901760
    %v3764 = vsub.f32 %v3542, %v3763
    %v3765 = vand.u32 %v3764, 4294901760
    %v3766 = vsub.f32 %v3764, %v3765
    %v3767 = vand.u32 %v3766, 4294901760
    %3768 = vmatpush1.msra.mxu0 %v3767
    %v3769 = vand.u32 %v3539, 4294901760
    %v3770 = vsub.f32 %v3539, %v3769
    %v3771 = vand.u32 %v3770, 4294901760
    %v3772 = vsub.f32 %v3770, %v3771
    %v3773 = vand.u32 %v3772, 4294901760
    %3774 = vmatprep.subr.mxu0 %v3773
    %v3775 = vand.u32 %v3538, 4294901760
    %v3776 = vsub.f32 %v3538, %v3775
    %v3777 = vand.u32 %v3776, 4294901760
    %v3778 = vsub.f32 %v3776, %v3777
    %v3779 = vand.u32 %v3778, 4294901760
    %3780 = vmatpush1.msra.mxu0 %v3779
    %v3781 = vand.u32 %v3535, 4294901760
    %v3782 = vsub.f32 %v3535, %v3781
    %v3783 = vand.u32 %v3782, 4294901760
    %v3784 = vsub.f32 %v3782, %v3783
    %v3785 = vand.u32 %v3784, 4294901760
    %3786 = vmatprep.subr.mxu0 %v3785
    %v3787 = vand.u32 %v3534, 4294901760
    %v3788 = vsub.f32 %v3534, %v3787
    %v3789 = vand.u32 %v3788, 4294901760
    %v3790 = vsub.f32 %v3788, %v3789
    %v3791 = vand.u32 %v3790, 4294901760
    %3792 = vmatpush1.msra.mxu0 %v3791
    %v3793 = vand.u32 %v3531, 4294901760
    %v3794 = vsub.f32 %v3531, %v3793
    %v3795 = vand.u32 %v3794, 4294901760
    %v3796 = vsub.f32 %v3794, %v3795
    %v3797 = vand.u32 %v3796, 4294901760
    %3798 = vmatprep.subr.mxu0 %v3797
    %v3799 = vand.u32 %v3530, 4294901760
    %v3800 = vsub.f32 %v3530, %v3799
    %v3801 = vand.u32 %v3800, 4294901760
    %v3802 = vsub.f32 %v3800, %v3801
    %v3803 = vand.u32 %v3802, 4294901760
    %3804 = vmatpush1.msra.mxu0 %v3803
    %v3805 = vand.u32 %v3527, 4294901760
    %v3806 = vsub.f32 %v3527, %v3805
    %v3807 = vand.u32 %v3806, 4294901760
    %v3808 = vsub.f32 %v3806, %v3807
    %v3809 = vand.u32 %v3808, 4294901760
    %3810 = vmatprep.subr.mxu0 %v3809
    %v3811 = vand.u32 %v3526, 4294901760
    %v3812 = vsub.f32 %v3526, %v3811
    %v3813 = vand.u32 %v3812, 4294901760
    %v3814 = vsub.f32 %v3812, %v3813
    %v3815 = vand.u32 %v3814, 4294901760
    %3816 = vmatpush1.msra.mxu0 %v3815
    %3817 = vmatprep.subr.mxu0 0.0
    %3818 = vmatpush2.msra.mxu0 0.0
    %3819 = vmatprep.subr.mxu0 0.0
    %3820 = vmatpush2.msra.mxu0 0.0
    %3821 = vmatprep.subr.mxu0 0.0
    %3822 = vmatpush2.msra.mxu0 0.0
    %3823 = vmatprep.subr.mxu0 0.0
    %3824 = vmatpush2.msra.mxu0 0.0
    %3825 = vmatprep.subr.mxu0 0.0
    %3826 = vmatpush2.msra.mxu0 0.0
    %3827 = vmatprep.subr.mxu0 0.0
    %3828 = vmatpush2.msra.mxu0 0.0
    %3829 = vmatprep.subr.mxu0 0.0
    %3830 = vmatpush2.msra.mxu0 0.0
    %3831 = vmatprep.subr.mxu0 0.0
    %3832 = vmatpush2.msra.mxu0 0.0
    %3833 = vmatprep.subr.mxu0 0.0
    %3834 = vmatpush2.msra.mxu0 0.0
    %3835 = vmatprep.subr.mxu0 0.0
    %3836 = vmatpush2.msra.mxu0 0.0
    %3837 = vmatprep.subr.mxu0 0.0
    %3838 = vmatpush2.msra.mxu0 0.0
    %3839 = vmatprep.subr.mxu0 0.0
    %3840 = vmatpush2.msra.mxu0 0.0
    %3841 = vmatprep.subr.mxu0 0.0
    %3842 = vmatpush2.msra.mxu0 0.0
    %3843 = vmatprep.subr.mxu0 0.0
    %3844 = vmatpush2.msra.mxu0 0.0
    %3845 = vmatprep.subr.mxu0 0.0
    %3846 = vmatpush2.msra.mxu0 0.0
    %3847 = vmatprep.subr.mxu0 0.0
    %3848 = vmatpush2.msra.mxu0 0.0
    %3849 = vmatprep.mubr.f32.mxu0 0.0
    %v3850 = vand.u32 %v3599, 4294901760
    %3851 = vmatmul.mubr.f32.gmra.mxu0 %v3850
    %v3852 = vpop.f32.mrf.mxu0
    %v3853 = vadd.f32 %v3691, %v3852
    %v3854 = vpop.f32.mrf.mxu0
    %v3855 = vadd.f32 %v3693, %v3854
    %3856 = vdwg.mxu0
    %3857 = vmatprep.subr.mxu0 0.0
    %3858 = vmatpush1.msra.mxu0 0.0
    %3859 = vmatprep.subr.mxu0 0.0
    %3860 = vmatpush1.msra.mxu0 0.0
    %3861 = vmatprep.subr.mxu0 0.0
    %3862 = vmatpush1.msra.mxu0 0.0
    %3863 = vmatprep.subr.mxu0 0.0
    %3864 = vmatpush1.msra.mxu0 0.0
    %3865 = vmatprep.subr.mxu0 0.0
    %3866 = vmatpush1.msra.mxu0 0.0
    %3867 = vmatprep.subr.mxu0 0.0
    %3868 = vmatpush1.msra.mxu0 0.0
    %3869 = vmatprep.subr.mxu0 0.0
    %3870 = vmatpush1.msra.mxu0 0.0
    %v3871 = vand.u32 %v3559, 4294901760
    %v3872 = vsub.f32 %v3559, %v3871
    %3873 = vmatprep.subr.mxu0 %v3872
    %v3874 = vand.u32 %v3558, 4294901760
    %v3875 = vsub.f32 %v3558, %v3874
    %3876 = vmatpush1.msra.mxu0 %v3875
    %v3877 = vand.u32 %v3555, 4294901760
    %v3878 = vsub.f32 %v3555, %v3877
    %3879 = vmatprep.subr.mxu0 %v3878
    %v3880 = vand.u32 %v3554, 4294901760
    %v3881 = vsub.f32 %v3554, %v3880
    %3882 = vmatpush1.msra.mxu0 %v3881
    %v3883 = vand.u32 %v3551, 4294901760
    %v3884 = vsub.f32 %v3551, %v3883
    %3885 = vmatprep.subr.mxu0 %v3884
    %v3886 = vand.u32 %v3550, 4294901760
    %v3887 = vsub.f32 %v3550, %v3886
    %3888 = vmatpush1.msra.mxu0 %v3887
    %v3889 = vand.u32 %v3547, 4294901760
    %v3890 = vsub.f32 %v3547, %v3889
    %3891 = vmatprep.subr.mxu0 %v3890
    %v3892 = vand.u32 %v3546, 4294901760
    %v3893 = vsub.f32 %v3546, %v3892
    %3894 = vmatpush1.msra.mxu0 %v3893
    %v3895 = vand.u32 %v3543, 4294901760
    %v3896 = vsub.f32 %v3543, %v3895
    %3897 = vmatprep.subr.mxu0 %v3896
    %v3898 = vand.u32 %v3542, 4294901760
    %v3899 = vsub.f32 %v3542, %v3898
    %3900 = vmatpush1.msra.mxu0 %v3899
    %v3901 = vand.u32 %v3539, 4294901760
    %v3902 = vsub.f32 %v3539, %v3901
    %3903 = vmatprep.subr.mxu0 %v3902
    %v3904 = vand.u32 %v3538, 4294901760
    %v3905 = vsub.f32 %v3538, %v3904
    %3906 = vmatpush1.msra.mxu0 %v3905
    %v3907 = vand.u32 %v3535, 4294901760
    %v3908 = vsub.f32 %v3535, %v3907
    %3909 = vmatprep.subr.mxu0 %v3908
    %v3910 = vand.u32 %v3534, 4294901760
    %v3911 = vsub.f32 %v3534, %v3910
    %3912 = vmatpush1.msra.mxu0 %v3911
    %v3913 = vand.u32 %v3531, 4294901760
    %v3914 = vsub.f32 %v3531, %v3913
    %3915 = vmatprep.subr.mxu0 %v3914
    %v3916 = vand.u32 %v3530, 4294901760
    %v3917 = vsub.f32 %v3530, %v3916
    %3918 = vmatpush1.msra.mxu0 %v3917
    %v3919 = vand.u32 %v3527, 4294901760
    %v3920 = vsub.f32 %v3527, %v3919
    %3921 = vmatprep.subr.mxu0 %v3920
    %v3922 = vand.u32 %v3526, 4294901760
    %v3923 = vsub.f32 %v3526, %v3922
    %3924 = vmatpush1.msra.mxu0 %v3923
    %3925 = vmatprep.subr.mxu0 0.0
    %3926 = vmatpush2.msra.mxu0 0.0
    %3927 = vmatprep.subr.mxu0 0.0
    %3928 = vmatpush2.msra.mxu0 0.0
    %3929 = vmatprep.subr.mxu0 0.0
    %3930 = vmatpush2.msra.mxu0 0.0
    %3931 = vmatprep.subr.mxu0 0.0
    %3932 = vmatpush2.msra.mxu0 0.0
    %3933 = vmatprep.subr.mxu0 0.0
    %3934 = vmatpush2.msra.mxu0 0.0
    %3935 = vmatprep.subr.mxu0 0.0
    %3936 = vmatpush2.msra.mxu0 0.0
    %3937 = vmatprep.subr.mxu0 0.0
    %3938 = vmatpush2.msra.mxu0 0.0
    %3939 = vmatprep.subr.mxu0 0.0
    %3940 = vmatpush2.msra.mxu0 0.0
    %3941 = vmatprep.subr.mxu0 0.0
    %3942 = vmatpush2.msra.mxu0 0.0
    %3943 = vmatprep.subr.mxu0 0.0
    %3944 = vmatpush2.msra.mxu0 0.0
    %3945 = vmatprep.subr.mxu0 0.0
    %3946 = vmatpush2.msra.mxu0 0.0
    %3947 = vmatprep.subr.mxu0 0.0
    %3948 = vmatpush2.msra.mxu0 0.0
    %3949 = vmatprep.subr.mxu0 0.0
    %3950 = vmatpush2.msra.mxu0 0.0
    %3951 = vmatprep.subr.mxu0 0.0
    %3952 = vmatpush2.msra.mxu0 0.0
    %3953 = vmatprep.subr.mxu0 0.0
    %3954 = vmatpush2.msra.mxu0 0.0
    %3955 = vmatprep.subr.mxu0 0.0
    %3956 = vmatpush2.msra.mxu0 0.0
    %3957 = vmatprep.mubr.f32.mxu0 0.0
    %v3958 = vand.u32 %v3599, 4294901760
    %v3959 = vsub.f32 %v3599, %v3958
    %3960 = vmatmul.mubr.f32.gmra.mxu0 %v3959
    %v3961 = vpop.f32.mrf.mxu0
    %v3962 = vadd.f32 %v3853, %v3961
    %v3963 = vpop.f32.mrf.mxu0
    %v3964 = vadd.f32 %v3855, %v3963
    %3965 = vdwg.mxu0
    %3966 = vmatprep.subr.mxu0 0.0
    %3967 = vmatpush1.msra.mxu0 0.0
    %3968 = vmatprep.subr.mxu0 0.0
    %3969 = vmatpush1.msra.mxu0 0.0
    %3970 = vmatprep.subr.mxu0 0.0
    %3971 = vmatpush1.msra.mxu0 0.0
    %3972 = vmatprep.subr.mxu0 0.0
    %3973 = vmatpush1.msra.mxu0 0.0
    %3974 = vmatprep.subr.mxu0 0.0
    %3975 = vmatpush1.msra.mxu0 0.0
    %3976 = vmatprep.subr.mxu0 0.0
    %3977 = vmatpush1.msra.mxu0 0.0
    %3978 = vmatprep.subr.mxu0 0.0
    %3979 = vmatpush1.msra.mxu0 0.0
    %v3980 = vand.u32 %v3559, 4294901760
    %3981 = vmatprep.subr.mxu0 %v3980
    %v3982 = vand.u32 %v3558, 4294901760
    %3983 = vmatpush1.msra.mxu0 %v3982
    %v3984 = vand.u32 %v3555, 4294901760
    %3985 = vmatprep.subr.mxu0 %v3984
    %v3986 = vand.u32 %v3554, 4294901760
    %3987 = vmatpush1.msra.mxu0 %v3986
    %v3988 = vand.u32 %v3551, 4294901760
    %3989 = vmatprep.subr.mxu0 %v3988
    %v3990 = vand.u32 %v3550, 4294901760
    %3991 = vmatpush1.msra.mxu0 %v3990
    %v3992 = vand.u32 %v3547, 4294901760
    %3993 = vmatprep.subr.mxu0 %v3992
    %v3994 = vand.u32 %v3546, 4294901760
    %3995 = vmatpush1.msra.mxu0 %v3994
    %v3996 = vand.u32 %v3543, 4294901760
    %3997 = vmatprep.subr.mxu0 %v3996
    %v3998 = vand.u32 %v3542, 4294901760
    %3999 = vmatpush1.msra.mxu0 %v3998
    %v4000 = vand.u32 %v3539, 4294901760
    %4001 = vmatprep.subr.mxu0 %v4000
    %v4002 = vand.u32 %v3538, 4294901760
    %4003 = vmatpush1.msra.mxu0 %v4002
    %v4004 = vand.u32 %v3535, 4294901760
    %4005 = vmatprep.subr.mxu0 %v4004
    %v4006 = vand.u32 %v3534, 4294901760
    %4007 = vmatpush1.msra.mxu0 %v4006
    %v4008 = vand.u32 %v3531, 4294901760
    %4009 = vmatprep.subr.mxu0 %v4008
    %v4010 = vand.u32 %v3530, 4294901760
    %4011 = vmatpush1.msra.mxu0 %v4010
    %v4012 = vand.u32 %v3527, 4294901760
    %4013 = vmatprep.subr.mxu0 %v4012
    %v4014 = vand.u32 %v3526, 4294901760
    %4015 = vmatpush1.msra.mxu0 %v4014
    %4016 = vmatprep.subr.mxu0 0.0
    %4017 = vmatpush2.msra.mxu0 0.0
    %4018 = vmatprep.subr.mxu0 0.0
    %4019 = vmatpush2.msra.mxu0 0.0
    %4020 = vmatprep.subr.mxu0 0.0
    %4021 = vmatpush2.msra.mxu0 0.0
    %4022 = vmatprep.subr.mxu0 0.0
    %4023 = vmatpush2.msra.mxu0 0.0
    %4024 = vmatprep.subr.mxu0 0.0
    %4025 = vmatpush2.msra.mxu0 0.0
    %4026 = vmatprep.subr.mxu0 0.0
    %4027 = vmatpush2.msra.mxu0 0.0
    %4028 = vmatprep.subr.mxu0 0.0
    %4029 = vmatpush2.msra.mxu0 0.0
    %4030 = vmatprep.subr.mxu0 0.0
    %4031 = vmatpush2.msra.mxu0 0.0
    %4032 = vmatprep.subr.mxu0 0.0
    %4033 = vmatpush2.msra.mxu0 0.0
    %4034 = vmatprep.subr.mxu0 0.0
    %4035 = vmatpush2.msra.mxu0 0.0
    %4036 = vmatprep.subr.mxu0 0.0
    %4037 = vmatpush2.msra.mxu0 0.0
    %4038 = vmatprep.subr.mxu0 0.0
    %4039 = vmatpush2.msra.mxu0 0.0
    %4040 = vmatprep.subr.mxu0 0.0
    %4041 = vmatpush2.msra.mxu0 0.0
    %4042 = vmatprep.subr.mxu0 0.0
    %4043 = vmatpush2.msra.mxu0 0.0
    %4044 = vmatprep.subr.mxu0 0.0
    %4045 = vmatpush2.msra.mxu0 0.0
    %4046 = vmatprep.subr.mxu0 0.0
    %4047 = vmatpush2.msra.mxu0 0.0
    %4048 = vmatprep.mubr.f32.mxu0 0.0
    %v4049 = vand.u32 %v3599, 4294901760
    %v4050 = vsub.f32 %v3599, %v4049
    %v4051 = vand.u32 %v4050, 4294901760
    %4052 = vmatmul.mubr.f32.gmra.mxu0 %v4051
    %v4053 = vpop.f32.mrf.mxu0
    %v4054 = vadd.f32 %v3962, %v4053
    %v4055 = vpop.f32.mrf.mxu0
    %v4056 = vadd.f32 %v3964, %v4055
    %4057 = vdwg.mxu0
    %4058 = vmatprep.subr.mxu0 0.0
    %4059 = vmatpush1.msra.mxu0 0.0
    %4060 = vmatprep.subr.mxu0 0.0
    %4061 = vmatpush1.msra.mxu0 0.0
    %4062 = vmatprep.subr.mxu0 0.0
    %4063 = vmatpush1.msra.mxu0 0.0
    %4064 = vmatprep.subr.mxu0 0.0
    %4065 = vmatpush1.msra.mxu0 0.0
    %4066 = vmatprep.subr.mxu0 0.0
    %4067 = vmatpush1.msra.mxu0 0.0
    %4068 = vmatprep.subr.mxu0 0.0
    %4069 = vmatpush1.msra.mxu0 0.0
    %4070 = vmatprep.subr.mxu0 0.0
    %4071 = vmatpush1.msra.mxu0 0.0
    %v4072 = vand.u32 %v3559, 4294901760
    %v4073 = vsub.f32 %v3559, %v4072
    %v4074 = vand.u32 %v4073, 4294901760
    %4075 = vmatprep.subr.mxu0 %v4074
    %v4076 = vand.u32 %v3558, 4294901760
    %v4077 = vsub.f32 %v3558, %v4076
    %v4078 = vand.u32 %v4077, 4294901760
    %4079 = vmatpush1.msra.mxu0 %v4078
    %v4080 = vand.u32 %v3555, 4294901760
    %v4081 = vsub.f32 %v3555, %v4080
    %v4082 = vand.u32 %v4081, 4294901760
    %4083 = vmatprep.subr.mxu0 %v4082
    %v4084 = vand.u32 %v3554, 4294901760
    %v4085 = vsub.f32 %v3554, %v4084
    %v4086 = vand.u32 %v4085, 4294901760
    %4087 = vmatpush1.msra.mxu0 %v4086
    %v4088 = vand.u32 %v3551, 4294901760
    %v4089 = vsub.f32 %v3551, %v4088
    %v4090 = vand.u32 %v4089, 4294901760
    %4091 = vmatprep.subr.mxu0 %v4090
    %v4092 = vand.u32 %v3550, 4294901760
    %v4093 = vsub.f32 %v3550, %v4092
    %v4094 = vand.u32 %v4093, 4294901760
    %4095 = vmatpush1.msra.mxu0 %v4094
    %v4096 = vand.u32 %v3547, 4294901760
    %v4097 = vsub.f32 %v3547, %v4096
    %v4098 = vand.u32 %v4097, 4294901760
    %4099 = vmatprep.subr.mxu0 %v4098
    %v4100 = vand.u32 %v3546, 4294901760
    %v4101 = vsub.f32 %v3546, %v4100
    %v4102 = vand.u32 %v4101, 4294901760
    %4103 = vmatpush1.msra.mxu0 %v4102
    %v4104 = vand.u32 %v3543, 4294901760
    %v4105 = vsub.f32 %v3543, %v4104
    %v4106 = vand.u32 %v4105, 4294901760
    %4107 = vmatprep.subr.mxu0 %v4106
    %v4108 = vand.u32 %v3542, 4294901760
    %v4109 = vsub.f32 %v3542, %v4108
    %v4110 = vand.u32 %v4109, 4294901760
    %4111 = vmatpush1.msra.mxu0 %v4110
    %v4112 = vand.u32 %v3539, 4294901760
    %v4113 = vsub.f32 %v3539, %v4112
    %v4114 = vand.u32 %v4113, 4294901760
    %4115 = vmatprep.subr.mxu0 %v4114
    %v4116 = vand.u32 %v3538, 4294901760
    %v4117 = vsub.f32 %v3538, %v4116
    %v4118 = vand.u32 %v4117, 4294901760
    %4119 = vmatpush1.msra.mxu0 %v4118
    %v4120 = vand.u32 %v3535, 4294901760
    %v4121 = vsub.f32 %v3535, %v4120
    %v4122 = vand.u32 %v4121, 4294901760
    %4123 = vmatprep.subr.mxu0 %v4122
    %v4124 = vand.u32 %v3534, 4294901760
    %v4125 = vsub.f32 %v3534, %v4124
    %v4126 = vand.u32 %v4125, 4294901760
    %4127 = vmatpush1.msra.mxu0 %v4126
    %v4128 = vand.u32 %v3531, 4294901760
    %v4129 = vsub.f32 %v3531, %v4128
    %v4130 = vand.u32 %v4129, 4294901760
    %4131 = vmatprep.subr.mxu0 %v4130
    %v4132 = vand.u32 %v3530, 4294901760
    %v4133 = vsub.f32 %v3530, %v4132
    %v4134 = vand.u32 %v4133, 4294901760
    %4135 = vmatpush1.msra.mxu0 %v4134
    %v4136 = vand.u32 %v3527, 4294901760
    %v4137 = vsub.f32 %v3527, %v4136
    %v4138 = vand.u32 %v4137, 4294901760
    %4139 = vmatprep.subr.mxu0 %v4138
    %v4140 = vand.u32 %v3526, 4294901760
    %v4141 = vsub.f32 %v3526, %v4140
    %v4142 = vand.u32 %v4141, 4294901760
    %4143 = vmatpush1.msra.mxu0 %v4142
    %4144 = vmatprep.subr.mxu0 0.0
    %4145 = vmatpush2.msra.mxu0 0.0
    %4146 = vmatprep.subr.mxu0 0.0
    %4147 = vmatpush2.msra.mxu0 0.0
    %4148 = vmatprep.subr.mxu0 0.0
    %4149 = vmatpush2.msra.mxu0 0.0
    %4150 = vmatprep.subr.mxu0 0.0
    %4151 = vmatpush2.msra.mxu0 0.0
    %4152 = vmatprep.subr.mxu0 0.0
    %4153 = vmatpush2.msra.mxu0 0.0
    %4154 = vmatprep.subr.mxu0 0.0
    %4155 = vmatpush2.msra.mxu0 0.0
    %4156 = vmatprep.subr.mxu0 0.0
    %4157 = vmatpush2.msra.mxu0 0.0
    %4158 = vmatprep.subr.mxu0 0.0
    %4159 = vmatpush2.msra.mxu0 0.0
    %4160 = vmatprep.subr.mxu0 0.0
    %4161 = vmatpush2.msra.mxu0 0.0
    %4162 = vmatprep.subr.mxu0 0.0
    %4163 = vmatpush2.msra.mxu0 0.0
    %4164 = vmatprep.subr.mxu0 0.0
    %4165 = vmatpush2.msra.mxu0 0.0
    %4166 = vmatprep.subr.mxu0 0.0
    %4167 = vmatpush2.msra.mxu0 0.0
    %4168 = vmatprep.subr.mxu0 0.0
    %4169 = vmatpush2.msra.mxu0 0.0
    %4170 = vmatprep.subr.mxu0 0.0
    %4171 = vmatpush2.msra.mxu0 0.0
    %4172 = vmatprep.subr.mxu0 0.0
    %4173 = vmatpush2.msra.mxu0 0.0
    %4174 = vmatprep.subr.mxu0 0.0
    %4175 = vmatpush2.msra.mxu0 0.0
    %4176 = vmatprep.mubr.f32.mxu0 0.0
    %v4177 = vand.u32 %v3599, 4294901760
    %4178 = vmatmul.mubr.f32.gmra.mxu0 %v4177
    %v4179 = vpop.f32.mrf.mxu0
    %v4180 = vadd.f32 %v4054, %v4179
    %v4181 = vpop.f32.mrf.mxu0
    %v4182 = vadd.f32 %v4056, %v4181
    %4183 = vdwg.mxu0
    %4184 = vmatprep.subr.mxu0 0.0
    %4185 = vmatpush1.msra.mxu0 0.0
    %4186 = vmatprep.subr.mxu0 0.0
    %4187 = vmatpush1.msra.mxu0 0.0
    %4188 = vmatprep.subr.mxu0 0.0
    %4189 = vmatpush1.msra.mxu0 0.0
    %4190 = vmatprep.subr.mxu0 0.0
    %4191 = vmatpush1.msra.mxu0 0.0
    %4192 = vmatprep.subr.mxu0 0.0
    %4193 = vmatpush1.msra.mxu0 0.0
    %4194 = vmatprep.subr.mxu0 0.0
    %4195 = vmatpush1.msra.mxu0 0.0
    %4196 = vmatprep.subr.mxu0 0.0
    %4197 = vmatpush1.msra.mxu0 0.0
    %v4198 = vand.u32 %v3559, 4294901760
    %4199 = vmatprep.subr.mxu0 %v4198
    %v4200 = vand.u32 %v3558, 4294901760
    %4201 = vmatpush1.msra.mxu0 %v4200
    %v4202 = vand.u32 %v3555, 4294901760
    %4203 = vmatprep.subr.mxu0 %v4202
    %v4204 = vand.u32 %v3554, 4294901760
    %4205 = vmatpush1.msra.mxu0 %v4204
    %v4206 = vand.u32 %v3551, 4294901760
    %4207 = vmatprep.subr.mxu0 %v4206
    %v4208 = vand.u32 %v3550, 4294901760
    %4209 = vmatpush1.msra.mxu0 %v4208
    %v4210 = vand.u32 %v3547, 4294901760
    %4211 = vmatprep.subr.mxu0 %v4210
    %v4212 = vand.u32 %v3546, 4294901760
    %4213 = vmatpush1.msra.mxu0 %v4212
    %v4214 = vand.u32 %v3543, 4294901760
    %4215 = vmatprep.subr.mxu0 %v4214
    %v4216 = vand.u32 %v3542, 4294901760
    %4217 = vmatpush1.msra.mxu0 %v4216
    %v4218 = vand.u32 %v3539, 4294901760
    %4219 = vmatprep.subr.mxu0 %v4218
    %v4220 = vand.u32 %v3538, 4294901760
    %4221 = vmatpush1.msra.mxu0 %v4220
    %v4222 = vand.u32 %v3535, 4294901760
    %4223 = vmatprep.subr.mxu0 %v4222
    %v4224 = vand.u32 %v3534, 4294901760
    %4225 = vmatpush1.msra.mxu0 %v4224
    %v4226 = vand.u32 %v3531, 4294901760
    %4227 = vmatprep.subr.mxu0 %v4226
    %v4228 = vand.u32 %v3530, 4294901760
    %4229 = vmatpush1.msra.mxu0 %v4228
    %v4230 = vand.u32 %v3527, 4294901760
    %4231 = vmatprep.subr.mxu0 %v4230
    %v4232 = vand.u32 %v3526, 4294901760
    %4233 = vmatpush1.msra.mxu0 %v4232
    %4234 = vmatprep.subr.mxu0 0.0
    %4235 = vmatpush2.msra.mxu0 0.0
    %4236 = vmatprep.subr.mxu0 0.0
    %4237 = vmatpush2.msra.mxu0 0.0
    %4238 = vmatprep.subr.mxu0 0.0
    %4239 = vmatpush2.msra.mxu0 0.0
    %4240 = vmatprep.subr.mxu0 0.0
    %4241 = vmatpush2.msra.mxu0 0.0
    %4242 = vmatprep.subr.mxu0 0.0
    %4243 = vmatpush2.msra.mxu0 0.0
    %4244 = vmatprep.subr.mxu0 0.0
    %4245 = vmatpush2.msra.mxu0 0.0
    %4246 = vmatprep.subr.mxu0 0.0
    %4247 = vmatpush2.msra.mxu0 0.0
    %4248 = vmatprep.subr.mxu0 0.0
    %4249 = vmatpush2.msra.mxu0 0.0
    %4250 = vmatprep.subr.mxu0 0.0
    %4251 = vmatpush2.msra.mxu0 0.0
    %4252 = vmatprep.subr.mxu0 0.0
    %4253 = vmatpush2.msra.mxu0 0.0
    %4254 = vmatprep.subr.mxu0 0.0
    %4255 = vmatpush2.msra.mxu0 0.0
    %4256 = vmatprep.subr.mxu0 0.0
    %4257 = vmatpush2.msra.mxu0 0.0
    %4258 = vmatprep.subr.mxu0 0.0
    %4259 = vmatpush2.msra.mxu0 0.0
    %4260 = vmatprep.subr.mxu0 0.0
    %4261 = vmatpush2.msra.mxu0 0.0
    %4262 = vmatprep.subr.mxu0 0.0
    %4263 = vmatpush2.msra.mxu0 0.0
    %4264 = vmatprep.subr.mxu0 0.0
    %4265 = vmatpush2.msra.mxu0 0.0
    %4266 = vmatprep.mubr.f32.mxu0 0.0
    %v4267 = vand.u32 %v3599, 4294901760
    %4268 = vmatmul.mubr.f32.gmra.mxu0 %v4267
    %v4269 = vpop.f32.mrf.mxu0
    %v4270 = vadd.f32 %v4180, %v4269
    %v4271 = vpop.f32.mrf.mxu0
    %v4272 = vadd.f32 %v4182, %v4271
    %4273 = vdwg.mxu0
    %4274 = vmatprep.subr.mxu0 0.0
    %4275 = vmatpush1.msra.mxu0 0.0
    %4276 = vmatprep.subr.mxu0 0.0
    %4277 = vmatpush1.msra.mxu0 0.0
    %4278 = vmatprep.subr.mxu0 0.0
    %4279 = vmatpush1.msra.mxu0 0.0
    %4280 = vmatprep.subr.mxu0 0.0
    %4281 = vmatpush1.msra.mxu0 0.0
    %4282 = vmatprep.subr.mxu0 0.0
    %4283 = vmatpush1.msra.mxu0 0.0
    %4284 = vmatprep.subr.mxu0 0.0
    %4285 = vmatpush1.msra.mxu0 0.0
    %4286 = vmatprep.subr.mxu0 0.0
    %4287 = vmatpush1.msra.mxu0 0.0
    %v4288 = vand.u32 %v3561, 4294901760
    %4289 = vmatprep.subr.mxu0 %v4288
    %v4290 = vand.u32 %v3560, 4294901760
    %4291 = vmatpush1.msra.mxu0 %v4290
    %v4292 = vand.u32 %v3557, 4294901760
    %4293 = vmatprep.subr.mxu0 %v4292
    %v4294 = vand.u32 %v3556, 4294901760
    %4295 = vmatpush1.msra.mxu0 %v4294
    %v4296 = vand.u32 %v3553, 4294901760
    %4297 = vmatprep.subr.mxu0 %v4296
    %v4298 = vand.u32 %v3552, 4294901760
    %4299 = vmatpush1.msra.mxu0 %v4298
    %v4300 = vand.u32 %v3549, 4294901760
    %4301 = vmatprep.subr.mxu0 %v4300
    %v4302 = vand.u32 %v3548, 4294901760
    %4303 = vmatpush1.msra.mxu0 %v4302
    %v4304 = vand.u32 %v3545, 4294901760
    %4305 = vmatprep.subr.mxu0 %v4304
    %v4306 = vand.u32 %v3544, 4294901760
    %4307 = vmatpush1.msra.mxu0 %v4306
    %v4308 = vand.u32 %v3541, 4294901760
    %4309 = vmatprep.subr.mxu0 %v4308
    %v4310 = vand.u32 %v3540, 4294901760
    %4311 = vmatpush1.msra.mxu0 %v4310
    %v4312 = vand.u32 %v3537, 4294901760
    %4313 = vmatprep.subr.mxu0 %v4312
    %v4314 = vand.u32 %v3536, 4294901760
    %4315 = vmatpush1.msra.mxu0 %v4314
    %v4316 = vand.u32 %v3533, 4294901760
    %4317 = vmatprep.subr.mxu0 %v4316
    %v4318 = vand.u32 %v3532, 4294901760
    %4319 = vmatpush1.msra.mxu0 %v4318
    %v4320 = vand.u32 %v3529, 4294901760
    %4321 = vmatprep.subr.mxu0 %v4320
    %v4322 = vand.u32 %v3528, 4294901760
    %4323 = vmatpush1.msra.mxu0 %v4322
    %4324 = vmatprep.subr.mxu0 0.0
    %4325 = vmatpush2.msra.mxu0 0.0
    %4326 = vmatprep.subr.mxu0 0.0
    %4327 = vmatpush2.msra.mxu0 0.0
    %4328 = vmatprep.subr.mxu0 0.0
    %4329 = vmatpush2.msra.mxu0 0.0
    %4330 = vmatprep.subr.mxu0 0.0
    %4331 = vmatpush2.msra.mxu0 0.0
    %4332 = vmatprep.subr.mxu0 0.0
    %4333 = vmatpush2.msra.mxu0 0.0
    %4334 = vmatprep.subr.mxu0 0.0
    %4335 = vmatpush2.msra.mxu0 0.0
    %4336 = vmatprep.subr.mxu0 0.0
    %4337 = vmatpush2.msra.mxu0 0.0
    %4338 = vmatprep.subr.mxu0 0.0
    %4339 = vmatpush2.msra.mxu0 0.0
    %4340 = vmatprep.subr.mxu0 0.0
    %4341 = vmatpush2.msra.mxu0 0.0
    %4342 = vmatprep.subr.mxu0 0.0
    %4343 = vmatpush2.msra.mxu0 0.0
    %4344 = vmatprep.subr.mxu0 0.0
    %4345 = vmatpush2.msra.mxu0 0.0
    %4346 = vmatprep.subr.mxu0 0.0
    %4347 = vmatpush2.msra.mxu0 0.0
    %4348 = vmatprep.subr.mxu0 0.0
    %4349 = vmatpush2.msra.mxu0 0.0
    %4350 = vmatprep.subr.mxu0 0.0
    %4351 = vmatpush2.msra.mxu0 0.0
    %4352 = vmatprep.subr.mxu0 0.0
    %4353 = vmatpush2.msra.mxu0 0.0
    %4354 = vmatprep.subr.mxu0 0.0
    %4355 = vmatpush2.msra.mxu0 0.0
    %4356 = vmatprep.mubr.f32.mxu0 0.0
    %v4357 = vand.u32 %v3599, 4294901760
    %v4358 = vsub.f32 %v3599, %v4357
    %v4359 = vand.u32 %v4358, 4294901760
    %v4360 = vsub.f32 %v4358, %v4359
    %v4361 = vand.u32 %v4360, 4294901760
    %4362 = vmatmul.mubr.f32.gmra.mxu0 %v4361
    %v4363 = vpop.f32.mrf.mxu0
    %v4364 = vadd.f32 %v3392, %v4363
    %v4365 = vpop.f32.mrf.mxu0
    %v4366 = vadd.f32 %v3392, %v4365
    %4367 = vdwg.mxu0
    %4368 = vmatprep.subr.mxu0 0.0
    %4369 = vmatpush1.msra.mxu0 0.0
    %4370 = vmatprep.subr.mxu0 0.0
    %4371 = vmatpush1.msra.mxu0 0.0
    %4372 = vmatprep.subr.mxu0 0.0
    %4373 = vmatpush1.msra.mxu0 0.0
    %4374 = vmatprep.subr.mxu0 0.0
    %4375 = vmatpush1.msra.mxu0 0.0
    %4376 = vmatprep.subr.mxu0 0.0
    %4377 = vmatpush1.msra.mxu0 0.0
    %4378 = vmatprep.subr.mxu0 0.0
    %4379 = vmatpush1.msra.mxu0 0.0
    %4380 = vmatprep.subr.mxu0 0.0
    %4381 = vmatpush1.msra.mxu0 0.0
    %v4382 = vand.u32 %v3561, 4294901760
    %v4383 = vsub.f32 %v3561, %v4382
    %v4384 = vand.u32 %v4383, 4294901760
    %v4385 = vsub.f32 %v4383, %v4384
    %v4386 = vand.u32 %v4385, 4294901760
    %4387 = vmatprep.subr.mxu0 %v4386
    %v4388 = vand.u32 %v3560, 4294901760
    %v4389 = vsub.f32 %v3560, %v4388
    %v4390 = vand.u32 %v4389, 4294901760
    %v4391 = vsub.f32 %v4389, %v4390
    %v4392 = vand.u32 %v4391, 4294901760
    %4393 = vmatpush1.msra.mxu0 %v4392
    %v4394 = vand.u32 %v3557, 4294901760
    %v4395 = vsub.f32 %v3557, %v4394
    %v4396 = vand.u32 %v4395, 4294901760
    %v4397 = vsub.f32 %v4395, %v4396
    %v4398 = vand.u32 %v4397, 4294901760
    %4399 = vmatprep.subr.mxu0 %v4398
    %v4400 = vand.u32 %v3556, 4294901760
    %v4401 = vsub.f32 %v3556, %v4400
    %v4402 = vand.u32 %v4401, 4294901760
    %v4403 = vsub.f32 %v4401, %v4402
    %v4404 = vand.u32 %v4403, 4294901760
    %4405 = vmatpush1.msra.mxu0 %v4404
    %v4406 = vand.u32 %v3553, 4294901760
    %v4407 = vsub.f32 %v3553, %v4406
    %v4408 = vand.u32 %v4407, 4294901760
    %v4409 = vsub.f32 %v4407, %v4408
    %v4410 = vand.u32 %v4409, 4294901760
    %4411 = vmatprep.subr.mxu0 %v4410
    %v4412 = vand.u32 %v3552, 4294901760
    %v4413 = vsub.f32 %v3552, %v4412
    %v4414 = vand.u32 %v4413, 4294901760
    %v4415 = vsub.f32 %v4413, %v4414
    %v4416 = vand.u32 %v4415, 4294901760
    %4417 = vmatpush1.msra.mxu0 %v4416
    %v4418 = vand.u32 %v3549, 4294901760
    %v4419 = vsub.f32 %v3549, %v4418
    %v4420 = vand.u32 %v4419, 4294901760
    %v4421 = vsub.f32 %v4419, %v4420
    %v4422 = vand.u32 %v4421, 4294901760
    %4423 = vmatprep.subr.mxu0 %v4422
    %v4424 = vand.u32 %v3548, 4294901760
    %v4425 = vsub.f32 %v3548, %v4424
    %v4426 = vand.u32 %v4425, 4294901760
    %v4427 = vsub.f32 %v4425, %v4426
    %v4428 = vand.u32 %v4427, 4294901760
    %4429 = vmatpush1.msra.mxu0 %v4428
    %v4430 = vand.u32 %v3545, 4294901760
    %v4431 = vsub.f32 %v3545, %v4430
    %v4432 = vand.u32 %v4431, 4294901760
    %v4433 = vsub.f32 %v4431, %v4432
    %v4434 = vand.u32 %v4433, 4294901760
    %4435 = vmatprep.subr.mxu0 %v4434
    %v4436 = vand.u32 %v3544, 4294901760
    %v4437 = vsub.f32 %v3544, %v4436
    %v4438 = vand.u32 %v4437, 4294901760
    %v4439 = vsub.f32 %v4437, %v4438
    %v4440 = vand.u32 %v4439, 4294901760
    %4441 = vmatpush1.msra.mxu0 %v4440
    %v4442 = vand.u32 %v3541, 4294901760
    %v4443 = vsub.f32 %v3541, %v4442
    %v4444 = vand.u32 %v4443, 4294901760
    %v4445 = vsub.f32 %v4443, %v4444
    %v4446 = vand.u32 %v4445, 4294901760
    %4447 = vmatprep.subr.mxu0 %v4446
    %v4448 = vand.u32 %v3540, 4294901760
    %v4449 = vsub.f32 %v3540, %v4448
    %v4450 = vand.u32 %v4449, 4294901760
    %v4451 = vsub.f32 %v4449, %v4450
    %v4452 = vand.u32 %v4451, 4294901760
    %4453 = vmatpush1.msra.mxu0 %v4452
    %v4454 = vand.u32 %v3537, 4294901760
    %v4455 = vsub.f32 %v3537, %v4454
    %v4456 = vand.u32 %v4455, 4294901760
    %v4457 = vsub.f32 %v4455, %v4456
    %v4458 = vand.u32 %v4457, 4294901760
    %4459 = vmatprep.subr.mxu0 %v4458
    %v4460 = vand.u32 %v3536, 4294901760
    %v4461 = vsub.f32 %v3536, %v4460
    %v4462 = vand.u32 %v4461, 4294901760
    %v4463 = vsub.f32 %v4461, %v4462
    %v4464 = vand.u32 %v4463, 4294901760
    %4465 = vmatpush1.msra.mxu0 %v4464
    %v4466 = vand.u32 %v3533, 4294901760
    %v4467 = vsub.f32 %v3533, %v4466
    %v4468 = vand.u32 %v4467, 4294901760
    %v4469 = vsub.f32 %v4467, %v4468
    %v4470 = vand.u32 %v4469, 4294901760
    %4471 = vmatprep.subr.mxu0 %v4470
    %v4472 = vand.u32 %v3532, 4294901760
    %v4473 = vsub.f32 %v3532, %v4472
    %v4474 = vand.u32 %v4473, 4294901760
    %v4475 = vsub.f32 %v4473, %v4474
    %v4476 = vand.u32 %v4475, 4294901760
    %4477 = vmatpush1.msra.mxu0 %v4476
    %v4478 = vand.u32 %v3529, 4294901760
    %v4479 = vsub.f32 %v3529, %v4478
    %v4480 = vand.u32 %v4479, 4294901760
    %v4481 = vsub.f32 %v4479, %v4480
    %v4482 = vand.u32 %v4481, 4294901760
    %4483 = vmatprep.subr.mxu0 %v4482
    %v4484 = vand.u32 %v3528, 4294901760
    %v4485 = vsub.f32 %v3528, %v4484
    %v4486 = vand.u32 %v4485, 4294901760
    %v4487 = vsub.f32 %v4485, %v4486
    %v4488 = vand.u32 %v4487, 4294901760
    %4489 = vmatpush1.msra.mxu0 %v4488
    %4490 = vmatprep.subr.mxu0 0.0
    %4491 = vmatpush2.msra.mxu0 0.0
    %4492 = vmatprep.subr.mxu0 0.0
    %4493 = vmatpush2.msra.mxu0 0.0
    %4494 = vmatprep.subr.mxu0 0.0
    %4495 = vmatpush2.msra.mxu0 0.0
    %4496 = vmatprep.subr.mxu0 0.0
    %4497 = vmatpush2.msra.mxu0 0.0
    %4498 = vmatprep.subr.mxu0 0.0
    %4499 = vmatpush2.msra.mxu0 0.0
    %4500 = vmatprep.subr.mxu0 0.0
    %4501 = vmatpush2.msra.mxu0 0.0
    %4502 = vmatprep.subr.mxu0 0.0
    %4503 = vmatpush2.msra.mxu0 0.0
    %4504 = vmatprep.subr.mxu0 0.0
    %4505 = vmatpush2.msra.mxu0 0.0
    %4506 = vmatprep.subr.mxu0 0.0
    %4507 = vmatpush2.msra.mxu0 0.0
    %4508 = vmatprep.subr.mxu0 0.0
    %4509 = vmatpush2.msra.mxu0 0.0
    %4510 = vmatprep.subr.mxu0 0.0
    %4511 = vmatpush2.msra.mxu0 0.0
    %4512 = vmatprep.subr.mxu0 0.0
    %4513 = vmatpush2.msra.mxu0 0.0
    %4514 = vmatprep.subr.mxu0 0.0
    %4515 = vmatpush2.msra.mxu0 0.0
    %4516 = vmatprep.subr.mxu0 0.0
    %4517 = vmatpush2.msra.mxu0 0.0
    %4518 = vmatprep.subr.mxu0 0.0
    %4519 = vmatpush2.msra.mxu0 0.0
    %4520 = vmatprep.subr.mxu0 0.0
    %4521 = vmatpush2.msra.mxu0 0.0
    %4522 = vmatprep.mubr.f32.mxu0 0.0
    %v4523 = vand.u32 %v3599, 4294901760
    %4524 = vmatmul.mubr.f32.gmra.mxu0 %v4523
    %v4525 = vpop.f32.mrf.mxu0
    %v4526 = vadd.f32 %v4364, %v4525
    %v4527 = vpop.f32.mrf.mxu0
    %v4528 = vadd.f32 %v4366, %v4527
    %4529 = vdwg.mxu0
    %4530 = vmatprep.subr.mxu0 0.0
    %4531 = vmatpush1.msra.mxu0 0.0
    %4532 = vmatprep.subr.mxu0 0.0
    %4533 = vmatpush1.msra.mxu0 0.0
    %4534 = vmatprep.subr.mxu0 0.0
    %4535 = vmatpush1.msra.mxu0 0.0
    %4536 = vmatprep.subr.mxu0 0.0
    %4537 = vmatpush1.msra.mxu0 0.0
    %4538 = vmatprep.subr.mxu0 0.0
    %4539 = vmatpush1.msra.mxu0 0.0
    %4540 = vmatprep.subr.mxu0 0.0
    %4541 = vmatpush1.msra.mxu0 0.0
    %4542 = vmatprep.subr.mxu0 0.0
    %4543 = vmatpush1.msra.mxu0 0.0
    %v4544 = vand.u32 %v3561, 4294901760
    %v4545 = vsub.f32 %v3561, %v4544
    %4546 = vmatprep.subr.mxu0 %v4545
    %v4547 = vand.u32 %v3560, 4294901760
    %v4548 = vsub.f32 %v3560, %v4547
    %4549 = vmatpush1.msra.mxu0 %v4548
    %v4550 = vand.u32 %v3557, 4294901760
    %v4551 = vsub.f32 %v3557, %v4550
    %4552 = vmatprep.subr.mxu0 %v4551
    %v4553 = vand.u32 %v3556, 4294901760
    %v4554 = vsub.f32 %v3556, %v4553
    %4555 = vmatpush1.msra.mxu0 %v4554
    %v4556 = vand.u32 %v3553, 4294901760
    %v4557 = vsub.f32 %v3553, %v4556
    %4558 = vmatprep.subr.mxu0 %v4557
    %v4559 = vand.u32 %v3552, 4294901760
    %v4560 = vsub.f32 %v3552, %v4559
    %4561 = vmatpush1.msra.mxu0 %v4560
    %v4562 = vand.u32 %v3549, 4294901760
    %v4563 = vsub.f32 %v3549, %v4562
    %4564 = vmatprep.subr.mxu0 %v4563
    %v4565 = vand.u32 %v3548, 4294901760
    %v4566 = vsub.f32 %v3548, %v4565
    %4567 = vmatpush1.msra.mxu0 %v4566
    %v4568 = vand.u32 %v3545, 4294901760
    %v4569 = vsub.f32 %v3545, %v4568
    %4570 = vmatprep.subr.mxu0 %v4569
    %v4571 = vand.u32 %v3544, 4294901760
    %v4572 = vsub.f32 %v3544, %v4571
    %4573 = vmatpush1.msra.mxu0 %v4572
    %v4574 = vand.u32 %v3541, 4294901760
    %v4575 = vsub.f32 %v3541, %v4574
    %4576 = vmatprep.subr.mxu0 %v4575
    %v4577 = vand.u32 %v3540, 4294901760
    %v4578 = vsub.f32 %v3540, %v4577
    %4579 = vmatpush1.msra.mxu0 %v4578
    %v4580 = vand.u32 %v3537, 4294901760
    %v4581 = vsub.f32 %v3537, %v4580
    %4582 = vmatprep.subr.mxu0 %v4581
    %v4583 = vand.u32 %v3536, 4294901760
    %v4584 = vsub.f32 %v3536, %v4583
    %4585 = vmatpush1.msra.mxu0 %v4584
    %v4586 = vand.u32 %v3533, 4294901760
    %v4587 = vsub.f32 %v3533, %v4586
    %4588 = vmatprep.subr.mxu0 %v4587
    %v4589 = vand.u32 %v3532, 4294901760
    %v4590 = vsub.f32 %v3532, %v4589
    %4591 = vmatpush1.msra.mxu0 %v4590
    %v4592 = vand.u32 %v3529, 4294901760
    %v4593 = vsub.f32 %v3529, %v4592
    %4594 = vmatprep.subr.mxu0 %v4593
    %v4595 = vand.u32 %v3528, 4294901760
    %v4596 = vsub.f32 %v3528, %v4595
    %4597 = vmatpush1.msra.mxu0 %v4596
    %4598 = vmatprep.subr.mxu0 0.0
    %4599 = vmatpush2.msra.mxu0 0.0
    %4600 = vmatprep.subr.mxu0 0.0
    %4601 = vmatpush2.msra.mxu0 0.0
    %4602 = vmatprep.subr.mxu0 0.0
    %4603 = vmatpush2.msra.mxu0 0.0
    %4604 = vmatprep.subr.mxu0 0.0
    %4605 = vmatpush2.msra.mxu0 0.0
    %4606 = vmatprep.subr.mxu0 0.0
    %4607 = vmatpush2.msra.mxu0 0.0
    %4608 = vmatprep.subr.mxu0 0.0
    %4609 = vmatpush2.msra.mxu0 0.0
    %4610 = vmatprep.subr.mxu0 0.0
    %4611 = vmatpush2.msra.mxu0 0.0
    %4612 = vmatprep.subr.mxu0 0.0
    %4613 = vmatpush2.msra.mxu0 0.0
    %4614 = vmatprep.subr.mxu0 0.0
    %4615 = vmatpush2.msra.mxu0 0.0
    %4616 = vmatprep.subr.mxu0 0.0
    %4617 = vmatpush2.msra.mxu0 0.0
    %4618 = vmatprep.subr.mxu0 0.0
    %4619 = vmatpush2.msra.mxu0 0.0
    %4620 = vmatprep.subr.mxu0 0.0
    %4621 = vmatpush2.msra.mxu0 0.0
    %4622 = vmatprep.subr.mxu0 0.0
    %4623 = vmatpush2.msra.mxu0 0.0
    %4624 = vmatprep.subr.mxu0 0.0
    %4625 = vmatpush2.msra.mxu0 0.0
    %4626 = vmatprep.subr.mxu0 0.0
    %4627 = vmatpush2.msra.mxu0 0.0
    %4628 = vmatprep.subr.mxu0 0.0
    %4629 = vmatpush2.msra.mxu0 0.0
    %4630 = vmatprep.mubr.f32.mxu0 0.0
    %v4631 = vand.u32 %v3599, 4294901760
    %v4632 = vsub.f32 %v3599, %v4631
    %4633 = vmatmul.mubr.f32.gmra.mxu0 %v4632
    %v4634 = vpop.f32.mrf.mxu0
    %v4635 = vadd.f32 %v4526, %v4634
    %v4636 = vpop.f32.mrf.mxu0
    %v4637 = vadd.f32 %v4528, %v4636
    %4638 = vdwg.mxu0
    %4639 = vmatprep.subr.mxu0 0.0
    %4640 = vmatpush1.msra.mxu0 0.0
    %4641 = vmatprep.subr.mxu0 0.0
    %4642 = vmatpush1.msra.mxu0 0.0
    %4643 = vmatprep.subr.mxu0 0.0
    %4644 = vmatpush1.msra.mxu0 0.0
    %4645 = vmatprep.subr.mxu0 0.0
    %4646 = vmatpush1.msra.mxu0 0.0
    %4647 = vmatprep.subr.mxu0 0.0
    %4648 = vmatpush1.msra.mxu0 0.0
    %4649 = vmatprep.subr.mxu0 0.0
    %4650 = vmatpush1.msra.mxu0 0.0
    %4651 = vmatprep.subr.mxu0 0.0
    %4652 = vmatpush1.msra.mxu0 0.0
    %v4653 = vand.u32 %v3561, 4294901760
    %4654 = vmatprep.subr.mxu0 %v4653
    %v4655 = vand.u32 %v3560, 4294901760
    %4656 = vmatpush1.msra.mxu0 %v4655
    %v4657 = vand.u32 %v3557, 4294901760
    %4658 = vmatprep.subr.mxu0 %v4657
    %v4659 = vand.u32 %v3556, 4294901760
    %4660 = vmatpush1.msra.mxu0 %v4659
    %v4661 = vand.u32 %v3553, 4294901760
    %4662 = vmatprep.subr.mxu0 %v4661
    %v4663 = vand.u32 %v3552, 4294901760
    %4664 = vmatpush1.msra.mxu0 %v4663
    %v4665 = vand.u32 %v3549, 4294901760
    %4666 = vmatprep.subr.mxu0 %v4665
    %v4667 = vand.u32 %v3548, 4294901760
    %4668 = vmatpush1.msra.mxu0 %v4667
    %v4669 = vand.u32 %v3545, 4294901760
    %4670 = vmatprep.subr.mxu0 %v4669
    %v4671 = vand.u32 %v3544, 4294901760
    %4672 = vmatpush1.msra.mxu0 %v4671
    %v4673 = vand.u32 %v3541, 4294901760
    %4674 = vmatprep.subr.mxu0 %v4673
    %v4675 = vand.u32 %v3540, 4294901760
    %4676 = vmatpush1.msra.mxu0 %v4675
    %v4677 = vand.u32 %v3537, 4294901760
    %4678 = vmatprep.subr.mxu0 %v4677
    %v4679 = vand.u32 %v3536, 4294901760
    %4680 = vmatpush1.msra.mxu0 %v4679
    %v4681 = vand.u32 %v3533, 4294901760
    %4682 = vmatprep.subr.mxu0 %v4681
    %v4683 = vand.u32 %v3532, 4294901760
    %4684 = vmatpush1.msra.mxu0 %v4683
    %v4685 = vand.u32 %v3529, 4294901760
    %4686 = vmatprep.subr.mxu0 %v4685
    %v4687 = vand.u32 %v3528, 4294901760
    %4688 = vmatpush1.msra.mxu0 %v4687
    %4689 = vmatprep.subr.mxu0 0.0
    %4690 = vmatpush2.msra.mxu0 0.0
    %4691 = vmatprep.subr.mxu0 0.0
    %4692 = vmatpush2.msra.mxu0 0.0
    %4693 = vmatprep.subr.mxu0 0.0
    %4694 = vmatpush2.msra.mxu0 0.0
    %4695 = vmatprep.subr.mxu0 0.0
    %4696 = vmatpush2.msra.mxu0 0.0
    %4697 = vmatprep.subr.mxu0 0.0
    %4698 = vmatpush2.msra.mxu0 0.0
    %4699 = vmatprep.subr.mxu0 0.0
    %4700 = vmatpush2.msra.mxu0 0.0
    %4701 = vmatprep.subr.mxu0 0.0
    %4702 = vmatpush2.msra.mxu0 0.0
    %4703 = vmatprep.subr.mxu0 0.0
    %4704 = vmatpush2.msra.mxu0 0.0
    %4705 = vmatprep.subr.mxu0 0.0
    %4706 = vmatpush2.msra.mxu0 0.0
    %4707 = vmatprep.subr.mxu0 0.0
    %4708 = vmatpush2.msra.mxu0 0.0
    %4709 = vmatprep.subr.mxu0 0.0
    %4710 = vmatpush2.msra.mxu0 0.0
    %4711 = vmatprep.subr.mxu0 0.0
    %4712 = vmatpush2.msra.mxu0 0.0
    %4713 = vmatprep.subr.mxu0 0.0
    %4714 = vmatpush2.msra.mxu0 0.0
    %4715 = vmatprep.subr.mxu0 0.0
    %4716 = vmatpush2.msra.mxu0 0.0
    %4717 = vmatprep.subr.mxu0 0.0
    %4718 = vmatpush2.msra.mxu0 0.0
    %4719 = vmatprep.subr.mxu0 0.0
    %4720 = vmatpush2.msra.mxu0 0.0
    %4721 = vmatprep.mubr.f32.mxu0 0.0
    %v4722 = vand.u32 %v3599, 4294901760
    %v4723 = vsub.f32 %v3599, %v4722
    %v4724 = vand.u32 %v4723, 4294901760
    %4725 = vmatmul.mubr.f32.gmra.mxu0 %v4724
    %v4726 = vpop.f32.mrf.mxu0
    %v4727 = vadd.f32 %v4635, %v4726
    %v4728 = vpop.f32.mrf.mxu0
    %v4729 = vadd.f32 %v4637, %v4728
    %4730 = vdwg.mxu0
    %4731 = vmatprep.subr.mxu0 0.0
    %4732 = vmatpush1.msra.mxu0 0.0
    %4733 = vmatprep.subr.mxu0 0.0
    %4734 = vmatpush1.msra.mxu0 0.0
    %4735 = vmatprep.subr.mxu0 0.0
    %4736 = vmatpush1.msra.mxu0 0.0
    %4737 = vmatprep.subr.mxu0 0.0
    %4738 = vmatpush1.msra.mxu0 0.0
    %4739 = vmatprep.subr.mxu0 0.0
    %4740 = vmatpush1.msra.mxu0 0.0
    %4741 = vmatprep.subr.mxu0 0.0
    %4742 = vmatpush1.msra.mxu0 0.0
    %4743 = vmatprep.subr.mxu0 0.0
    %4744 = vmatpush1.msra.mxu0 0.0
    %v4745 = vand.u32 %v3561, 4294901760
    %v4746 = vsub.f32 %v3561, %v4745
    %v4747 = vand.u32 %v4746, 4294901760
    %4748 = vmatprep.subr.mxu0 %v4747
    %v4749 = vand.u32 %v3560, 4294901760
    %v4750 = vsub.f32 %v3560, %v4749
    %v4751 = vand.u32 %v4750, 4294901760
    %4752 = vmatpush1.msra.mxu0 %v4751
    %v4753 = vand.u32 %v3557, 4294901760
    %v4754 = vsub.f32 %v3557, %v4753
    %v4755 = vand.u32 %v4754, 4294901760
    %4756 = vmatprep.subr.mxu0 %v4755
    %v4757 = vand.u32 %v3556, 4294901760
    %v4758 = vsub.f32 %v3556, %v4757
    %v4759 = vand.u32 %v4758, 4294901760
    %4760 = vmatpush1.msra.mxu0 %v4759
    %v4761 = vand.u32 %v3553, 4294901760
    %v4762 = vsub.f32 %v3553, %v4761
    %v4763 = vand.u32 %v4762, 4294901760
    %4764 = vmatprep.subr.mxu0 %v4763
    %v4765 = vand.u32 %v3552, 4294901760
    %v4766 = vsub.f32 %v3552, %v4765
    %v4767 = vand.u32 %v4766, 4294901760
    %4768 = vmatpush1.msra.mxu0 %v4767
    %v4769 = vand.u32 %v3549, 4294901760
    %v4770 = vsub.f32 %v3549, %v4769
    %v4771 = vand.u32 %v4770, 4294901760
    %4772 = vmatprep.subr.mxu0 %v4771
    %v4773 = vand.u32 %v3548, 4294901760
    %v4774 = vsub.f32 %v3548, %v4773
    %v4775 = vand.u32 %v4774, 4294901760
    %4776 = vmatpush1.msra.mxu0 %v4775
    %v4777 = vand.u32 %v3545, 4294901760
    %v4778 = vsub.f32 %v3545, %v4777
    %v4779 = vand.u32 %v4778, 4294901760
    %4780 = vmatprep.subr.mxu0 %v4779
    %v4781 = vand.u32 %v3544, 4294901760
    %v4782 = vsub.f32 %v3544, %v4781
    %v4783 = vand.u32 %v4782, 4294901760
    %4784 = vmatpush1.msra.mxu0 %v4783
    %v4785 = vand.u32 %v3541, 4294901760
    %v4786 = vsub.f32 %v3541, %v4785
    %v4787 = vand.u32 %v4786, 4294901760
    %4788 = vmatprep.subr.mxu0 %v4787
    %v4789 = vand.u32 %v3540, 4294901760
    %v4790 = vsub.f32 %v3540, %v4789
    %v4791 = vand.u32 %v4790, 4294901760
    %4792 = vmatpush1.msra.mxu0 %v4791
    %v4793 = vand.u32 %v3537, 4294901760
    %v4794 = vsub.f32 %v3537, %v4793
    %v4795 = vand.u32 %v4794, 4294901760
    %4796 = vmatprep.subr.mxu0 %v4795
    %v4797 = vand.u32 %v3536, 4294901760
    %v4798 = vsub.f32 %v3536, %v4797
    %v4799 = vand.u32 %v4798, 4294901760
    %4800 = vmatpush1.msra.mxu0 %v4799
    %v4801 = vand.u32 %v3533, 4294901760
    %v4802 = vsub.f32 %v3533, %v4801
    %v4803 = vand.u32 %v4802, 4294901760
    %4804 = vmatprep.subr.mxu0 %v4803
    %v4805 = vand.u32 %v3532, 4294901760
    %v4806 = vsub.f32 %v3532, %v4805
    %v4807 = vand.u32 %v4806, 4294901760
    %4808 = vmatpush1.msra.mxu0 %v4807
    %v4809 = vand.u32 %v3529, 4294901760
    %v4810 = vsub.f32 %v3529, %v4809
    %v4811 = vand.u32 %v4810, 4294901760
    %4812 = vmatprep.subr.mxu0 %v4811
    %v4813 = vand.u32 %v3528, 4294901760
    %v4814 = vsub.f32 %v3528, %v4813
    %v4815 = vand.u32 %v4814, 4294901760
    %4816 = vmatpush1.msra.mxu0 %v4815
    %4817 = vmatprep.subr.mxu0 0.0
    %4818 = vmatpush2.msra.mxu0 0.0
    %4819 = vmatprep.subr.mxu0 0.0
    %4820 = vmatpush2.msra.mxu0 0.0
    %4821 = vmatprep.subr.mxu0 0.0
    %4822 = vmatpush2.msra.mxu0 0.0
    %4823 = vmatprep.subr.mxu0 0.0
    %4824 = vmatpush2.msra.mxu0 0.0
    %4825 = vmatprep.subr.mxu0 0.0
    %4826 = vmatpush2.msra.mxu0 0.0
    %4827 = vmatprep.subr.mxu0 0.0
    %4828 = vmatpush2.msra.mxu0 0.0
    %4829 = vmatprep.subr.mxu0 0.0
    %4830 = vmatpush2.msra.mxu0 0.0
    %4831 = vmatprep.subr.mxu0 0.0
    %4832 = vmatpush2.msra.mxu0 0.0
    %4833 = vmatprep.subr.mxu0 0.0
    %4834 = vmatpush2.msra.mxu0 0.0
    %4835 = vmatprep.subr.mxu0 0.0
    %4836 = vmatpush2.msra.mxu0 0.0
    %4837 = vmatprep.subr.mxu0 0.0
    %4838 = vmatpush2.msra.mxu0 0.0
    %4839 = vmatprep.subr.mxu0 0.0
    %4840 = vmatpush2.msra.mxu0 0.0
    %4841 = vmatprep.subr.mxu0 0.0
    %4842 = vmatpush2.msra.mxu0 0.0
    %4843 = vmatprep.subr.mxu0 0.0
    %4844 = vmatpush2.msra.mxu0 0.0
    %4845 = vmatprep.subr.mxu0 0.0
    %4846 = vmatpush2.msra.mxu0 0.0
    %4847 = vmatprep.subr.mxu0 0.0
    %4848 = vmatpush2.msra.mxu0 0.0
    %4849 = vmatprep.mubr.f32.mxu0 0.0
    %v4850 = vand.u32 %v3599, 4294901760
    %4851 = vmatmul.mubr.f32.gmra.mxu0 %v4850
    %v4852 = vpop.f32.mrf.mxu0
    %v4853 = vadd.f32 %v4727, %v4852
    %v4854 = vpop.f32.mrf.mxu0
    %v4855 = vadd.f32 %v4729, %v4854
    %4856 = vdwg.mxu0
    %4857 = vmatprep.subr.mxu0 0.0
    %4858 = vmatpush1.msra.mxu0 0.0
    %4859 = vmatprep.subr.mxu0 0.0
    %4860 = vmatpush1.msra.mxu0 0.0
    %4861 = vmatprep.subr.mxu0 0.0
    %4862 = vmatpush1.msra.mxu0 0.0
    %4863 = vmatprep.subr.mxu0 0.0
    %4864 = vmatpush1.msra.mxu0 0.0
    %4865 = vmatprep.subr.mxu0 0.0
    %4866 = vmatpush1.msra.mxu0 0.0
    %4867 = vmatprep.subr.mxu0 0.0
    %4868 = vmatpush1.msra.mxu0 0.0
    %4869 = vmatprep.subr.mxu0 0.0
    %4870 = vmatpush1.msra.mxu0 0.0
    %v4871 = vand.u32 %v3561, 4294901760
    %4872 = vmatprep.subr.mxu0 %v4871
    %v4873 = vand.u32 %v3560, 4294901760
    %4874 = vmatpush1.msra.mxu0 %v4873
    %v4875 = vand.u32 %v3557, 4294901760
    %4876 = vmatprep.subr.mxu0 %v4875
    %v4877 = vand.u32 %v3556, 4294901760
    %4878 = vmatpush1.msra.mxu0 %v4877
    %v4879 = vand.u32 %v3553, 4294901760
    %4880 = vmatprep.subr.mxu0 %v4879
    %v4881 = vand.u32 %v3552, 4294901760
    %4882 = vmatpush1.msra.mxu0 %v4881
    %v4883 = vand.u32 %v3549, 4294901760
    %4884 = vmatprep.subr.mxu0 %v4883
    %v4885 = vand.u32 %v3548, 4294901760
    %4886 = vmatpush1.msra.mxu0 %v4885
    %v4887 = vand.u32 %v3545, 4294901760
    %4888 = vmatprep.subr.mxu0 %v4887
    %v4889 = vand.u32 %v3544, 4294901760
    %4890 = vmatpush1.msra.mxu0 %v4889
    %v4891 = vand.u32 %v3541, 4294901760
    %4892 = vmatprep.subr.mxu0 %v4891
    %v4893 = vand.u32 %v3540, 4294901760
    %4894 = vmatpush1.msra.mxu0 %v4893
    %v4895 = vand.u32 %v3537, 4294901760
    %4896 = vmatprep.subr.mxu0 %v4895
    %v4897 = vand.u32 %v3536, 4294901760
    %4898 = vmatpush1.msra.mxu0 %v4897
    %v4899 = vand.u32 %v3533, 4294901760
    %4900 = vmatprep.subr.mxu0 %v4899
    %v4901 = vand.u32 %v3532, 4294901760
    %4902 = vmatpush1.msra.mxu0 %v4901
    %v4903 = vand.u32 %v3529, 4294901760
    %4904 = vmatprep.subr.mxu0 %v4903
    %v4905 = vand.u32 %v3528, 4294901760
    %4906 = vmatpush1.msra.mxu0 %v4905
    %4907 = vmatprep.subr.mxu0 0.0
    %4908 = vmatpush2.msra.mxu0 0.0
    %4909 = vmatprep.subr.mxu0 0.0
    %4910 = vmatpush2.msra.mxu0 0.0
    %4911 = vmatprep.subr.mxu0 0.0
    %4912 = vmatpush2.msra.mxu0 0.0
    %4913 = vmatprep.subr.mxu0 0.0
    %4914 = vmatpush2.msra.mxu0 0.0
    %4915 = vmatprep.subr.mxu0 0.0
    %4916 = vmatpush2.msra.mxu0 0.0
    %4917 = vmatprep.subr.mxu0 0.0
    %4918 = vmatpush2.msra.mxu0 0.0
    %4919 = vmatprep.subr.mxu0 0.0
    %4920 = vmatpush2.msra.mxu0 0.0
    %4921 = vmatprep.subr.mxu0 0.0
    %4922 = vmatpush2.msra.mxu0 0.0
    %4923 = vmatprep.subr.mxu0 0.0
    %4924 = vmatpush2.msra.mxu0 0.0
    %4925 = vmatprep.subr.mxu0 0.0
    %4926 = vmatpush2.msra.mxu0 0.0
    %4927 = vmatprep.subr.mxu0 0.0
    %4928 = vmatpush2.msra.mxu0 0.0
    %4929 = vmatprep.subr.mxu0 0.0
    %4930 = vmatpush2.msra.mxu0 0.0
    %4931 = vmatprep.subr.mxu0 0.0
    %4932 = vmatpush2.msra.mxu0 0.0
    %4933 = vmatprep.subr.mxu0 0.0
    %4934 = vmatpush2.msra.mxu0 0.0
    %4935 = vmatprep.subr.mxu0 0.0
    %4936 = vmatpush2.msra.mxu0 0.0
    %4937 = vmatprep.subr.mxu0 0.0
    %4938 = vmatpush2.msra.mxu0 0.0
    %4939 = vmatprep.mubr.f32.mxu0 0.0
    %v4940 = vand.u32 %v3599, 4294901760
    %4941 = vmatmul.mubr.f32.gmra.mxu0 %v4940
    %v4942 = vpop.f32.mrf.mxu0
    %v4943 = vadd.f32 %v4853, %v4942
    %v4944 = vpop.f32.mrf.mxu0
    %v4945 = vadd.f32 %v4855, %v4944
    %4946 = vdwg.mxu0
    %4947 = vst [vmem:[#allocation5] sm:$0xff] %v4270
    %4948 = vst [vmem:[#allocation5 + $0x8] sm:$0xff] %v4272
    %4949 = vst [vmem:[#allocation5 + $0x10] sm:$0xff] %v4943
    %4950 = vst [vmem:[#allocation5 + $0x18] sm:$0xff] %v4945
    // Predicated region
    $region38: #{tpu_custom_call.1} parent=1 // pred_check
      _
    $region39: #{tpu_custom_call.1} parent=1 // pred_check_branch
      %4952 = sbr.rel (0) target = $region41
    $region40: #{tpu_custom_call.1} parent=1 // pred_region
      %s4954 = ssub.s32 512, 512
      %4955 = vsyncadd [#allocation4], %s4954
      %s4957 = sshll.u32 [#allocation5], 4
      %s4958 = int_to_ptr.vmem [resolvable:$true] %s4957
      %4960 = dma.vmem_to_hbm [thread:$0]  %s4958, 512, %s8, [#allocation4]
    $region41: #{tpu_custom_call.1} parent=1 // pred_fallthru
      _
    // Predicated region
    $region42: #{tpu_custom_call.1} parent=1 // pred_check
      _
    $region43: #{tpu_custom_call.1} parent=1 // pred_check_branch
      %4962 = sbr.rel (0) target = $region45
    $region44: #{tpu_custom_call.1} parent=1 // pred_region
      %4963 = dma.done [#allocation4], 512
    $region45: #{tpu_custom_call.1} parent=1 // pred_fallthru
      _
    %4964 = vsyncpa [#allocation3], 1
    %4965 = vsyncpa [#allocation4], 1

</llo_original>
